<compile_context>
chip_gen: v7x
topology: tpu7x:2x2x1
jax: 0.10.0
libtpu: 0.0.40
codegen_flags: <defaults>
</compile_context>

<pallas_src>
import jax
import jax.numpy as jnp
from jax import lax
from jax.experimental import pallas as pl
from jax.experimental.pallas import tpu as pltpu


# ----------------------------------------------------------------------------
# In-kernel helper: 3x3 "same" conv via im2col + a single MXU matmul
# ----------------------------------------------------------------------------
def _pad_conv3x3(pad_ref, xin, w_ref, bias_ref):
    """pad_ref: VMEM scratch (H+2, W+2, Cin); xin: (H, W, Cin) value.

    w_ref: (9*Cin, Cout) ref (taps flattened HWIO-style), bias_ref: (1, Cout).
    Returns the conv output as (H*W, Cout) f32.
    """
    H, W, Cin = xin.shape
    # Zero only the 1-wide halo (cheap; re-done every grid step so it is safe
    # under a "parallel" grid axis), then write the interior.
    zrow = jnp.zeros((1, W + 2, Cin), jnp.float32)
    pad_ref[0:1] = zrow
    pad_ref[H + 1:H + 2] = zrow
    zcol = jnp.zeros((H + 2, 1, Cin), jnp.float32)
    pad_ref[:, 0:1] = zcol
    pad_ref[:, W + 1:W + 2] = zcol
    pad_ref[1:H + 1, 1:W + 1, :] = xin

    # im2col once: (H*W, 9*Cin) patch matrix, then ONE matmul with K = 9*Cin.
    cols = []
    for k in range(9):
        dh, dw = divmod(k, 3)
        cols.append(pad_ref[dh:dh + H, dw:dw + W, :].reshape(H * W, Cin))
    patch = jnp.concatenate(cols, axis=1)                      # (H*W, 9*Cin)
    return (jnp.dot(patch, w_ref[...], preferred_element_type=jnp.float32)
            + bias_ref[...])


# ----------------------------------------------------------------------------
# Kernel A: MaxUnpool2d(2,2) + conv1 + per-sample BN statistics
# ----------------------------------------------------------------------------
def unpool_conv_kernel(x_ref, idx_ref, w_ref, bias_ref, z_ref, stats_ref, pad_ref):
    _, Hs, Ws, Cin = x_ref.shape
    Hout, Wout = 2 * Hs, 2 * Ws
    Cout = w_ref.shape[1]

    x = x_ref[0]                                   # (Hs, Ws, Cin)
    idx = idx_ref[0]
    hh = lax.broadcasted_iota(jnp.int32, (Hs, Ws, Cin), 0)
    ww = lax.broadcasted_iota(jnp.int32, (Hs, Ws, Cin), 1)

    # Build the dense unpooled map in-registers (never hits HBM).
    rows = []
    for di in range(2):
        parts = []
        for dj in range(2):
            tgt = (2 * hh + di) * Wout + (2 * ww + dj)
            parts.append(jnp.where(idx == tgt, x, 0.0))
        rows.append(jnp.stack(parts, axis=2).reshape(Hs, Wout, Cin))
    up = jnp.stack(rows, axis=1).reshape(Hout, Wout, Cin)

    acc = _pad_conv3x3(pad_ref, up, w_ref, bias_ref)           # (Hout*Wout, Cout)
    z_ref[0] = acc.reshape(Hout, Wout, Cout)
    stats_ref[0] = jnp.stack([jnp.sum(acc, axis=0),
                              jnp.sum(acc * acc, axis=0)], axis=0)


# ----------------------------------------------------------------------------
# Kernel B: folded BN + ReLU + conv2 + per-sample BN statistics
# ----------------------------------------------------------------------------
def affine_relu_conv_kernel(x_ref, a_ref, b_ref, w_ref, bias_ref,
                            z_ref, stats_ref, pad_ref):
    _, H, W, Cin = x_ref.shape
    Cout = w_ref.shape[1]
    y = jnp.maximum(x_ref[0] * a_ref[...].reshape(1, 1, Cin)
                    + b_ref[...].reshape(1, 1, Cin), 0.0)
    acc = _pad_conv3x3(pad_ref, y, w_ref, bias_ref)
    z_ref[0] = acc.reshape(H, W, Cout)
    stats_ref[0] = jnp.stack([jnp.sum(acc, axis=0),
                              jnp.sum(acc * acc, axis=0)], axis=0)


# ----------------------------------------------------------------------------
# Kernel C: folded BN + ReLU + channel attention + spatial attention (fused)
# ----------------------------------------------------------------------------
def bn_relu_cbam_kernel(z_ref, a_ref, b_ref, caw1_ref, caw2_ref, saw_ref, sab_ref,
                        out_ref):
    _, H, W, C = z_ref.shape
    y = jnp.maximum(z_ref[0] * a_ref[...].reshape(1, 1, C)
                    + b_ref[...].reshape(1, 1, C), 0.0)

    # ---- channel attention (shared MLP over global avg / max pooling) ----
    avg_c = jnp.mean(y, axis=(0, 1)).reshape(1, C)
    max_c = jnp.max(y, axis=(0, 1)).reshape(1, C)

    def mlp(v):
        h = jnp.maximum(jnp.dot(v, caw1_ref[...],
                                preferred_element_type=jnp.float32), 0.0)
        return jnp.dot(h, caw2_ref[...], preferred_element_type=jnp.float32)

    att_c = jax.nn.sigmoid(mlp(avg_c) + mlp(max_c))            # (1, C)
    y = y * att_c.reshape(1, 1, C)

    # ---- spatial attention: keep W on the lane axis -----------------------
    avg_s = jnp.mean(y, axis=-1)                               # (H, W)
    max_s = jnp.max(y, axis=-1)                                # (H, W)

    def pad3(m):                                               # (H,W)->(H+6,W+6)
        zc = jnp.zeros((H, 3), jnp.float32)
        m = jnp.concatenate([zc, m, zc], axis=1)
        zr = jnp.zeros((3, W + 6), jnp.float32)
        return jnp.concatenate([zr, m, zr], axis=0)

    avg_p = pad3(avg_s)
    max_p = pad3(max_s)

    acc = jnp.full((H, W), sab_ref[0], jnp.float32)
    for k in range(49):
        dh, dw = divmod(k, 7)
        acc = (acc
               + avg_p[dh:dh + H, dw:dw + W] * saw_ref[2 * k]
               + max_p[dh:dh + H, dw:dw + W] * saw_ref[2 * k + 1])
    att_s = jax.nn.sigmoid(acc)                                # (H, W)
    out_ref[0] = y * att_s.reshape(H, W, 1)


# ----------------------------------------------------------------------------
# Wrapper
# ----------------------------------------------------------------------------
def _bn_fold(stats, gamma, beta, count, eps=1e-5):
    """Combine per-sample (sum, sumsq) into BatchNorm scale/shift (train mode)."""
    s = jnp.sum(stats[:, 0, :], axis=0)
    sq = jnp.sum(stats[:, 1, :], axis=0)
    mu = s / count
    var = jnp.maximum(sq / count - mu * mu, 0.0)               # biased batch var
    a = gamma * lax.rsqrt(var + eps)
    b = beta - mu * a
    return a.reshape(1, -1).astype(jnp.float32), b.reshape(1, -1).astype(jnp.float32)


def decoder_block_forward(x_nchw, indices_nchw, size, params):
    N, Cin, Hs, Ws = x_nchw.shape
    _, _, Hout, Wout = size
    assert Hout == 2 * Hs and Wout == 2 * Ws, "MaxUnpool2d(2,2) doubles H and W"
    Cout = params["w2"].shape[-1]
    cr = params["ca_w1"].shape[-1]

    # NCHW -> NHWC (channels on the lane axis inside the kernels).
    x = jnp.transpose(x_nchw, (0, 2, 3, 1)).astype(jnp.float32)
    idx = jnp.transpose(indices_nchw, (0, 2, 3, 1)).astype(jnp.int32)

    parallel = pltpu.CompilerParams(dimension_semantics=("parallel",))

    # ---- kernel A: unpool + conv1 + per-sample stats -----------------------
    w1 = params["w1"].reshape(9 * Cin, Cin)
    b1 = params["b1"].reshape(1, Cin)
    z1, st1 = pl.pallas_call(
        unpool_conv_kernel,
        grid=(N,),
        in_specs=[
            pl.BlockSpec((1, Hs, Ws, Cin), lambda n: (n, 0, 0, 0)),
            pl.BlockSpec((1, Hs, Ws, Cin), lambda n: (n, 0, 0, 0)),
            pl.BlockSpec((9 * Cin, Cin), lambda n: (0, 0)),
            pl.BlockSpec((1, Cin), lambda n: (0, 0)),
        ],
        out_specs=(
            pl.BlockSpec((1, Hout, Wout, Cin), lambda n: (n, 0, 0, 0)),
            pl.BlockSpec((1, 2, Cin), lambda n: (n, 0, 0)),
        ),
        out_shape=(
            jax.ShapeDtypeStruct((N, Hout, Wout, Cin), jnp.float32),
            jax.ShapeDtypeStruct((N, 2, Cin), jnp.float32),
        ),
        scratch_shapes=[pltpu.VMEM((Hout + 2, Wout + 2, Cin), jnp.float32)],
        compiler_params=parallel,
    )(x, idx, w1, b1)
    a1, c1 = _bn_fold(st1, params["g1"], params["be1"], N * Hout * Wout)

    # ---- kernel B: bn1 + relu + conv2 + per-sample stats -------------------
    w2 = params["w2"].reshape(9 * Cin, Cout)
    b2 = params["b2"].reshape(1, Cout)
    z2, st2 = pl.pallas_call(
        affine_relu_conv_kernel,
        grid=(N,),
        in_specs=[
            pl.BlockSpec((1, Hout, Wout, Cin), lambda n: (n, 0, 0, 0)),
            pl.BlockSpec((1, Cin), lambda n: (0, 0)),
            pl.BlockSpec((1, Cin), lambda n: (0, 0)),
            pl.BlockSpec((9 * Cin, Cout), lambda n: (0, 0)),
            pl.BlockSpec((1, Cout), lambda n: (0, 0)),
        ],
        out_specs=(
            pl.BlockSpec((1, Hout, Wout, Cout), lambda n: (n, 0, 0, 0)),
            pl.BlockSpec((1, 2, Cout), lambda n: (n, 0, 0)),
        ),
        out_shape=(
            jax.ShapeDtypeStruct((N, Hout, Wout, Cout), jnp.float32),
            jax.ShapeDtypeStruct((N, 2, Cout), jnp.float32),
        ),
        scratch_shapes=[pltpu.VMEM((Hout + 2, Wout + 2, Cin), jnp.float32)],
        compiler_params=parallel,
    )(z1, a1, c1, w2, b2)
    a2, c2 = _bn_fold(st2, params["g2"], params["be2"], N * Hout * Wout)

    # ---- kernel C: bn2 + relu + channel att + spatial att (fused) ----------
    y = pl.pallas_call(
        bn_relu_cbam_kernel,
        grid=(N,),
        in_specs=[
            pl.BlockSpec((1, Hout, Wout, Cout), lambda n: (n, 0, 0, 0)),
            pl.BlockSpec((1, Cout), lambda n: (0, 0)),
            pl.BlockSpec((1, Cout), lambda n: (0, 0)),
            pl.BlockSpec((Cout, cr), lambda n: (0, 0)),
            pl.BlockSpec((cr, Cout), lambda n: (0, 0)),
            pl.BlockSpec(memory_space=pltpu.MemorySpace.SMEM),
            pl.BlockSpec(memory_space=pltpu.MemorySpace.SMEM),
        ],
        out_specs=pl.BlockSpec((1, Hout, Wout, Cout), lambda n: (n, 0, 0, 0)),
        out_shape=jax.ShapeDtypeStruct((N, Hout, Wout, Cout), jnp.float32),
        compiler_params=parallel,
    )(z2, a2, c2, params["ca_w1"], params["ca_w2"],
      params["sa_w"].reshape(98), params["sa_b"])

    return jnp.transpose(y, (0, 3, 1, 2))  # back to NCHW


# ----------------------------------------------------------------------------
# Deterministic parameter init (shapes from DecoderBlock.__init__)
# ----------------------------------------------------------------------------
def init_params(key, cin, cout, ratio=8):
    ks = jax.random.split(key, 12)
    s = 0.1
    cr = max(cout // ratio, 1)
    return {
        # conv1 / bn1
        "w1": s * jax.random.normal(ks[0], (3, 3, cin, cin), jnp.float32),
        "b1": s * jax.random.normal(ks[1], (cin,), jnp.float32),
        "g1": 1.0 + s * jax.random.normal(ks[2], (cin,), jnp.float32),
        "be1": s * jax.random.normal(ks[3], (cin,), jnp.float32),
        # conv2 / bn2
        "w2": s * jax.random.normal(ks[4], (3, 3, cin, cout), jnp.float32),
        "b2": s * jax.random.normal(ks[5], (cout,), jnp.float32),
        "g2": 1.0 + s * jax.random.normal(ks[6], (cout,), jnp.float32),
        "be2": s * jax.random.normal(ks[7], (cout,), jnp.float32),
        # channel attention shared MLP (1x1 convs, no bias)
        "ca_w1": s * jax.random.normal(ks[8], (cout, cr), jnp.float32),
        "ca_w2": s * jax.random.normal(ks[9], (cr, cout), jnp.float32),
        # spatial attention 7x7 conv (2 -> 1, with bias); [:, 0]=avg, [:, 1]=max
        "sa_w": s * jax.random.normal(ks[10], (49, 2), jnp.float32),
        "sa_b": s * jax.random.normal(ks[11], (1,), jnp.float32),
    }


# ----------------------------------------------------------------------------
if __name__ == "__main__":
    key = jax.random.PRNGKey(0)
    N, Cin, Cout, Hs, Ws = 2, 16, 16, 8, 8
    kx, ki, kp = jax.random.split(key, 3)

    # Pooled features and valid unpooling indices (flat indices into the
    # (2Hs)x(2Ws) output plane, inside each 2x2 window, exactly as
    # nn.MaxPool2d(2, 2, return_indices=True) produces).
    x = jax.random.normal(kx, (N, Cin, Hs, Ws), jnp.float32)
    sel = jax.random.randint(ki, (N, Cin, Hs, Ws, 2), 0, 2)
    hh = jnp.arange(Hs)[None, None, :, None]
    ww = jnp.arange(Ws)[None, None, None, :]
    indices = ((2 * hh + sel[..., 0]) * (2 * Ws)
               + (2 * ww + sel[..., 1])).astype(jnp.int32)
    size = (N, Cin, 2 * Hs, 2 * Ws)

    params = init_params(kp, Cin, Cout)

    out = decoder_block_forward(x, indices, size, params)
    out = jax.block_until_ready(out)
    assert out.shape == (N, Cout, 2 * Hs, 2 * Ws) and out.dtype == jnp.float32
    print("KERNEL_OK")
</pallas_src>

<mosaic_0001>
module attributes {stable_mosaic.version = 11 : i64} {
  func.func @unpool_conv_kernel(%arg0: i32, %arg1: memref<1x8x8x16xf32, #tpu.memory_space<vmem>>, %arg2: memref<1x8x8x16xi32, #tpu.memory_space<vmem>>, %arg3: memref<144x16xf32, #tpu.memory_space<vmem>>, %arg4: memref<1x16xf32, #tpu.memory_space<vmem>>, %arg5: memref<1x16x16x16xf32, #tpu.memory_space<vmem>>, %arg6: memref<1x2x16xf32, #tpu.memory_space<vmem>>, %arg7: memref<18x18x16xf32, #tpu.memory_space<vmem>>) attributes {dimension_semantics = [#tpu.dimension_semantics<parallel>], iteration_bounds = array<i64: 2>, scalar_prefetch = 0 : i64, scratch_operands = 1 : i64, tpu.core_type = #tpu.core_type<tc>, window_params = [{transform_indices = @transform_0, window_bounds = array<i64: 1, 8, 8, 16>}, {transform_indices = @transform_1, window_bounds = array<i64: 1, 8, 8, 16>}, {pipeline_mode = #tpu.pipeline_mode<synchronous>, transform_indices = @transform_2, window_bounds = array<i64: 144, 16>}, {pipeline_mode = #tpu.pipeline_mode<synchronous>, transform_indices = @transform_3, window_bounds = array<i64: 1, 16>}, {transform_indices = @transform_4, window_bounds = array<i64: 1, 16, 16, 16>}, {transform_indices = @transform_5, window_bounds = array<i64: 1, 2, 16>}]} {
    %c0 = arith.constant 0 : index
    %c0_0 = arith.constant 0 : index
    %c0_1 = arith.constant 0 : index
    %c0_2 = arith.constant 0 : index
    %0 = vector.load %arg1[%c0, %c0_0, %c0_1, %c0_2] : memref<1x8x8x16xf32, #tpu.memory_space<vmem>>, vector<1x8x8x16xf32>
    %1 = vector.shape_cast %0 : vector<1x8x8x16xf32> to vector<8x8x16xf32>
    %c0_3 = arith.constant 0 : index
    %c0_4 = arith.constant 0 : index
    %c0_5 = arith.constant 0 : index
    %c0_6 = arith.constant 0 : index
    %2 = vector.load %arg2[%c0_3, %c0_4, %c0_5, %c0_6] : memref<1x8x8x16xi32, #tpu.memory_space<vmem>>, vector<1x8x8x16xi32>
    %3 = vector.shape_cast %2 : vector<1x8x8x16xi32> to vector<8x8x16xi32>
    %4 = tpu.iota {dimensions = array<i32: 0>} : vector<8x8x16xi32>
    %5 = tpu.iota {dimensions = array<i32: 1>} : vector<8x8x16xi32>
    %c2_i32 = arith.constant 2 : i32
    %6 = vector.broadcast %c2_i32 : i32 to vector<8x8x16xi32>
    %7 = arith.muli %6, %4 : vector<8x8x16xi32>
    %c0_i32 = arith.constant 0 : i32
    %8 = vector.broadcast %c0_i32 : i32 to vector<8x8x16xi32>
    %9 = arith.addi %7, %8 : vector<8x8x16xi32>
    %c16_i32 = arith.constant 16 : i32
    %10 = vector.broadcast %c16_i32 : i32 to vector<8x8x16xi32>
    %11 = arith.muli %9, %10 : vector<8x8x16xi32>
    %c2_i32_7 = arith.constant 2 : i32
    %12 = vector.broadcast %c2_i32_7 : i32 to vector<8x8x16xi32>
    %13 = arith.muli %12, %5 : vector<8x8x16xi32>
    %c0_i32_8 = arith.constant 0 : i32
    %14 = vector.broadcast %c0_i32_8 : i32 to vector<8x8x16xi32>
    %15 = arith.addi %13, %14 : vector<8x8x16xi32>
    %16 = arith.addi %11, %15 : vector<8x8x16xi32>
    %17 = arith.cmpi eq, %3, %16 : vector<8x8x16xi32>
    %cst = arith.constant 0.000000e+00 : f32
    %18 = vector.broadcast %cst : f32 to vector<8x8x16xf32>
    %19 = arith.select %17, %1, %18 : vector<8x8x16xi1>, vector<8x8x16xf32>
    %c2_i32_9 = arith.constant 2 : i32
    %20 = vector.broadcast %c2_i32_9 : i32 to vector<8x8x16xi32>
    %21 = arith.muli %20, %4 : vector<8x8x16xi32>
    %c0_i32_10 = arith.constant 0 : i32
    %22 = vector.broadcast %c0_i32_10 : i32 to vector<8x8x16xi32>
    %23 = arith.addi %21, %22 : vector<8x8x16xi32>
    %c16_i32_11 = arith.constant 16 : i32
    %24 = vector.broadcast %c16_i32_11 : i32 to vector<8x8x16xi32>
    %25 = arith.muli %23, %24 : vector<8x8x16xi32>
    %c2_i32_12 = arith.constant 2 : i32
    %26 = vector.broadcast %c2_i32_12 : i32 to vector<8x8x16xi32>
    %27 = arith.muli %26, %5 : vector<8x8x16xi32>
    %c1_i32 = arith.constant 1 : i32
    %28 = vector.broadcast %c1_i32 : i32 to vector<8x8x16xi32>
    %29 = arith.addi %27, %28 : vector<8x8x16xi32>
    %30 = arith.addi %25, %29 : vector<8x8x16xi32>
    %31 = arith.cmpi eq, %3, %30 : vector<8x8x16xi32>
    %cst_13 = arith.constant 0.000000e+00 : f32
    %32 = vector.broadcast %cst_13 : f32 to vector<8x8x16xf32>
    %33 = arith.select %31, %1, %32 : vector<8x8x16xi1>, vector<8x8x16xf32>
    %34 = vector.shape_cast %19 : vector<8x8x16xf32> to vector<8x8x1x16xf32>
    %35 = vector.shape_cast %33 : vector<8x8x16xf32> to vector<8x8x1x16xf32>
    %36 = tpu.concatenate %34, %35 in 2 : vector<8x8x1x16xf32>, vector<8x8x1x16xf32> -> vector<8x8x2x16xf32>
    %37 = vector.shape_cast %36 : vector<8x8x2x16xf32> to vector<8x16x16xf32>
    %c2_i32_14 = arith.constant 2 : i32
    %38 = vector.broadcast %c2_i32_14 : i32 to vector<8x8x16xi32>
    %39 = arith.muli %38, %4 : vector<8x8x16xi32>
    %c1_i32_15 = arith.constant 1 : i32
    %40 = vector.broadcast %c1_i32_15 : i32 to vector<8x8x16xi32>
    %41 = arith.addi %39, %40 : vector<8x8x16xi32>
    %c16_i32_16 = arith.constant 16 : i32
    %42 = vector.broadcast %c16_i32_16 : i32 to vector<8x8x16xi32>
    %43 = arith.muli %41, %42 : vector<8x8x16xi32>
    %c2_i32_17 = arith.constant 2 : i32
    %44 = vector.broadcast %c2_i32_17 : i32 to vector<8x8x16xi32>
    %45 = arith.muli %44, %5 : vector<8x8x16xi32>
    %c0_i32_18 = arith.constant 0 : i32
    %46 = vector.broadcast %c0_i32_18 : i32 to vector<8x8x16xi32>
    %47 = arith.addi %45, %46 : vector<8x8x16xi32>
    %48 = arith.addi %43, %47 : vector<8x8x16xi32>
    %49 = arith.cmpi eq, %3, %48 : vector<8x8x16xi32>
    %cst_19 = arith.constant 0.000000e+00 : f32
    %50 = vector.broadcast %cst_19 : f32 to vector<8x8x16xf32>
    %51 = arith.select %49, %1, %50 : vector<8x8x16xi1>, vector<8x8x16xf32>
    %c2_i32_20 = arith.constant 2 : i32
    %52 = vector.broadcast %c2_i32_20 : i32 to vector<8x8x16xi32>
    %53 = arith.muli %52, %4 : vector<8x8x16xi32>
    %c1_i32_21 = arith.constant 1 : i32
    %54 = vector.broadcast %c1_i32_21 : i32 to vector<8x8x16xi32>
    %55 = arith.addi %53, %54 : vector<8x8x16xi32>
    %c16_i32_22 = arith.constant 16 : i32
    %56 = vector.broadcast %c16_i32_22 : i32 to vector<8x8x16xi32>
    %57 = arith.muli %55, %56 : vector<8x8x16xi32>
    %c2_i32_23 = arith.constant 2 : i32
    %58 = vector.broadcast %c2_i32_23 : i32 to vector<8x8x16xi32>
    %59 = arith.muli %58, %5 : vector<8x8x16xi32>
    %c1_i32_24 = arith.constant 1 : i32
    %60 = vector.broadcast %c1_i32_24 : i32 to vector<8x8x16xi32>
    %61 = arith.addi %59, %60 : vector<8x8x16xi32>
    %62 = arith.addi %57, %61 : vector<8x8x16xi32>
    %63 = arith.cmpi eq, %3, %62 : vector<8x8x16xi32>
    %cst_25 = arith.constant 0.000000e+00 : f32
    %64 = vector.broadcast %cst_25 : f32 to vector<8x8x16xf32>
    %65 = arith.select %63, %1, %64 : vector<8x8x16xi1>, vector<8x8x16xf32>
    %66 = vector.shape_cast %51 : vector<8x8x16xf32> to vector<8x8x1x16xf32>
    %67 = vector.shape_cast %65 : vector<8x8x16xf32> to vector<8x8x1x16xf32>
    %68 = tpu.concatenate %66, %67 in 2 : vector<8x8x1x16xf32>, vector<8x8x1x16xf32> -> vector<8x8x2x16xf32>
    %69 = vector.shape_cast %68 : vector<8x8x2x16xf32> to vector<8x16x16xf32>
    %70 = vector.shape_cast %37 : vector<8x16x16xf32> to vector<8x1x16x16xf32>
    %71 = vector.shape_cast %69 : vector<8x16x16xf32> to vector<8x1x16x16xf32>
    %72 = tpu.concatenate %70, %71 in 1 : vector<8x1x16x16xf32>, vector<8x1x16x16xf32> -> vector<8x2x16x16xf32>
    %73 = vector.shape_cast %72 : vector<8x2x16x16xf32> to vector<16x16x16xf32>
    %cst_26 = arith.constant 0.000000e+00 : f32
    %74 = vector.broadcast %cst_26 : f32 to vector<1x18x16xf32>
    %c0_27 = arith.constant 0 : index
    %c0_28 = arith.constant 0 : index
    %c0_29 = arith.constant 0 : index
    %75 = vector.load %arg7[%c0_27, %c0_28, %c0_29] : memref<18x18x16xf32, #tpu.memory_space<vmem>>, vector<1x18x16xf32>
    tpu.vector_store %arg7[%c0_27, %c0_28, %c0_29], %74 {strides = array<i32>} : memref<18x18x16xf32, #tpu.memory_space<vmem>>, vector<1x18x16xf32>,
    %c17 = arith.constant 17 : index
    %c0_30 = arith.constant 0 : index
    %c0_31 = arith.constant 0 : index
    %76 = vector.load %arg7[%c17, %c0_30, %c0_31] : memref<18x18x16xf32, #tpu.memory_space<vmem>>, vector<1x18x16xf32>
    tpu.vector_store %arg7[%c17, %c0_30, %c0_31], %74 {strides = array<i32>} : memref<18x18x16xf32, #tpu.memory_space<vmem>>, vector<1x18x16xf32>,
    %cst_32 = arith.constant 0.000000e+00 : f32
    %77 = vector.broadcast %cst_32 : f32 to vector<18x1x16xf32>
    %c0_33 = arith.constant 0 : index
    %c0_34 = arith.constant 0 : index
    %c0_35 = arith.constant 0 : index
    %78 = vector.load %arg7[%c0_33, %c0_34, %c0_35] : memref<18x18x16xf32, #tpu.memory_space<vmem>>, vector<18x1x16xf32>
    tpu.vector_store %arg7[%c0_33, %c0_34, %c0_35], %77 {strides = array<i32>} : memref<18x18x16xf32, #tpu.memory_space<vmem>>, vector<18x1x16xf32>,
    %c0_36 = arith.constant 0 : index
    %c17_37 = arith.constant 17 : index
    %c0_38 = arith.constant 0 : index
    %79 = vector.load %arg7[%c0_36, %c17_37, %c0_38] : memref<18x18x16xf32, #tpu.memory_space<vmem>>, vector<18x1x16xf32>
    tpu.vector_store %arg7[%c0_36, %c17_37, %c0_38], %77 {strides = array<i32>} : memref<18x18x16xf32, #tpu.memory_space<vmem>>, vector<18x1x16xf32>,
    %c1 = arith.constant 1 : index
    %c1_39 = arith.constant 1 : index
    %c0_40 = arith.constant 0 : index
    %80 = vector.load %arg7[%c1, %c1_39, %c0_40] : memref<18x18x16xf32, #tpu.memory_space<vmem>>, vector<16x16x16xf32>
    tpu.vector_store %arg7[%c1, %c1_39, %c0_40], %73 {strides = array<i32>} : memref<18x18x16xf32, #tpu.memory_space<vmem>>, vector<16x16x16xf32>,
    %c0_41 = arith.constant 0 : index
    %c0_42 = arith.constant 0 : index
    %c0_43 = arith.constant 0 : index
    %81 = vector.load %arg7[%c0_41, %c0_42, %c0_43] : memref<18x18x16xf32, #tpu.memory_space<vmem>>, vector<16x16x16xf32>
    %82 = vector.shape_cast %81 : vector<16x16x16xf32> to vector<256x16xf32>
    %c0_44 = arith.constant 0 : index
    %c1_45 = arith.constant 1 : index
    %c0_46 = arith.constant 0 : index
    %83 = vector.load %arg7[%c0_44, %c1_45, %c0_46] : memref<18x18x16xf32, #tpu.memory_space<vmem>>, vector<16x16x16xf32>
    %84 = vector.shape_cast %83 : vector<16x16x16xf32> to vector<256x16xf32>
    %c0_47 = arith.constant 0 : index
    %c2 = arith.constant 2 : index
    %c0_48 = arith.constant 0 : index
    %85 = vector.load %arg7[%c0_47, %c2, %c0_48] : memref<18x18x16xf32, #tpu.memory_space<vmem>>, vector<16x16x16xf32>
    %86 = vector.shape_cast %85 : vector<16x16x16xf32> to vector<256x16xf32>
    %c1_49 = arith.constant 1 : index
    %c0_50 = arith.constant 0 : index
    %c0_51 = arith.constant 0 : index
    %87 = vector.load %arg7[%c1_49, %c0_50, %c0_51] : memref<18x18x16xf32, #tpu.memory_space<vmem>>, vector<16x16x16xf32>
    %88 = vector.shape_cast %87 : vector<16x16x16xf32> to vector<256x16xf32>
    %c1_52 = arith.constant 1 : index
    %c1_53 = arith.constant 1 : index
    %c0_54 = arith.constant 0 : index
    %89 = vector.load %arg7[%c1_52, %c1_53, %c0_54] : memref<18x18x16xf32, #tpu.memory_space<vmem>>, vector<16x16x16xf32>
    %90 = vector.shape_cast %89 : vector<16x16x16xf32> to vector<256x16xf32>
    %c1_55 = arith.constant 1 : index
    %c2_56 = arith.constant 2 : index
    %c0_57 = arith.constant 0 : index
    %91 = vector.load %arg7[%c1_55, %c2_56, %c0_57] : memref<18x18x16xf32, #tpu.memory_space<vmem>>, vector<16x16x16xf32>
    %92 = vector.shape_cast %91 : vector<16x16x16xf32> to vector<256x16xf32>
    %c2_58 = arith.constant 2 : index
    %c0_59 = arith.constant 0 : index
    %c0_60 = arith.constant 0 : index
    %93 = vector.load %arg7[%c2_58, %c0_59, %c0_60] : memref<18x18x16xf32, #tpu.memory_space<vmem>>, vector<16x16x16xf32>
    %94 = vector.shape_cast %93 : vector<16x16x16xf32> to vector<256x16xf32>
    %c2_61 = arith.constant 2 : index
    %c1_62 = arith.constant 1 : index
    %c0_63 = arith.constant 0 : index
    %95 = vector.load %arg7[%c2_61, %c1_62, %c0_63] : memref<18x18x16xf32, #tpu.memory_space<vmem>>, vector<16x16x16xf32>
    %96 = vector.shape_cast %95 : vector<16x16x16xf32> to vector<256x16xf32>
    %c2_64 = arith.constant 2 : index
    %c2_65 = arith.constant 2 : index
    %c0_66 = arith.constant 0 : index
    %97 = vector.load %arg7[%c2_64, %c2_65, %c0_66] : memref<18x18x16xf32, #tpu.memory_space<vmem>>, vector<16x16x16xf32>
    %98 = vector.shape_cast %97 : vector<16x16x16xf32> to vector<256x16xf32>
    %99 = tpu.concatenate %82, %84, %86, %88, %90, %92, %94, %96, %98 in 1 : vector<256x16xf32>, vector<256x16xf32>, vector<256x16xf32>, vector<256x16xf32>, vector<256x16xf32>, vector<256x16xf32>, vector<256x16xf32>, vector<256x16xf32>, vector<256x16xf32> -> vector<256x144xf32>
    %c0_67 = arith.constant 0 : index
    %c0_68 = arith.constant 0 : index
    %100 = vector.load %arg3[%c0_67, %c0_68] : memref<144x16xf32, #tpu.memory_space<vmem>>, vector<144x16xf32>
    %cst_69 = arith.constant dense<0.000000e+00> : vector<256x16xf32>
    %101 = tpu.matmul %99, %100, %cst_69 {dimension_numbers = #tpu.dot_dimension_numbers<[1], [0], [0], [1], [0, 0, 1, 1], [], []>} : vector<256x144xf32>, vector<144x16xf32>, vector<256x16xf32> -> vector<256x16xf32>
    %c0_70 = arith.constant 0 : index
    %c0_71 = arith.constant 0 : index
    %102 = vector.load %arg4[%c0_70, %c0_71] : memref<1x16xf32, #tpu.memory_space<vmem>>, vector<1x16xf32>
    %103 = vector.broadcast %102 : vector<1x16xf32> to vector<256x16xf32>
    %104 = arith.addf %101, %103 : vector<256x16xf32>
    %105 = vector.shape_cast %104 : vector<256x16xf32> to vector<16x16x16xf32>
    %c0_72 = arith.constant 0 : index
    %c0_73 = arith.constant 0 : index
    %c0_74 = arith.constant 0 : index
    %c0_75 = arith.constant 0 : index
    %106 = vector.load %arg5[%c0_72, %c0_73, %c0_74, %c0_75] : memref<1x16x16x16xf32, #tpu.memory_space<vmem>>, vector<1x16x16x16xf32>
    %107 = vector.shape_cast %106 : vector<1x16x16x16xf32> to vector<16x16x16xf32>
    %108 = vector.shape_cast %105 : vector<16x16x16xf32> to vector<1x16x16x16xf32>
    tpu.vector_store %arg5[%c0_72, %c0_73, %c0_74, %c0_75], %108 {strides = array<i32>} : memref<1x16x16x16xf32, #tpu.memory_space<vmem>>, vector<1x16x16x16xf32>,
    %cst_76 = arith.constant dense<0.000000e+00> : vector<16xf32>
    %109 = vector.multi_reduction <add>, %104, %cst_76 [0] : vector<256x16xf32> to vector<16xf32>
    %110 = arith.mulf %104, %104 : vector<256x16xf32>
    %cst_77 = arith.constant dense<0.000000e+00> : vector<16xf32>
    %111 = vector.multi_reduction <add>, %110, %cst_77 [0] : vector<256x16xf32> to vector<16xf32>
    %112 = vector.shape_cast %109 : vector<16xf32> to vector<1x16xf32>
    %113 = vector.shape_cast %111 : vector<16xf32> to vector<1x16xf32>
    %114 = tpu.concatenate %112, %113 in 0 : vector<1x16xf32>, vector<1x16xf32> -> vector<2x16xf32>
    %c0_78 = arith.constant 0 : index
    %c0_79 = arith.constant 0 : index
    %c0_80 = arith.constant 0 : index
    %115 = vector.load %arg6[%c0_78, %c0_79, %c0_80] : memref<1x2x16xf32, #tpu.memory_space<vmem>>, vector<1x2x16xf32>
    %116 = vector.shape_cast %115 : vector<1x2x16xf32> to vector<2x16xf32>
    %117 = vector.shape_cast %114 : vector<2x16xf32> to vector<1x2x16xf32>
    tpu.vector_store %arg6[%c0_78, %c0_79, %c0_80], %117 {strides = array<i32>} : memref<1x2x16xf32, #tpu.memory_space<vmem>>, vector<1x2x16xf32>,
    return
  }
  func.func @transform_0(%arg0: i32) -> (i32, i32, i32, i32) {
    %c0_i32 = arith.constant 0 : i32
    %c0_i32_0 = arith.constant 0 : i32
    %c0_i32_1 = arith.constant 0 : i32
    %c0_i32_2 = arith.constant 0 : i32
    return %arg0, %c0_i32, %c0_i32_0, %c0_i32_1 : i32, i32, i32, i32
  }
  func.func @transform_1(%arg0: i32) -> (i32, i32, i32, i32) {
    %c0_i32 = arith.constant 0 : i32
    %c0_i32_0 = arith.constant 0 : i32
    %c0_i32_1 = arith.constant 0 : i32
    %c0_i32_2 = arith.constant 0 : i32
    return %arg0, %c0_i32, %c0_i32_0, %c0_i32_1 : i32, i32, i32, i32
  }
  func.func @transform_2(%arg0: i32) -> (i32, i32) {
    %c0_i32 = arith.constant 0 : i32
    %c0_i32_0 = arith.constant 0 : i32
    %c0_i32_1 = arith.constant 0 : i32
    return %c0_i32, %c0_i32_0 : i32, i32
  }
  func.func @transform_3(%arg0: i32) -> (i32, i32) {
    %c0_i32 = arith.constant 0 : i32
    %c0_i32_0 = arith.constant 0 : i32
    %c0_i32_1 = arith.constant 0 : i32
    return %c0_i32, %c0_i32_0 : i32, i32
  }
  func.func @transform_4(%arg0: i32) -> (i32, i32, i32, i32) {
    %c0_i32 = arith.constant 0 : i32
    %c0_i32_0 = arith.constant 0 : i32
    %c0_i32_1 = arith.constant 0 : i32
    %c0_i32_2 = arith.constant 0 : i32
    return %arg0, %c0_i32, %c0_i32_0, %c0_i32_1 : i32, i32, i32, i32
  }
  func.func @transform_5(%arg0: i32) -> (i32, i32, i32) {
    %c0_i32 = arith.constant 0 : i32
    %c0_i32_0 = arith.constant 0 : i32
    %c0_i32_1 = arith.constant 0 : i32
    return %arg0, %c0_i32, %c0_i32_0 : i32, i32, i32
  }
}

</mosaic_0001>

<llo_original>
// kernel: tpu_custom_call.1
$region0: #{tpu_custom_call.1}
  #allocation0 [shape = 'u32[]', space=smem, size = 0x4, offset = 0x4, fixed_abs, tag = 'smem constant byte address 0x4 - core index']
  #allocation1 [shape = 'u32[144,128]{1,0:T(1,128)}', space=vmem, size = 0x12000, scoped, tag = 'internal scratch']
  #allocation2 [shape = 'f32[18,18,16]{2,1,0:T(8,128)}', space=vmem, size = 0x36000, scoped, tag = 'scratch operand']
  %s0 = inlined_call_operand.vmem [shape: f32[2,8,8,16], index: 0, kind: input, shape index: {}]
  %s1 = inlined_call_operand.hbm [shape: s32[2,8,8,16], index: 1, kind: input, shape index: {}]
  %s2 = inlined_call_operand.vmem [shape: f32[144,16], index: 2, kind: input, shape index: {}]
  %s3 = inlined_call_operand.vmem [shape: f32[1,16], index: 3, kind: input, shape index: {}]
  %s4 = inlined_call_operand.hbm [shape: f32[2,16,16,16], index: 4, kind: output, shape index: {0}]
  %s5 = inlined_call_operand.hbm [shape: f32[2,2,16], index: 5, kind: output, shape index: {1}]
  %6 = xla_tuple %s4, %s5
  %s7 = sld [smem:[#allocation0]]
  $region61: #{tpu_custom_call.1} parent=0
    _
  %s9 = ssub.s32 1, %s7
  %s10 = scalar_select 0, %s9, %s7
  $region1: #{tpu_custom_call.1} parent=0
    #allocation3 [shape = 'u8[65536]{0}', space=vmem, size = 0x10000, scoped, tag = 'input window, operand 1']
    #allocation4 [shape = 's32[2]{0}', space=sflag, size = 0x8, scoped, tag = 'scoped memory for tpu_custom_call.1']
    #allocation5 [shape = 's32[2]{0}', space=sflag, size = 0x8, scoped, tag = 'scoped memory for tpu_custom_call.1']
    #allocation6 [shape = 'u8[262144]{0}', space=vmem, size = 0x40000, scoped, tag = 'output window, operand 0']
    #allocation7 [shape = 'u8[2048]{0}', space=vmem, size = 0x800, scoped, tag = 'output window, operand 1']
    #allocation8 [shape = 's32[2]{0}', space=sflag, size = 0x8, scoped, tag = 'scoped memory for tpu_custom_call.1']
    %11 = vsyncpa [#allocation4], 0
    %s12 = scalar_lea.sflag [#allocation4], 1
    %13 = vsyncpa %s12, 0
    %14 = vsyncpa [#allocation5], 0
    %s15 = scalar_lea.sflag [#allocation5], 1
    %16 = vsyncpa %s15, 0
    %17 = vsyncpa [#allocation8], 0
    %s18 = scalar_lea.sflag [#allocation8], 1
    %19 = vsyncpa %s18, 0
    loop: start=0, step=1, limit=4
    $region2: #{tpu_custom_call.1} parent=1 // loop_pre_header
      _
    $region3: #{tpu_custom_call.1} parent=1 // loop_header
      %s21 = sphi 0, %s25
      %p22 = scmp.ge.s32.totalorder %s21, 4
      %s31 = sphi 0, %s33
      %s34 = sphi 0, %s31
      %s35 = sphi 0, %s34
      %s51 = sphi 0, %s35
      %s57 = sphi 0, %s59
      %s60 = sphi 0, %s57
      %s61 = sphi 0, %s60
      %s77 = sphi 0, %s61
      %s81 = sphi 0, %s81
      %s83 = sphi 0, %s81
      %s84 = sphi 0, %s83
      %s98 = sphi 0, %s84
      %s102 = sphi 0, %s102
      %s104 = sphi 0, %s102
      %s105 = sphi 0, %s104
      %s119 = sphi 0, %s105
      %s125 = sphi 0, %s127
      %s128 = sphi 0, %s125
      %s129 = sphi 0, %s128
      %s145 = sphi 0, %s129
      %s151 = sphi 0, %s153
      %s154 = sphi 0, %s151
      %s155 = sphi 0, %s154
      %s171 = sphi 0, %s155
    $region4: #{tpu_custom_call.1} parent=1 // loop_header_branch
      %24 = sbr.rel (%p22) target = $region8
    $region5: #{tpu_custom_call.1} parent=1 // loop_body
      %s26 = ssub.s32 %s21, 1
      %s27 = ssub.s32 %s21, 2
      %s28 = sadd.s32 %s21, 1
      %s29 = ssub.s32 %s21, %s28
      %p30 = scmp.eq.s32.totalorder %s29, 0
      %s32 = sadd.s32 %s31, 1
      %s33 = scalar_select %p30, %s31, %s32
      %p36 = pneg %p30
      %p37 = scmp.eq.s32.totalorder %s21, 1
      %p38 = por %p36, %p37
      %p39 = scmp.ne.s32.totalorder %s31, %s34
      %p40 = scmp.eq.s32.totalorder %s21, 0
      %p41 = por %p39, %p40
      %p42 = scmp.ne.s32.totalorder %s31, %s34
      %p43 = scmp.eq.s32.totalorder %s26, 1
      %p44 = por %p42, %p43
      %p45 = scmp.ne.s32.totalorder %s34, %s35
      %p46 = scmp.eq.s32.totalorder %s26, 0
      %p47 = por %p45, %p46
      %p48 = scmp.ne.s32.totalorder %s34, %s35
      %p49 = scmp.eq.s32.totalorder %s27, 1
      %p50 = por %p48, %p49
      %p52 = scmp.ne.s32.totalorder %s35, %s51
      %p53 = scmp.eq.s32.totalorder %s27, 0
      %p54 = por %p52, %p53
      %s55 = ssub.s32 %s21, %s28
      %p56 = scmp.eq.s32.totalorder %s55, 0
      %s58 = sadd.s32 %s57, 1
      %s59 = scalar_select %p56, %s57, %s58
      %p62 = pneg %p56
      %p63 = scmp.eq.s32.totalorder %s21, 1
      %p64 = por %p62, %p63
      %p65 = scmp.ne.s32.totalorder %s57, %s60
      %p66 = scmp.eq.s32.totalorder %s21, 0
      %p67 = por %p65, %p66
      %p68 = scmp.ne.s32.totalorder %s57, %s60
      %p69 = scmp.eq.s32.totalorder %s26, 1
      %p70 = por %p68, %p69
      %p71 = scmp.ne.s32.totalorder %s60, %s61
      %p72 = scmp.eq.s32.totalorder %s26, 0
      %p73 = por %p71, %p72
      %p74 = scmp.ne.s32.totalorder %s60, %s61
      %p75 = scmp.eq.s32.totalorder %s27, 1
      %p76 = por %p74, %p75
      %p78 = scmp.ne.s32.totalorder %s61, %s77
      %p79 = scmp.eq.s32.totalorder %s27, 0
      %p80 = por %p78, %p79
      %s82 = sadd.s32 %s81, 1
      %p85 = scmp.eq.s32.totalorder %s21, 1
      %p86 = scmp.ne.s32.totalorder %s81, %s83
      %p87 = scmp.eq.s32.totalorder %s21, 0
      %p88 = por %p86, %p87
      %p89 = scmp.ne.s32.totalorder %s81, %s83
      %p90 = scmp.eq.s32.totalorder %s26, 1
      %p91 = por %p89, %p90
      %p92 = scmp.ne.s32.totalorder %s83, %s84
      %p93 = scmp.eq.s32.totalorder %s26, 0
      %p94 = por %p92, %p93
      %p95 = scmp.ne.s32.totalorder %s83, %s84
      %p96 = scmp.eq.s32.totalorder %s27, 1
      %p97 = por %p95, %p96
      %p99 = scmp.ne.s32.totalorder %s84, %s98
      %p100 = scmp.eq.s32.totalorder %s27, 0
      %p101 = por %p99, %p100
      %s103 = sadd.s32 %s102, 1
      %p106 = scmp.eq.s32.totalorder %s21, 1
      %p107 = scmp.ne.s32.totalorder %s102, %s104
      %p108 = scmp.eq.s32.totalorder %s21, 0
      %p109 = por %p107, %p108
      %p110 = scmp.ne.s32.totalorder %s102, %s104
      %p111 = scmp.eq.s32.totalorder %s26, 1
      %p112 = por %p110, %p111
      %p113 = scmp.ne.s32.totalorder %s104, %s105
      %p114 = scmp.eq.s32.totalorder %s26, 0
      %p115 = por %p113, %p114
      %p116 = scmp.ne.s32.totalorder %s104, %s105
      %p117 = scmp.eq.s32.totalorder %s27, 1
      %p118 = por %p116, %p117
      %p120 = scmp.ne.s32.totalorder %s105, %s119
      %p121 = scmp.eq.s32.totalorder %s27, 0
      %p122 = por %p120, %p121
      %s123 = ssub.s32 %s21, %s28
      %p124 = scmp.eq.s32.totalorder %s123, 0
      %s126 = sadd.s32 %s125, 1
      %s127 = scalar_select %p124, %s125, %s126
      %p130 = pneg %p124
      %p131 = scmp.eq.s32.totalorder %s21, 1
      %p132 = por %p130, %p131
      %p133 = scmp.ne.s32.totalorder %s125, %s128
      %p134 = scmp.eq.s32.totalorder %s21, 0
      %p135 = por %p133, %p134
      %p136 = scmp.ne.s32.totalorder %s125, %s128
      %p137 = scmp.eq.s32.totalorder %s26, 1
      %p138 = por %p136, %p137
      %p139 = scmp.ne.s32.totalorder %s128, %s129
      %p140 = scmp.eq.s32.totalorder %s26, 0
      %p141 = por %p139, %p140
      %p142 = scmp.ne.s32.totalorder %s128, %s129
      %p143 = scmp.eq.s32.totalorder %s27, 1
      %p144 = por %p142, %p143
      %p146 = scmp.ne.s32.totalorder %s129, %s145
      %p147 = scmp.eq.s32.totalorder %s27, 0
      %p148 = por %p146, %p147
      %s149 = ssub.s32 %s21, %s28
      %p150 = scmp.eq.s32.totalorder %s149, 0
      %s152 = sadd.s32 %s151, 1
      %s153 = scalar_select %p150, %s151, %s152
      %p156 = pneg %p150
      %p157 = scmp.eq.s32.totalorder %s21, 1
      %p158 = por %p156, %p157
      %p159 = scmp.ne.s32.totalorder %s151, %s154
      %p160 = scmp.eq.s32.totalorder %s21, 0
      %p161 = por %p159, %p160
      %p162 = scmp.ne.s32.totalorder %s151, %s154
      %p163 = scmp.eq.s32.totalorder %s26, 1
      %p164 = por %p162, %p163
      %p165 = scmp.ne.s32.totalorder %s154, %s155
      %p166 = scmp.eq.s32.totalorder %s26, 0
      %p167 = por %p165, %p166
      %p168 = scmp.ne.s32.totalorder %s154, %s155
      %p169 = scmp.eq.s32.totalorder %s27, 1
      %p170 = por %p168, %p169
      %p172 = scmp.ne.s32.totalorder %s155, %s171
      %p173 = scmp.eq.s32.totalorder %s27, 0
      %p174 = por %p172, %p173
      %p175 = scmp.le.s32.totalorder 1, %s21
      %p176 = scmp.lt.s32.totalorder %s21, 3
      %p177 = pnand %p175, %p176
      %p178 = pneg %p177
      // Predicated region
      $region9: #{tpu_custom_call.1} parent=5 // pred_check
        _
      $region10: #{tpu_custom_call.1} parent=5 // pred_check_branch
        %180 = sbr.rel (%p177) target = $region12
      $region11: #{tpu_custom_call.1} parent=5 // pred_region
        %s181 = ssub.s32 %s21, 1
        // Predicated region
        $region13: #{tpu_custom_call.1} parent=11 // pred_check
          %p182 = pneg %p94
        $region14: #{tpu_custom_call.1} parent=11 // pred_check_branch
          %184 = sbr.rel (%p182) target = $region16
        $region15: #{tpu_custom_call.1} parent=11 // pred_region
          _
        $region16: #{tpu_custom_call.1} parent=11 // pred_fallthru
          _
        // Predicated region
        $region17: #{tpu_custom_call.1} parent=11 // pred_check
          %p185 = pneg %p115
        $region18: #{tpu_custom_call.1} parent=11 // pred_check_branch
          %187 = sbr.rel (%p185) target = $region20
        $region19: #{tpu_custom_call.1} parent=11 // pred_region
          _
        $region20: #{tpu_custom_call.1} parent=11 // pred_fallthru
          _
      $region12: #{tpu_custom_call.1} parent=5 // pred_fallthru
        _
      %p188 = scmp.lt.s32.totalorder %s21, 2
      // Predicated region
      $region21: #{tpu_custom_call.1} parent=5 // pred_check
        %p189 = pneg %p188
      $region22: #{tpu_custom_call.1} parent=5 // pred_check_branch
        %191 = sbr.rel (%p189) target = $region24
      $region23: #{tpu_custom_call.1} parent=5 // pred_region
        // Predicated region
        $region25: #{tpu_custom_call.1} parent=23 // pred_check
          %p192 = pneg %p41
        $region26: #{tpu_custom_call.1} parent=23 // pred_check_branch
          %194 = sbr.rel (%p192) target = $region28
        $region27: #{tpu_custom_call.1} parent=23 // pred_region
          %p195 = scmp.lt.s32.totalorder %s21, 1
          %s196 = scalar_select %p195, %s21, 1
          %s197 = smul.addr %s196, 8
          %s198 = smul.addr %s197, 8
          %s199 = scalar_lea.vmem %s0, %s198
        $region28: #{tpu_custom_call.1} parent=23 // pred_fallthru
          _
        // Predicated region
        $region29: #{tpu_custom_call.1} parent=23 // pred_check
          %p200 = pneg %p67
        $region30: #{tpu_custom_call.1} parent=23 // pred_check_branch
          %202 = sbr.rel (%p200) target = $region32
        $region31: #{tpu_custom_call.1} parent=23 // pred_region
          %s203 = sand.u32 %s57, 1
          %s204 = scalar_lea.sflag [#allocation4], %s203
          %s205 = sand.u32 %s57, 1
          %s206 = smul.addr %s205, 64
          %s207 = scalar_lea.vmem [#allocation3], %s206
          %s209 = ssub.s32 1024, 1024
          %210 = vsyncadd %s204, %s209
          %s211 = smul.addr %s21, 8
          %s212 = smul.addr %s211, 128
          %s213 = scalar_lea.hbm %s1, %s212
          %s214 = sshll.u32 %s207, 4
          %s215 = int_to_ptr.vmem [resolvable:$true] %s214
          %220 = dma.hbm_to_vmem [thread:$0]  %s213, 1024, %s215, %s204, 128, 128, 8
        $region32: #{tpu_custom_call.1} parent=23 // pred_fallthru
          _
      $region24: #{tpu_custom_call.1} parent=5 // pred_fallthru
        _
      %p221 = scmp.le.s32.totalorder 1, %s21
      %p222 = scmp.lt.s32.totalorder %s21, 3
      %p223 = pnand %p221, %p222
      %p224 = pneg %p223
      // Predicated region
      $region33: #{tpu_custom_call.1} parent=5 // pred_check
        _
      $region34: #{tpu_custom_call.1} parent=5 // pred_check_branch
        %226 = sbr.rel (%p223) target = $region36
      $region35: #{tpu_custom_call.1} parent=5 // pred_region
        %s227 = ssub.s32 %s21, 1
        %s228 = sand.u32 %s60, 1
        %s229 = scalar_lea.sflag [#allocation4], %s228
        %s230 = sand.u32 %s60, 1
        %s231 = smul.addr %s230, 64
        %s232 = scalar_lea.vmem [#allocation3], %s231
        // Predicated region
        $region37: #{tpu_custom_call.1} parent=35 // pred_check
          %p233 = pneg %p73
        $region38: #{tpu_custom_call.1} parent=35 // pred_check_branch
          %235 = sbr.rel (%p233) target = $region40
        $region39: #{tpu_custom_call.1} parent=35 // pred_region
          %236 = dma.done %s229, 1024
        $region40: #{tpu_custom_call.1} parent=35 // pred_fallthru
          _
        %p237 = scmp.lt.s32.totalorder %s26, 1
        %s238 = scalar_select %p237, %s26, 1
        %s239 = smul.addr %s238, 8
        %s240 = smul.addr %s239, 8
        %s241 = scalar_lea.vmem %s0, %s240
        %p242 = pneg %p47
        %p243 = pneg %p44
        %s244 = sand.u32 %s60, 1
        %s245 = scalar_lea.sflag [#allocation4], %s244
        %s246 = sand.u32 %s60, 1
        %s247 = smul.addr %s246, 64
        %s248 = scalar_lea.vmem [#allocation3], %s247
        %p249 = pneg %p73
        %p250 = pneg %p70
        %p251 = pneg %p94
        %p252 = pneg %p91
        %p253 = pneg %p115
        %p254 = pneg %p112
        %p255 = pneg %p141
        %p256 = pneg %p138
        %s257 = sand.u32 %s128, 1
        %s258 = scalar_lea.sflag [#allocation5], %s257
        %s259 = sand.u32 %s128, 1
        %s260 = smul.addr %s259, 256
        %s261 = scalar_lea.vmem [#allocation6], %s260
        %p262 = pneg %p167
        %p263 = pneg %p164
        %s264 = sand.u32 %s154, 1
        %s265 = scalar_lea.sflag [#allocation8], %s264
        %s266 = sand.u32 %s154, 1
        %s267 = smul.addr %s266, 2
        %s268 = scalar_lea.vmem [#allocation7], %s267
        %p269 = scmp.lt.s32.totalorder %s26, 1
        %s270 = scalar_select %p269, %s26, 1
        %s271 = smul.addr %s270, 8
        %s272 = smul.addr %s271, 8
        %s273 = scalar_lea.vmem %s0, %s272
        %v274 = vld [vmem:[%s273] sm:$0xff]
        %v275 = vld [vmem:[%s273 + $0x8] sm:$0xff]
        %v276 = vld [vmem:[%s273 + $0x10] sm:$0xff]
        %v277 = vld [vmem:[%s273 + $0x18] sm:$0xff]
        %v278 = vld [vmem:[%s273 + $0x20] sm:$0xff]
        %v279 = vld [vmem:[%s273 + $0x28] sm:$0xff]
        %v280 = vld [vmem:[%s273 + $0x30] sm:$0xff]
        %v281 = vld [vmem:[%s273 + $0x38] sm:$0xff]
        %v282 = vld [vmem:[%s232] sm:$0xff]
        %v283 = vld [vmem:[%s232 + $0x8] sm:$0xff]
        %v284 = vld [vmem:[%s232 + $0x10] sm:$0xff]
        %v285 = vld [vmem:[%s232 + $0x18] sm:$0xff]
        %v286 = vld [vmem:[%s232 + $0x20] sm:$0xff]
        %v287 = vld [vmem:[%s232 + $0x28] sm:$0xff]
        %v288 = vld [vmem:[%s232 + $0x30] sm:$0xff]
        %v289 = vld [vmem:[%s232 + $0x38] sm:$0xff]
        %v290 = vlaneseq
        %v291 = vshrl.u32 %v290, 7
        %v292 = vmul.u32 %v291, 2
        %v293 = vadd.s32 %v292, 32
        %v294 = vadd.s32 %v292, 64
        %v295 = vadd.s32 %v292, 96
        %v296 = vadd.s32 %v292, 128
        %v297 = vadd.s32 %v292, 160
        %v298 = vadd.s32 %v292, 192
        %v299 = vadd.s32 %v292, 224
        %vm300 = vcmp.eq.s32.totalorder %v282, %v292
        %vm301 = vcmp.eq.s32.totalorder %v283, %v293
        %vm302 = vcmp.eq.s32.totalorder %v284, %v294
        %vm303 = vcmp.eq.s32.totalorder %v285, %v295
        %vm304 = vcmp.eq.s32.totalorder %v286, %v296
        %vm305 = vcmp.eq.s32.totalorder %v287, %v297
        %vm306 = vcmp.eq.s32.totalorder %v288, %v298
        %vm307 = vcmp.eq.s32.totalorder %v289, %v299
        %v308 = vsel %vm300, %v274, 0.0
        %v309 = vsel %vm301, %v275, 0.0
        %v310 = vsel %vm302, %v276, 0.0
        %v311 = vsel %vm303, %v277, 0.0
        %v312 = vsel %vm304, %v278, 0.0
        %v313 = vsel %vm305, %v279, 0.0
        %v314 = vsel %vm306, %v280, 0.0
        %v315 = vsel %vm307, %v281, 0.0
        %v316 = vadd.s32 %v292, 1
        %v317 = vadd.s32 %v316, 32
        %v318 = vadd.s32 %v316, 64
        %v319 = vadd.s32 %v316, 96
        %v320 = vadd.s32 %v316, 128
        %v321 = vadd.s32 %v316, 160
        %v322 = vadd.s32 %v316, 192
        %v323 = vadd.s32 %v316, 224
        %vm324 = vcmp.eq.s32.totalorder %v282, %v316
        %vm325 = vcmp.eq.s32.totalorder %v283, %v317
        %vm326 = vcmp.eq.s32.totalorder %v284, %v318
        %vm327 = vcmp.eq.s32.totalorder %v285, %v319
        %vm328 = vcmp.eq.s32.totalorder %v286, %v320
        %vm329 = vcmp.eq.s32.totalorder %v287, %v321
        %vm330 = vcmp.eq.s32.totalorder %v288, %v322
        %vm331 = vcmp.eq.s32.totalorder %v289, %v323
        %v332 = vsel %vm324, %v274, 0.0
        %v333 = vsel %vm325, %v275, 0.0
        %v334 = vsel %vm326, %v276, 0.0
        %v335 = vsel %vm327, %v277, 0.0
        %v336 = vsel %vm328, %v278, 0.0
        %v337 = vsel %vm329, %v279, 0.0
        %v338 = vsel %vm330, %v280, 0.0
        %v339 = vsel %vm331, %v281, 0.0
        %v348 = vcombine.high %v308, %v308
        %v350 = vunpack.c.l.s4 1966171168
        %v351 = vunpack.c.0.s8 %v350
        %v352 = vlaneseq
        %v353 = vshrl.u32 %v352, 7
        %v354 = vsub.s32 %v351, %v353
        %v355 = vrot.slane %v308, %v354
        %v357 = vunpack.c.l.s4 1966171168
        %v358 = vunpack.c.0.s8 %v357
        %v359 = vlaneseq
        %v360 = vshrl.u32 %v359, 7
        %v361 = vsub.s32 %v358, %v360
        %v362 = vrot.slane %v348, %v361
        %v363 = vcombine.high %v355, %v355
        %v364 = vcombine.high %v362, %v362
        %v366 = vunpack.c.l.s4 1966171168
        %v367 = vunpack.c.0.s8 %v366
        %v368 = vlaneseq
        %v369 = vshrl.u32 %v368, 7
        %v370 = vsub.s32 %v367, %v369
        %v371 = vrot.slane %v355, %v370
        %v373 = vunpack.c.l.s4 1966171168
        %v374 = vunpack.c.0.s8 %v373
        %v375 = vlaneseq
        %v376 = vshrl.u32 %v375, 7
        %v377 = vsub.s32 %v374, %v376
        %v378 = vrot.slane %v362, %v377
        %v380 = vunpack.c.l.s4 1966171168
        %v381 = vunpack.c.0.s8 %v380
        %v382 = vlaneseq
        %v383 = vshrl.u32 %v382, 7
        %v384 = vsub.s32 %v381, %v383
        %v385 = vrot.slane %v363, %v384
        %v387 = vunpack.c.l.s4 1966171168
        %v388 = vunpack.c.0.s8 %v387
        %v389 = vlaneseq
        %v390 = vshrl.u32 %v389, 7
        %v391 = vsub.s32 %v388, %v390
        %v392 = vrot.slane %v364, %v391
        %v393 = vcombine.high %v371, %v371
        %v394 = vcombine.high %v378, %v378
        %v395 = vcombine.high %v385, %v385
        %v396 = vcombine.high %v392, %v392
        %v397 = vcombine.high %v309, %v309
        %v399 = vunpack.c.l.s4 1966171168
        %v400 = vunpack.c.0.s8 %v399
        %v401 = vlaneseq
        %v402 = vshrl.u32 %v401, 7
        %v403 = vsub.s32 %v400, %v402
        %v404 = vrot.slane %v309, %v403
        %v406 = vunpack.c.l.s4 1966171168
        %v407 = vunpack.c.0.s8 %v406
        %v408 = vlaneseq
        %v409 = vshrl.u32 %v408, 7
        %v410 = vsub.s32 %v407, %v409
        %v411 = vrot.slane %v397, %v410
        %v412 = vcombine.high %v404, %v404
        %v413 = vcombine.high %v411, %v411
        %v415 = vunpack.c.l.s4 1966171168
        %v416 = vunpack.c.0.s8 %v415
        %v417 = vlaneseq
        %v418 = vshrl.u32 %v417, 7
        %v419 = vsub.s32 %v416, %v418
        %v420 = vrot.slane %v404, %v419
        %v422 = vunpack.c.l.s4 1966171168
        %v423 = vunpack.c.0.s8 %v422
        %v424 = vlaneseq
        %v425 = vshrl.u32 %v424, 7
        %v426 = vsub.s32 %v423, %v425
        %v427 = vrot.slane %v411, %v426
        %v429 = vunpack.c.l.s4 1966171168
        %v430 = vunpack.c.0.s8 %v429
        %v431 = vlaneseq
        %v432 = vshrl.u32 %v431, 7
        %v433 = vsub.s32 %v430, %v432
        %v434 = vrot.slane %v412, %v433
        %v436 = vunpack.c.l.s4 1966171168
        %v437 = vunpack.c.0.s8 %v436
        %v438 = vlaneseq
        %v439 = vshrl.u32 %v438, 7
        %v440 = vsub.s32 %v437, %v439
        %v441 = vrot.slane %v413, %v440
        %v442 = vcombine.high %v420, %v420
        %v443 = vcombine.high %v427, %v427
        %v444 = vcombine.high %v434, %v434
        %v445 = vcombine.high %v441, %v441
        %v446 = vcombine.high %v310, %v310
        %v448 = vunpack.c.l.s4 1966171168
        %v449 = vunpack.c.0.s8 %v448
        %v450 = vlaneseq
        %v451 = vshrl.u32 %v450, 7
        %v452 = vsub.s32 %v449, %v451
        %v453 = vrot.slane %v310, %v452
        %v455 = vunpack.c.l.s4 1966171168
        %v456 = vunpack.c.0.s8 %v455
        %v457 = vlaneseq
        %v458 = vshrl.u32 %v457, 7
        %v459 = vsub.s32 %v456, %v458
        %v460 = vrot.slane %v446, %v459
        %v461 = vcombine.high %v453, %v453
        %v462 = vcombine.high %v460, %v460
        %v464 = vunpack.c.l.s4 1966171168
        %v465 = vunpack.c.0.s8 %v464
        %v466 = vlaneseq
        %v467 = vshrl.u32 %v466, 7
        %v468 = vsub.s32 %v465, %v467
        %v469 = vrot.slane %v453, %v468
        %v471 = vunpack.c.l.s4 1966171168
        %v472 = vunpack.c.0.s8 %v471
        %v473 = vlaneseq
        %v474 = vshrl.u32 %v473, 7
        %v475 = vsub.s32 %v472, %v474
        %v476 = vrot.slane %v460, %v475
        %v478 = vunpack.c.l.s4 1966171168
        %v479 = vunpack.c.0.s8 %v478
        %v480 = vlaneseq
        %v481 = vshrl.u32 %v480, 7
        %v482 = vsub.s32 %v479, %v481
        %v483 = vrot.slane %v461, %v482
        %v485 = vunpack.c.l.s4 1966171168
        %v486 = vunpack.c.0.s8 %v485
        %v487 = vlaneseq
        %v488 = vshrl.u32 %v487, 7
        %v489 = vsub.s32 %v486, %v488
        %v490 = vrot.slane %v462, %v489
        %v491 = vcombine.high %v469, %v469
        %v492 = vcombine.high %v476, %v476
        %v493 = vcombine.high %v483, %v483
        %v494 = vcombine.high %v490, %v490
        %v495 = vcombine.high %v311, %v311
        %v497 = vunpack.c.l.s4 1966171168
        %v498 = vunpack.c.0.s8 %v497
        %v499 = vlaneseq
        %v500 = vshrl.u32 %v499, 7
        %v501 = vsub.s32 %v498, %v500
        %v502 = vrot.slane %v311, %v501
        %v504 = vunpack.c.l.s4 1966171168
        %v505 = vunpack.c.0.s8 %v504
        %v506 = vlaneseq
        %v507 = vshrl.u32 %v506, 7
        %v508 = vsub.s32 %v505, %v507
        %v509 = vrot.slane %v495, %v508
        %v510 = vcombine.high %v502, %v502
        %v511 = vcombine.high %v509, %v509
        %v513 = vunpack.c.l.s4 1966171168
        %v514 = vunpack.c.0.s8 %v513
        %v515 = vlaneseq
        %v516 = vshrl.u32 %v515, 7
        %v517 = vsub.s32 %v514, %v516
        %v518 = vrot.slane %v502, %v517
        %v520 = vunpack.c.l.s4 1966171168
        %v521 = vunpack.c.0.s8 %v520
        %v522 = vlaneseq
        %v523 = vshrl.u32 %v522, 7
        %v524 = vsub.s32 %v521, %v523
        %v525 = vrot.slane %v509, %v524
        %v527 = vunpack.c.l.s4 1966171168
        %v528 = vunpack.c.0.s8 %v527
        %v529 = vlaneseq
        %v530 = vshrl.u32 %v529, 7
        %v531 = vsub.s32 %v528, %v530
        %v532 = vrot.slane %v510, %v531
        %v534 = vunpack.c.l.s4 1966171168
        %v535 = vunpack.c.0.s8 %v534
        %v536 = vlaneseq
        %v537 = vshrl.u32 %v536, 7
        %v538 = vsub.s32 %v535, %v537
        %v539 = vrot.slane %v511, %v538
        %v540 = vcombine.high %v518, %v518
        %v541 = vcombine.high %v525, %v525
        %v542 = vcombine.high %v532, %v532
        %v543 = vcombine.high %v539, %v539
        %v544 = vcombine.high %v312, %v312
        %v546 = vunpack.c.l.s4 1966171168
        %v547 = vunpack.c.0.s8 %v546
        %v548 = vlaneseq
        %v549 = vshrl.u32 %v548, 7
        %v550 = vsub.s32 %v547, %v549
        %v551 = vrot.slane %v312, %v550
        %v553 = vunpack.c.l.s4 1966171168
        %v554 = vunpack.c.0.s8 %v553
        %v555 = vlaneseq
        %v556 = vshrl.u32 %v555, 7
        %v557 = vsub.s32 %v554, %v556
        %v558 = vrot.slane %v544, %v557
        %v559 = vcombine.high %v551, %v551
        %v560 = vcombine.high %v558, %v558
        %v562 = vunpack.c.l.s4 1966171168
        %v563 = vunpack.c.0.s8 %v562
        %v564 = vlaneseq
        %v565 = vshrl.u32 %v564, 7
        %v566 = vsub.s32 %v563, %v565
        %v567 = vrot.slane %v551, %v566
        %v569 = vunpack.c.l.s4 1966171168
        %v570 = vunpack.c.0.s8 %v569
        %v571 = vlaneseq
        %v572 = vshrl.u32 %v571, 7
        %v573 = vsub.s32 %v570, %v572
        %v574 = vrot.slane %v558, %v573
        %v576 = vunpack.c.l.s4 1966171168
        %v577 = vunpack.c.0.s8 %v576
        %v578 = vlaneseq
        %v579 = vshrl.u32 %v578, 7
        %v580 = vsub.s32 %v577, %v579
        %v581 = vrot.slane %v559, %v580
        %v583 = vunpack.c.l.s4 1966171168
        %v584 = vunpack.c.0.s8 %v583
        %v585 = vlaneseq
        %v586 = vshrl.u32 %v585, 7
        %v587 = vsub.s32 %v584, %v586
        %v588 = vrot.slane %v560, %v587
        %v589 = vcombine.high %v567, %v567
        %v590 = vcombine.high %v574, %v574
        %v591 = vcombine.high %v581, %v581
        %v592 = vcombine.high %v588, %v588
        %v593 = vcombine.high %v313, %v313
        %v595 = vunpack.c.l.s4 1966171168
        %v596 = vunpack.c.0.s8 %v595
        %v597 = vlaneseq
        %v598 = vshrl.u32 %v597, 7
        %v599 = vsub.s32 %v596, %v598
        %v600 = vrot.slane %v313, %v599
        %v602 = vunpack.c.l.s4 1966171168
        %v603 = vunpack.c.0.s8 %v602
        %v604 = vlaneseq
        %v605 = vshrl.u32 %v604, 7
        %v606 = vsub.s32 %v603, %v605
        %v607 = vrot.slane %v593, %v606
        %v608 = vcombine.high %v600, %v600
        %v609 = vcombine.high %v607, %v607
        %v611 = vunpack.c.l.s4 1966171168
        %v612 = vunpack.c.0.s8 %v611
        %v613 = vlaneseq
        %v614 = vshrl.u32 %v613, 7
        %v615 = vsub.s32 %v612, %v614
        %v616 = vrot.slane %v600, %v615
        %v618 = vunpack.c.l.s4 1966171168
        %v619 = vunpack.c.0.s8 %v618
        %v620 = vlaneseq
        %v621 = vshrl.u32 %v620, 7
        %v622 = vsub.s32 %v619, %v621
        %v623 = vrot.slane %v607, %v622
        %v625 = vunpack.c.l.s4 1966171168
        %v626 = vunpack.c.0.s8 %v625
        %v627 = vlaneseq
        %v628 = vshrl.u32 %v627, 7
        %v629 = vsub.s32 %v626, %v628
        %v630 = vrot.slane %v608, %v629
        %v632 = vunpack.c.l.s4 1966171168
        %v633 = vunpack.c.0.s8 %v632
        %v634 = vlaneseq
        %v635 = vshrl.u32 %v634, 7
        %v636 = vsub.s32 %v633, %v635
        %v637 = vrot.slane %v609, %v636
        %v638 = vcombine.high %v616, %v616
        %v639 = vcombine.high %v623, %v623
        %v640 = vcombine.high %v630, %v630
        %v641 = vcombine.high %v637, %v637
        %v642 = vcombine.high %v314, %v314
        %v644 = vunpack.c.l.s4 1966171168
        %v645 = vunpack.c.0.s8 %v644
        %v646 = vlaneseq
        %v647 = vshrl.u32 %v646, 7
        %v648 = vsub.s32 %v645, %v647
        %v649 = vrot.slane %v314, %v648
        %v651 = vunpack.c.l.s4 1966171168
        %v652 = vunpack.c.0.s8 %v651
        %v653 = vlaneseq
        %v654 = vshrl.u32 %v653, 7
        %v655 = vsub.s32 %v652, %v654
        %v656 = vrot.slane %v642, %v655
        %v657 = vcombine.high %v649, %v649
        %v658 = vcombine.high %v656, %v656
        %v660 = vunpack.c.l.s4 1966171168
        %v661 = vunpack.c.0.s8 %v660
        %v662 = vlaneseq
        %v663 = vshrl.u32 %v662, 7
        %v664 = vsub.s32 %v661, %v663
        %v665 = vrot.slane %v649, %v664
        %v667 = vunpack.c.l.s4 1966171168
        %v668 = vunpack.c.0.s8 %v667
        %v669 = vlaneseq
        %v670 = vshrl.u32 %v669, 7
        %v671 = vsub.s32 %v668, %v670
        %v672 = vrot.slane %v656, %v671
        %v674 = vunpack.c.l.s4 1966171168
        %v675 = vunpack.c.0.s8 %v674
        %v676 = vlaneseq
        %v677 = vshrl.u32 %v676, 7
        %v678 = vsub.s32 %v675, %v677
        %v679 = vrot.slane %v657, %v678
        %v681 = vunpack.c.l.s4 1966171168
        %v682 = vunpack.c.0.s8 %v681
        %v683 = vlaneseq
        %v684 = vshrl.u32 %v683, 7
        %v685 = vsub.s32 %v682, %v684
        %v686 = vrot.slane %v658, %v685
        %v687 = vcombine.high %v665, %v665
        %v688 = vcombine.high %v672, %v672
        %v689 = vcombine.high %v679, %v679
        %v690 = vcombine.high %v686, %v686
        %v691 = vcombine.high %v315, %v315
        %v693 = vunpack.c.l.s4 1966171168
        %v694 = vunpack.c.0.s8 %v693
        %v695 = vlaneseq
        %v696 = vshrl.u32 %v695, 7
        %v697 = vsub.s32 %v694, %v696
        %v698 = vrot.slane %v315, %v697
        %v700 = vunpack.c.l.s4 1966171168
        %v701 = vunpack.c.0.s8 %v700
        %v702 = vlaneseq
        %v703 = vshrl.u32 %v702, 7
        %v704 = vsub.s32 %v701, %v703
        %v705 = vrot.slane %v691, %v704
        %v706 = vcombine.high %v698, %v698
        %v707 = vcombine.high %v705, %v705
        %v709 = vunpack.c.l.s4 1966171168
        %v710 = vunpack.c.0.s8 %v709
        %v711 = vlaneseq
        %v712 = vshrl.u32 %v711, 7
        %v713 = vsub.s32 %v710, %v712
        %v714 = vrot.slane %v698, %v713
        %v716 = vunpack.c.l.s4 1966171168
        %v717 = vunpack.c.0.s8 %v716
        %v718 = vlaneseq
        %v719 = vshrl.u32 %v718, 7
        %v720 = vsub.s32 %v717, %v719
        %v721 = vrot.slane %v705, %v720
        %v723 = vunpack.c.l.s4 1966171168
        %v724 = vunpack.c.0.s8 %v723
        %v725 = vlaneseq
        %v726 = vshrl.u32 %v725, 7
        %v727 = vsub.s32 %v724, %v726
        %v728 = vrot.slane %v706, %v727
        %v730 = vunpack.c.l.s4 1966171168
        %v731 = vunpack.c.0.s8 %v730
        %v732 = vlaneseq
        %v733 = vshrl.u32 %v732, 7
        %v734 = vsub.s32 %v731, %v733
        %v735 = vrot.slane %v707, %v734
        %v736 = vcombine.high %v714, %v714
        %v737 = vcombine.high %v721, %v721
        %v738 = vcombine.high %v728, %v728
        %v739 = vcombine.high %v735, %v735
        %v812 = vcombine.high %v332, %v332
        %v814 = vunpack.c.l.s4 1966171168
        %v815 = vunpack.c.0.s8 %v814
        %v816 = vlaneseq
        %v817 = vshrl.u32 %v816, 7
        %v818 = vsub.s32 %v815, %v817
        %v819 = vrot.slane %v332, %v818
        %v821 = vunpack.c.l.s4 1966171168
        %v822 = vunpack.c.0.s8 %v821
        %v823 = vlaneseq
        %v824 = vshrl.u32 %v823, 7
        %v825 = vsub.s32 %v822, %v824
        %v826 = vrot.slane %v812, %v825
        %v827 = vcombine.high %v819, %v819
        %v828 = vcombine.high %v826, %v826
        %v830 = vunpack.c.l.s4 1966171168
        %v831 = vunpack.c.0.s8 %v830
        %v832 = vlaneseq
        %v833 = vshrl.u32 %v832, 7
        %v834 = vsub.s32 %v831, %v833
        %v835 = vrot.slane %v819, %v834
        %v837 = vunpack.c.l.s4 1966171168
        %v838 = vunpack.c.0.s8 %v837
        %v839 = vlaneseq
        %v840 = vshrl.u32 %v839, 7
        %v841 = vsub.s32 %v838, %v840
        %v842 = vrot.slane %v826, %v841
        %v844 = vunpack.c.l.s4 1966171168
        %v845 = vunpack.c.0.s8 %v844
        %v846 = vlaneseq
        %v847 = vshrl.u32 %v846, 7
        %v848 = vsub.s32 %v845, %v847
        %v849 = vrot.slane %v827, %v848
        %v851 = vunpack.c.l.s4 1966171168
        %v852 = vunpack.c.0.s8 %v851
        %v853 = vlaneseq
        %v854 = vshrl.u32 %v853, 7
        %v855 = vsub.s32 %v852, %v854
        %v856 = vrot.slane %v828, %v855
        %v857 = vcombine.high %v835, %v835
        %v858 = vcombine.high %v842, %v842
        %v859 = vcombine.high %v849, %v849
        %v860 = vcombine.high %v856, %v856
        %v861 = vcombine.high %v333, %v333
        %v863 = vunpack.c.l.s4 1966171168
        %v864 = vunpack.c.0.s8 %v863
        %v865 = vlaneseq
        %v866 = vshrl.u32 %v865, 7
        %v867 = vsub.s32 %v864, %v866
        %v868 = vrot.slane %v333, %v867
        %v870 = vunpack.c.l.s4 1966171168
        %v871 = vunpack.c.0.s8 %v870
        %v872 = vlaneseq
        %v873 = vshrl.u32 %v872, 7
        %v874 = vsub.s32 %v871, %v873
        %v875 = vrot.slane %v861, %v874
        %v876 = vcombine.high %v868, %v868
        %v877 = vcombine.high %v875, %v875
        %v879 = vunpack.c.l.s4 1966171168
        %v880 = vunpack.c.0.s8 %v879
        %v881 = vlaneseq
        %v882 = vshrl.u32 %v881, 7
        %v883 = vsub.s32 %v880, %v882
        %v884 = vrot.slane %v868, %v883
        %v886 = vunpack.c.l.s4 1966171168
        %v887 = vunpack.c.0.s8 %v886
        %v888 = vlaneseq
        %v889 = vshrl.u32 %v888, 7
        %v890 = vsub.s32 %v887, %v889
        %v891 = vrot.slane %v875, %v890
        %v893 = vunpack.c.l.s4 1966171168
        %v894 = vunpack.c.0.s8 %v893
        %v895 = vlaneseq
        %v896 = vshrl.u32 %v895, 7
        %v897 = vsub.s32 %v894, %v896
        %v898 = vrot.slane %v876, %v897
        %v900 = vunpack.c.l.s4 1966171168
        %v901 = vunpack.c.0.s8 %v900
        %v902 = vlaneseq
        %v903 = vshrl.u32 %v902, 7
        %v904 = vsub.s32 %v901, %v903
        %v905 = vrot.slane %v877, %v904
        %v906 = vcombine.high %v884, %v884
        %v907 = vcombine.high %v891, %v891
        %v908 = vcombine.high %v898, %v898
        %v909 = vcombine.high %v905, %v905
        %v910 = vcombine.high %v334, %v334
        %v912 = vunpack.c.l.s4 1966171168
        %v913 = vunpack.c.0.s8 %v912
        %v914 = vlaneseq
        %v915 = vshrl.u32 %v914, 7
        %v916 = vsub.s32 %v913, %v915
        %v917 = vrot.slane %v334, %v916
        %v919 = vunpack.c.l.s4 1966171168
        %v920 = vunpack.c.0.s8 %v919
        %v921 = vlaneseq
        %v922 = vshrl.u32 %v921, 7
        %v923 = vsub.s32 %v920, %v922
        %v924 = vrot.slane %v910, %v923
        %v925 = vcombine.high %v917, %v917
        %v926 = vcombine.high %v924, %v924
        %v928 = vunpack.c.l.s4 1966171168
        %v929 = vunpack.c.0.s8 %v928
        %v930 = vlaneseq
        %v931 = vshrl.u32 %v930, 7
        %v932 = vsub.s32 %v929, %v931
        %v933 = vrot.slane %v917, %v932
        %v935 = vunpack.c.l.s4 1966171168
        %v936 = vunpack.c.0.s8 %v935
        %v937 = vlaneseq
        %v938 = vshrl.u32 %v937, 7
        %v939 = vsub.s32 %v936, %v938
        %v940 = vrot.slane %v924, %v939
        %v942 = vunpack.c.l.s4 1966171168
        %v943 = vunpack.c.0.s8 %v942
        %v944 = vlaneseq
        %v945 = vshrl.u32 %v944, 7
        %v946 = vsub.s32 %v943, %v945
        %v947 = vrot.slane %v925, %v946
        %v949 = vunpack.c.l.s4 1966171168
        %v950 = vunpack.c.0.s8 %v949
        %v951 = vlaneseq
        %v952 = vshrl.u32 %v951, 7
        %v953 = vsub.s32 %v950, %v952
        %v954 = vrot.slane %v926, %v953
        %v955 = vcombine.high %v933, %v933
        %v956 = vcombine.high %v940, %v940
        %v957 = vcombine.high %v947, %v947
        %v958 = vcombine.high %v954, %v954
        %v959 = vcombine.high %v335, %v335
        %v961 = vunpack.c.l.s4 1966171168
        %v962 = vunpack.c.0.s8 %v961
        %v963 = vlaneseq
        %v964 = vshrl.u32 %v963, 7
        %v965 = vsub.s32 %v962, %v964
        %v966 = vrot.slane %v335, %v965
        %v968 = vunpack.c.l.s4 1966171168
        %v969 = vunpack.c.0.s8 %v968
        %v970 = vlaneseq
        %v971 = vshrl.u32 %v970, 7
        %v972 = vsub.s32 %v969, %v971
        %v973 = vrot.slane %v959, %v972
        %v974 = vcombine.high %v966, %v966
        %v975 = vcombine.high %v973, %v973
        %v977 = vunpack.c.l.s4 1966171168
        %v978 = vunpack.c.0.s8 %v977
        %v979 = vlaneseq
        %v980 = vshrl.u32 %v979, 7
        %v981 = vsub.s32 %v978, %v980
        %v982 = vrot.slane %v966, %v981
        %v984 = vunpack.c.l.s4 1966171168
        %v985 = vunpack.c.0.s8 %v984
        %v986 = vlaneseq
        %v987 = vshrl.u32 %v986, 7
        %v988 = vsub.s32 %v985, %v987
        %v989 = vrot.slane %v973, %v988
        %v991 = vunpack.c.l.s4 1966171168
        %v992 = vunpack.c.0.s8 %v991
        %v993 = vlaneseq
        %v994 = vshrl.u32 %v993, 7
        %v995 = vsub.s32 %v992, %v994
        %v996 = vrot.slane %v974, %v995
        %v998 = vunpack.c.l.s4 1966171168
        %v999 = vunpack.c.0.s8 %v998
        %v1000 = vlaneseq
        %v1001 = vshrl.u32 %v1000, 7
        %v1002 = vsub.s32 %v999, %v1001
        %v1003 = vrot.slane %v975, %v1002
        %v1004 = vcombine.high %v982, %v982
        %v1005 = vcombine.high %v989, %v989
        %v1006 = vcombine.high %v996, %v996
        %v1007 = vcombine.high %v1003, %v1003
        %v1008 = vcombine.high %v336, %v336
        %v1010 = vunpack.c.l.s4 1966171168
        %v1011 = vunpack.c.0.s8 %v1010
        %v1012 = vlaneseq
        %v1013 = vshrl.u32 %v1012, 7
        %v1014 = vsub.s32 %v1011, %v1013
        %v1015 = vrot.slane %v336, %v1014
        %v1017 = vunpack.c.l.s4 1966171168
        %v1018 = vunpack.c.0.s8 %v1017
        %v1019 = vlaneseq
        %v1020 = vshrl.u32 %v1019, 7
        %v1021 = vsub.s32 %v1018, %v1020
        %v1022 = vrot.slane %v1008, %v1021
        %v1023 = vcombine.high %v1015, %v1015
        %v1024 = vcombine.high %v1022, %v1022
        %v1026 = vunpack.c.l.s4 1966171168
        %v1027 = vunpack.c.0.s8 %v1026
        %v1028 = vlaneseq
        %v1029 = vshrl.u32 %v1028, 7
        %v1030 = vsub.s32 %v1027, %v1029
        %v1031 = vrot.slane %v1015, %v1030
        %v1033 = vunpack.c.l.s4 1966171168
        %v1034 = vunpack.c.0.s8 %v1033
        %v1035 = vlaneseq
        %v1036 = vshrl.u32 %v1035, 7
        %v1037 = vsub.s32 %v1034, %v1036
        %v1038 = vrot.slane %v1022, %v1037
        %v1040 = vunpack.c.l.s4 1966171168
        %v1041 = vunpack.c.0.s8 %v1040
        %v1042 = vlaneseq
        %v1043 = vshrl.u32 %v1042, 7
        %v1044 = vsub.s32 %v1041, %v1043
        %v1045 = vrot.slane %v1023, %v1044
        %v1047 = vunpack.c.l.s4 1966171168
        %v1048 = vunpack.c.0.s8 %v1047
        %v1049 = vlaneseq
        %v1050 = vshrl.u32 %v1049, 7
        %v1051 = vsub.s32 %v1048, %v1050
        %v1052 = vrot.slane %v1024, %v1051
        %v1053 = vcombine.high %v1031, %v1031
        %v1054 = vcombine.high %v1038, %v1038
        %v1055 = vcombine.high %v1045, %v1045
        %v1056 = vcombine.high %v1052, %v1052
        %v1057 = vcombine.high %v337, %v337
        %v1059 = vunpack.c.l.s4 1966171168
        %v1060 = vunpack.c.0.s8 %v1059
        %v1061 = vlaneseq
        %v1062 = vshrl.u32 %v1061, 7
        %v1063 = vsub.s32 %v1060, %v1062
        %v1064 = vrot.slane %v337, %v1063
        %v1066 = vunpack.c.l.s4 1966171168
        %v1067 = vunpack.c.0.s8 %v1066
        %v1068 = vlaneseq
        %v1069 = vshrl.u32 %v1068, 7
        %v1070 = vsub.s32 %v1067, %v1069
        %v1071 = vrot.slane %v1057, %v1070
        %v1072 = vcombine.high %v1064, %v1064
        %v1073 = vcombine.high %v1071, %v1071
        %v1075 = vunpack.c.l.s4 1966171168
        %v1076 = vunpack.c.0.s8 %v1075
        %v1077 = vlaneseq
        %v1078 = vshrl.u32 %v1077, 7
        %v1079 = vsub.s32 %v1076, %v1078
        %v1080 = vrot.slane %v1064, %v1079
        %v1082 = vunpack.c.l.s4 1966171168
        %v1083 = vunpack.c.0.s8 %v1082
        %v1084 = vlaneseq
        %v1085 = vshrl.u32 %v1084, 7
        %v1086 = vsub.s32 %v1083, %v1085
        %v1087 = vrot.slane %v1071, %v1086
        %v1089 = vunpack.c.l.s4 1966171168
        %v1090 = vunpack.c.0.s8 %v1089
        %v1091 = vlaneseq
        %v1092 = vshrl.u32 %v1091, 7
        %v1093 = vsub.s32 %v1090, %v1092
        %v1094 = vrot.slane %v1072, %v1093
        %v1096 = vunpack.c.l.s4 1966171168
        %v1097 = vunpack.c.0.s8 %v1096
        %v1098 = vlaneseq
        %v1099 = vshrl.u32 %v1098, 7
        %v1100 = vsub.s32 %v1097, %v1099
        %v1101 = vrot.slane %v1073, %v1100
        %v1102 = vcombine.high %v1080, %v1080
        %v1103 = vcombine.high %v1087, %v1087
        %v1104 = vcombine.high %v1094, %v1094
        %v1105 = vcombine.high %v1101, %v1101
        %v1106 = vcombine.high %v338, %v338
        %v1108 = vunpack.c.l.s4 1966171168
        %v1109 = vunpack.c.0.s8 %v1108
        %v1110 = vlaneseq
        %v1111 = vshrl.u32 %v1110, 7
        %v1112 = vsub.s32 %v1109, %v1111
        %v1113 = vrot.slane %v338, %v1112
        %v1115 = vunpack.c.l.s4 1966171168
        %v1116 = vunpack.c.0.s8 %v1115
        %v1117 = vlaneseq
        %v1118 = vshrl.u32 %v1117, 7
        %v1119 = vsub.s32 %v1116, %v1118
        %v1120 = vrot.slane %v1106, %v1119
        %v1121 = vcombine.high %v1113, %v1113
        %v1122 = vcombine.high %v1120, %v1120
        %v1124 = vunpack.c.l.s4 1966171168
        %v1125 = vunpack.c.0.s8 %v1124
        %v1126 = vlaneseq
        %v1127 = vshrl.u32 %v1126, 7
        %v1128 = vsub.s32 %v1125, %v1127
        %v1129 = vrot.slane %v1113, %v1128
        %v1131 = vunpack.c.l.s4 1966171168
        %v1132 = vunpack.c.0.s8 %v1131
        %v1133 = vlaneseq
        %v1134 = vshrl.u32 %v1133, 7
        %v1135 = vsub.s32 %v1132, %v1134
        %v1136 = vrot.slane %v1120, %v1135
        %v1138 = vunpack.c.l.s4 1966171168
        %v1139 = vunpack.c.0.s8 %v1138
        %v1140 = vlaneseq
        %v1141 = vshrl.u32 %v1140, 7
        %v1142 = vsub.s32 %v1139, %v1141
        %v1143 = vrot.slane %v1121, %v1142
        %v1145 = vunpack.c.l.s4 1966171168
        %v1146 = vunpack.c.0.s8 %v1145
        %v1147 = vlaneseq
        %v1148 = vshrl.u32 %v1147, 7
        %v1149 = vsub.s32 %v1146, %v1148
        %v1150 = vrot.slane %v1122, %v1149
        %v1151 = vcombine.high %v1129, %v1129
        %v1152 = vcombine.high %v1136, %v1136
        %v1153 = vcombine.high %v1143, %v1143
        %v1154 = vcombine.high %v1150, %v1150
        %v1155 = vcombine.high %v339, %v339
        %v1157 = vunpack.c.l.s4 1966171168
        %v1158 = vunpack.c.0.s8 %v1157
        %v1159 = vlaneseq
        %v1160 = vshrl.u32 %v1159, 7
        %v1161 = vsub.s32 %v1158, %v1160
        %v1162 = vrot.slane %v339, %v1161
        %v1164 = vunpack.c.l.s4 1966171168
        %v1165 = vunpack.c.0.s8 %v1164
        %v1166 = vlaneseq
        %v1167 = vshrl.u32 %v1166, 7
        %v1168 = vsub.s32 %v1165, %v1167
        %v1169 = vrot.slane %v1155, %v1168
        %v1170 = vcombine.high %v1162, %v1162
        %v1171 = vcombine.high %v1169, %v1169
        %v1173 = vunpack.c.l.s4 1966171168
        %v1174 = vunpack.c.0.s8 %v1173
        %v1175 = vlaneseq
        %v1176 = vshrl.u32 %v1175, 7
        %v1177 = vsub.s32 %v1174, %v1176
        %v1178 = vrot.slane %v1162, %v1177
        %v1180 = vunpack.c.l.s4 1966171168
        %v1181 = vunpack.c.0.s8 %v1180
        %v1182 = vlaneseq
        %v1183 = vshrl.u32 %v1182, 7
        %v1184 = vsub.s32 %v1181, %v1183
        %v1185 = vrot.slane %v1169, %v1184
        %v1187 = vunpack.c.l.s4 1966171168
        %v1188 = vunpack.c.0.s8 %v1187
        %v1189 = vlaneseq
        %v1190 = vshrl.u32 %v1189, 7
        %v1191 = vsub.s32 %v1188, %v1190
        %v1192 = vrot.slane %v1170, %v1191
        %v1194 = vunpack.c.l.s4 1966171168
        %v1195 = vunpack.c.0.s8 %v1194
        %v1196 = vlaneseq
        %v1197 = vshrl.u32 %v1196, 7
        %v1198 = vsub.s32 %v1195, %v1197
        %v1199 = vrot.slane %v1171, %v1198
        %v1200 = vcombine.high %v1178, %v1178
        %v1201 = vcombine.high %v1185, %v1185
        %v1202 = vcombine.high %v1192, %v1192
        %v1203 = vcombine.high %v1199, %v1199
        %v1204 = vlaneseq
        %v1205 = vshrl.u32 %v1204, 7
        %v1206 = vsub.s32 0, %v1205
        %v1207 = vrot.slane %v835, %v1206
        %v1208 = vlaneseq
        %v1209 = vshrl.u32 %v1208, 7
        %v1210 = vsub.s32 0, %v1209
        %v1211 = vrot.slane %v849, %v1210
        %v1212 = vlaneseq
        %v1213 = vshrl.u32 %v1212, 7
        %v1214 = vsub.s32 0, %v1213
        %v1215 = vrot.slane %v857, %v1214
        %v1216 = vlaneseq
        %v1217 = vshrl.u32 %v1216, 7
        %v1218 = vsub.s32 0, %v1217
        %v1219 = vrot.slane %v859, %v1218
        %v1220 = vlaneseq
        %v1221 = vshrl.u32 %v1220, 7
        %v1222 = vsub.s32 0, %v1221
        %v1223 = vrot.slane %v842, %v1222
        %v1224 = vlaneseq
        %v1225 = vshrl.u32 %v1224, 7
        %v1226 = vsub.s32 0, %v1225
        %v1227 = vrot.slane %v856, %v1226
        %v1228 = vlaneseq
        %v1229 = vshrl.u32 %v1228, 7
        %v1230 = vsub.s32 0, %v1229
        %v1231 = vrot.slane %v858, %v1230
        %v1232 = vlaneseq
        %v1233 = vshrl.u32 %v1232, 7
        %v1234 = vsub.s32 0, %v1233
        %v1235 = vrot.slane %v860, %v1234
        %v1236 = vlaneseq
        %v1237 = vshrl.u32 %v1236, 7
        %v1238 = vsub.s32 0, %v1237
        %v1239 = vrot.slane %v884, %v1238
        %v1240 = vlaneseq
        %v1241 = vshrl.u32 %v1240, 7
        %v1242 = vsub.s32 0, %v1241
        %v1243 = vrot.slane %v898, %v1242
        %v1244 = vlaneseq
        %v1245 = vshrl.u32 %v1244, 7
        %v1246 = vsub.s32 0, %v1245
        %v1247 = vrot.slane %v906, %v1246
        %v1248 = vlaneseq
        %v1249 = vshrl.u32 %v1248, 7
        %v1250 = vsub.s32 0, %v1249
        %v1251 = vrot.slane %v908, %v1250
        %v1252 = vlaneseq
        %v1253 = vshrl.u32 %v1252, 7
        %v1254 = vsub.s32 0, %v1253
        %v1255 = vrot.slane %v891, %v1254
        %v1256 = vlaneseq
        %v1257 = vshrl.u32 %v1256, 7
        %v1258 = vsub.s32 0, %v1257
        %v1259 = vrot.slane %v905, %v1258
        %v1260 = vlaneseq
        %v1261 = vshrl.u32 %v1260, 7
        %v1262 = vsub.s32 0, %v1261
        %v1263 = vrot.slane %v907, %v1262
        %v1264 = vlaneseq
        %v1265 = vshrl.u32 %v1264, 7
        %v1266 = vsub.s32 0, %v1265
        %v1267 = vrot.slane %v909, %v1266
        %v1268 = vlaneseq
        %v1269 = vshrl.u32 %v1268, 7
        %v1270 = vsub.s32 0, %v1269
        %v1271 = vrot.slane %v933, %v1270
        %v1272 = vlaneseq
        %v1273 = vshrl.u32 %v1272, 7
        %v1274 = vsub.s32 0, %v1273
        %v1275 = vrot.slane %v947, %v1274
        %v1276 = vlaneseq
        %v1277 = vshrl.u32 %v1276, 7
        %v1278 = vsub.s32 0, %v1277
        %v1279 = vrot.slane %v955, %v1278
        %v1280 = vlaneseq
        %v1281 = vshrl.u32 %v1280, 7
        %v1282 = vsub.s32 0, %v1281
        %v1283 = vrot.slane %v957, %v1282
        %v1284 = vlaneseq
        %v1285 = vshrl.u32 %v1284, 7
        %v1286 = vsub.s32 0, %v1285
        %v1287 = vrot.slane %v940, %v1286
        %v1288 = vlaneseq
        %v1289 = vshrl.u32 %v1288, 7
        %v1290 = vsub.s32 0, %v1289
        %v1291 = vrot.slane %v954, %v1290
        %v1292 = vlaneseq
        %v1293 = vshrl.u32 %v1292, 7
        %v1294 = vsub.s32 0, %v1293
        %v1295 = vrot.slane %v956, %v1294
        %v1296 = vlaneseq
        %v1297 = vshrl.u32 %v1296, 7
        %v1298 = vsub.s32 0, %v1297
        %v1299 = vrot.slane %v958, %v1298
        %v1300 = vlaneseq
        %v1301 = vshrl.u32 %v1300, 7
        %v1302 = vsub.s32 0, %v1301
        %v1303 = vrot.slane %v982, %v1302
        %v1304 = vlaneseq
        %v1305 = vshrl.u32 %v1304, 7
        %v1306 = vsub.s32 0, %v1305
        %v1307 = vrot.slane %v996, %v1306
        %v1308 = vlaneseq
        %v1309 = vshrl.u32 %v1308, 7
        %v1310 = vsub.s32 0, %v1309
        %v1311 = vrot.slane %v1004, %v1310
        %v1312 = vlaneseq
        %v1313 = vshrl.u32 %v1312, 7
        %v1314 = vsub.s32 0, %v1313
        %v1315 = vrot.slane %v1006, %v1314
        %v1316 = vlaneseq
        %v1317 = vshrl.u32 %v1316, 7
        %v1318 = vsub.s32 0, %v1317
        %v1319 = vrot.slane %v989, %v1318
        %v1320 = vlaneseq
        %v1321 = vshrl.u32 %v1320, 7
        %v1322 = vsub.s32 0, %v1321
        %v1323 = vrot.slane %v1003, %v1322
        %v1324 = vlaneseq
        %v1325 = vshrl.u32 %v1324, 7
        %v1326 = vsub.s32 0, %v1325
        %v1327 = vrot.slane %v1005, %v1326
        %v1328 = vlaneseq
        %v1329 = vshrl.u32 %v1328, 7
        %v1330 = vsub.s32 0, %v1329
        %v1331 = vrot.slane %v1007, %v1330
        %v1332 = vlaneseq
        %v1333 = vshrl.u32 %v1332, 7
        %v1334 = vsub.s32 0, %v1333
        %v1335 = vrot.slane %v1031, %v1334
        %v1336 = vlaneseq
        %v1337 = vshrl.u32 %v1336, 7
        %v1338 = vsub.s32 0, %v1337
        %v1339 = vrot.slane %v1045, %v1338
        %v1340 = vlaneseq
        %v1341 = vshrl.u32 %v1340, 7
        %v1342 = vsub.s32 0, %v1341
        %v1343 = vrot.slane %v1053, %v1342
        %v1344 = vlaneseq
        %v1345 = vshrl.u32 %v1344, 7
        %v1346 = vsub.s32 0, %v1345
        %v1347 = vrot.slane %v1055, %v1346
        %v1348 = vlaneseq
        %v1349 = vshrl.u32 %v1348, 7
        %v1350 = vsub.s32 0, %v1349
        %v1351 = vrot.slane %v1038, %v1350
        %v1352 = vlaneseq
        %v1353 = vshrl.u32 %v1352, 7
        %v1354 = vsub.s32 0, %v1353
        %v1355 = vrot.slane %v1052, %v1354
        %v1356 = vlaneseq
        %v1357 = vshrl.u32 %v1356, 7
        %v1358 = vsub.s32 0, %v1357
        %v1359 = vrot.slane %v1054, %v1358
        %v1360 = vlaneseq
        %v1361 = vshrl.u32 %v1360, 7
        %v1362 = vsub.s32 0, %v1361
        %v1363 = vrot.slane %v1056, %v1362
        %v1364 = vlaneseq
        %v1365 = vshrl.u32 %v1364, 7
        %v1366 = vsub.s32 0, %v1365
        %v1367 = vrot.slane %v1080, %v1366
        %v1368 = vlaneseq
        %v1369 = vshrl.u32 %v1368, 7
        %v1370 = vsub.s32 0, %v1369
        %v1371 = vrot.slane %v1094, %v1370
        %v1372 = vlaneseq
        %v1373 = vshrl.u32 %v1372, 7
        %v1374 = vsub.s32 0, %v1373
        %v1375 = vrot.slane %v1102, %v1374
        %v1376 = vlaneseq
        %v1377 = vshrl.u32 %v1376, 7
        %v1378 = vsub.s32 0, %v1377
        %v1379 = vrot.slane %v1104, %v1378
        %v1380 = vlaneseq
        %v1381 = vshrl.u32 %v1380, 7
        %v1382 = vsub.s32 0, %v1381
        %v1383 = vrot.slane %v1087, %v1382
        %v1384 = vlaneseq
        %v1385 = vshrl.u32 %v1384, 7
        %v1386 = vsub.s32 0, %v1385
        %v1387 = vrot.slane %v1101, %v1386
        %v1388 = vlaneseq
        %v1389 = vshrl.u32 %v1388, 7
        %v1390 = vsub.s32 0, %v1389
        %v1391 = vrot.slane %v1103, %v1390
        %v1392 = vlaneseq
        %v1393 = vshrl.u32 %v1392, 7
        %v1394 = vsub.s32 0, %v1393
        %v1395 = vrot.slane %v1105, %v1394
        %v1396 = vlaneseq
        %v1397 = vshrl.u32 %v1396, 7
        %v1398 = vsub.s32 0, %v1397
        %v1399 = vrot.slane %v1129, %v1398
        %v1400 = vlaneseq
        %v1401 = vshrl.u32 %v1400, 7
        %v1402 = vsub.s32 0, %v1401
        %v1403 = vrot.slane %v1143, %v1402
        %v1404 = vlaneseq
        %v1405 = vshrl.u32 %v1404, 7
        %v1406 = vsub.s32 0, %v1405
        %v1407 = vrot.slane %v1151, %v1406
        %v1408 = vlaneseq
        %v1409 = vshrl.u32 %v1408, 7
        %v1410 = vsub.s32 0, %v1409
        %v1411 = vrot.slane %v1153, %v1410
        %v1412 = vlaneseq
        %v1413 = vshrl.u32 %v1412, 7
        %v1414 = vsub.s32 0, %v1413
        %v1415 = vrot.slane %v1136, %v1414
        %v1416 = vlaneseq
        %v1417 = vshrl.u32 %v1416, 7
        %v1418 = vsub.s32 0, %v1417
        %v1419 = vrot.slane %v1150, %v1418
        %v1420 = vlaneseq
        %v1421 = vshrl.u32 %v1420, 7
        %v1422 = vsub.s32 0, %v1421
        %v1423 = vrot.slane %v1152, %v1422
        %v1424 = vlaneseq
        %v1425 = vshrl.u32 %v1424, 7
        %v1426 = vsub.s32 0, %v1425
        %v1427 = vrot.slane %v1154, %v1426
        %v1428 = vlaneseq
        %v1429 = vshrl.u32 %v1428, 7
        %v1430 = vsub.s32 0, %v1429
        %v1431 = vrot.slane %v1178, %v1430
        %v1432 = vlaneseq
        %v1433 = vshrl.u32 %v1432, 7
        %v1434 = vsub.s32 0, %v1433
        %v1435 = vrot.slane %v1192, %v1434
        %v1436 = vlaneseq
        %v1437 = vshrl.u32 %v1436, 7
        %v1438 = vsub.s32 0, %v1437
        %v1439 = vrot.slane %v1200, %v1438
        %v1440 = vlaneseq
        %v1441 = vshrl.u32 %v1440, 7
        %v1442 = vsub.s32 0, %v1441
        %v1443 = vrot.slane %v1202, %v1442
        %v1444 = vlaneseq
        %v1445 = vshrl.u32 %v1444, 7
        %v1446 = vsub.s32 0, %v1445
        %v1447 = vrot.slane %v1185, %v1446
        %v1448 = vlaneseq
        %v1449 = vshrl.u32 %v1448, 7
        %v1450 = vsub.s32 0, %v1449
        %v1451 = vrot.slane %v1199, %v1450
        %v1452 = vlaneseq
        %v1453 = vshrl.u32 %v1452, 7
        %v1454 = vsub.s32 0, %v1453
        %v1455 = vrot.slane %v1201, %v1454
        %v1456 = vlaneseq
        %v1457 = vshrl.u32 %v1456, 7
        %v1458 = vsub.s32 0, %v1457
        %v1459 = vrot.slane %v1203, %v1458
        %vm1524 = vcmask 1040384
        %v1525 = vsel %vm1524, %v371, %v1207
        %v1526 = vsel %vm1524, %v385, %v1211
        %v1527 = vsel %vm1524, %v393, %v1215
        %v1528 = vsel %vm1524, %v395, %v1219
        %v1529 = vsel %vm1524, %v378, %v1223
        %v1530 = vsel %vm1524, %v392, %v1227
        %v1531 = vsel %vm1524, %v394, %v1231
        %v1532 = vsel %vm1524, %v396, %v1235
        %v1533 = vsel %vm1524, %v420, %v1239
        %v1534 = vsel %vm1524, %v434, %v1243
        %v1535 = vsel %vm1524, %v442, %v1247
        %v1536 = vsel %vm1524, %v444, %v1251
        %v1537 = vsel %vm1524, %v427, %v1255
        %v1538 = vsel %vm1524, %v441, %v1259
        %v1539 = vsel %vm1524, %v443, %v1263
        %v1540 = vsel %vm1524, %v445, %v1267
        %v1541 = vsel %vm1524, %v469, %v1271
        %v1542 = vsel %vm1524, %v483, %v1275
        %v1543 = vsel %vm1524, %v491, %v1279
        %v1544 = vsel %vm1524, %v493, %v1283
        %v1545 = vsel %vm1524, %v476, %v1287
        %v1546 = vsel %vm1524, %v490, %v1291
        %v1547 = vsel %vm1524, %v492, %v1295
        %v1548 = vsel %vm1524, %v494, %v1299
        %v1549 = vsel %vm1524, %v518, %v1303
        %v1550 = vsel %vm1524, %v532, %v1307
        %v1551 = vsel %vm1524, %v540, %v1311
        %v1552 = vsel %vm1524, %v542, %v1315
        %v1553 = vsel %vm1524, %v525, %v1319
        %v1554 = vsel %vm1524, %v539, %v1323
        %v1555 = vsel %vm1524, %v541, %v1327
        %v1556 = vsel %vm1524, %v543, %v1331
        %v1557 = vsel %vm1524, %v567, %v1335
        %v1558 = vsel %vm1524, %v581, %v1339
        %v1559 = vsel %vm1524, %v589, %v1343
        %v1560 = vsel %vm1524, %v591, %v1347
        %v1561 = vsel %vm1524, %v574, %v1351
        %v1562 = vsel %vm1524, %v588, %v1355
        %v1563 = vsel %vm1524, %v590, %v1359
        %v1564 = vsel %vm1524, %v592, %v1363
        %v1565 = vsel %vm1524, %v616, %v1367
        %v1566 = vsel %vm1524, %v630, %v1371
        %v1567 = vsel %vm1524, %v638, %v1375
        %v1568 = vsel %vm1524, %v640, %v1379
        %v1569 = vsel %vm1524, %v623, %v1383
        %v1570 = vsel %vm1524, %v637, %v1387
        %v1571 = vsel %vm1524, %v639, %v1391
        %v1572 = vsel %vm1524, %v641, %v1395
        %v1573 = vsel %vm1524, %v665, %v1399
        %v1574 = vsel %vm1524, %v679, %v1403
        %v1575 = vsel %vm1524, %v687, %v1407
        %v1576 = vsel %vm1524, %v689, %v1411
        %v1577 = vsel %vm1524, %v672, %v1415
        %v1578 = vsel %vm1524, %v686, %v1419
        %v1579 = vsel %vm1524, %v688, %v1423
        %v1580 = vsel %vm1524, %v690, %v1427
        %v1581 = vsel %vm1524, %v714, %v1431
        %v1582 = vsel %vm1524, %v728, %v1435
        %v1583 = vsel %vm1524, %v736, %v1439
        %v1584 = vsel %vm1524, %v738, %v1443
        %v1585 = vsel %vm1524, %v721, %v1447
        %v1586 = vsel %vm1524, %v735, %v1451
        %v1587 = vsel %vm1524, %v737, %v1455
        %v1588 = vsel %vm1524, %v739, %v1459
        %v1589 = vadd.s32 %v292, 16
        %v1590 = vadd.s32 %v292, 48
        %v1591 = vadd.s32 %v292, 80
        %v1592 = vadd.s32 %v292, 112
        %v1593 = vadd.s32 %v292, 144
        %v1594 = vadd.s32 %v292, 176
        %v1595 = vadd.s32 %v292, 208
        %v1596 = vadd.s32 %v292, 240
        %vm1597 = vcmp.eq.s32.totalorder %v282, %v1589
        %vm1598 = vcmp.eq.s32.totalorder %v283, %v1590
        %vm1599 = vcmp.eq.s32.totalorder %v284, %v1591
        %vm1600 = vcmp.eq.s32.totalorder %v285, %v1592
        %vm1601 = vcmp.eq.s32.totalorder %v286, %v1593
        %vm1602 = vcmp.eq.s32.totalorder %v287, %v1594
        %vm1603 = vcmp.eq.s32.totalorder %v288, %v1595
        %vm1604 = vcmp.eq.s32.totalorder %v289, %v1596
        %v1605 = vsel %vm1597, %v274, 0.0
        %v1606 = vsel %vm1598, %v275, 0.0
        %v1607 = vsel %vm1599, %v276, 0.0
        %v1608 = vsel %vm1600, %v277, 0.0
        %v1609 = vsel %vm1601, %v278, 0.0
        %v1610 = vsel %vm1602, %v279, 0.0
        %v1611 = vsel %vm1603, %v280, 0.0
        %v1612 = vsel %vm1604, %v281, 0.0
        %v1613 = vadd.s32 %v316, 16
        %v1614 = vadd.s32 %v316, 48
        %v1615 = vadd.s32 %v316, 80
        %v1616 = vadd.s32 %v316, 112
        %v1617 = vadd.s32 %v316, 144
        %v1618 = vadd.s32 %v316, 176
        %v1619 = vadd.s32 %v316, 208
        %v1620 = vadd.s32 %v316, 240
        %vm1621 = vcmp.eq.s32.totalorder %v282, %v1613
        %vm1622 = vcmp.eq.s32.totalorder %v283, %v1614
        %vm1623 = vcmp.eq.s32.totalorder %v284, %v1615
        %vm1624 = vcmp.eq.s32.totalorder %v285, %v1616
        %vm1625 = vcmp.eq.s32.totalorder %v286, %v1617
        %vm1626 = vcmp.eq.s32.totalorder %v287, %v1618
        %vm1627 = vcmp.eq.s32.totalorder %v288, %v1619
        %vm1628 = vcmp.eq.s32.totalorder %v289, %v1620
        %v1629 = vsel %vm1621, %v274, 0.0
        %v1630 = vsel %vm1622, %v275, 0.0
        %v1631 = vsel %vm1623, %v276, 0.0
        %v1632 = vsel %vm1624, %v277, 0.0
        %v1633 = vsel %vm1625, %v278, 0.0
        %v1634 = vsel %vm1626, %v279, 0.0
        %v1635 = vsel %vm1627, %v280, 0.0
        %v1636 = vsel %vm1628, %v281, 0.0
        %v1645 = vcombine.high %v1605, %v1605
        %v1647 = vunpack.c.l.s4 1966171168
        %v1648 = vunpack.c.0.s8 %v1647
        %v1649 = vlaneseq
        %v1650 = vshrl.u32 %v1649, 7
        %v1651 = vsub.s32 %v1648, %v1650
        %v1652 = vrot.slane %v1605, %v1651
        %v1654 = vunpack.c.l.s4 1966171168
        %v1655 = vunpack.c.0.s8 %v1654
        %v1656 = vlaneseq
        %v1657 = vshrl.u32 %v1656, 7
        %v1658 = vsub.s32 %v1655, %v1657
        %v1659 = vrot.slane %v1645, %v1658
        %v1660 = vcombine.high %v1652, %v1652
        %v1661 = vcombine.high %v1659, %v1659
        %v1663 = vunpack.c.l.s4 1966171168
        %v1664 = vunpack.c.0.s8 %v1663
        %v1665 = vlaneseq
        %v1666 = vshrl.u32 %v1665, 7
        %v1667 = vsub.s32 %v1664, %v1666
        %v1668 = vrot.slane %v1652, %v1667
        %v1670 = vunpack.c.l.s4 1966171168
        %v1671 = vunpack.c.0.s8 %v1670
        %v1672 = vlaneseq
        %v1673 = vshrl.u32 %v1672, 7
        %v1674 = vsub.s32 %v1671, %v1673
        %v1675 = vrot.slane %v1659, %v1674
        %v1677 = vunpack.c.l.s4 1966171168
        %v1678 = vunpack.c.0.s8 %v1677
        %v1679 = vlaneseq
        %v1680 = vshrl.u32 %v1679, 7
        %v1681 = vsub.s32 %v1678, %v1680
        %v1682 = vrot.slane %v1660, %v1681
        %v1684 = vunpack.c.l.s4 1966171168
        %v1685 = vunpack.c.0.s8 %v1684
        %v1686 = vlaneseq
        %v1687 = vshrl.u32 %v1686, 7
        %v1688 = vsub.s32 %v1685, %v1687
        %v1689 = vrot.slane %v1661, %v1688
        %v1690 = vcombine.high %v1668, %v1668
        %v1691 = vcombine.high %v1675, %v1675
        %v1692 = vcombine.high %v1682, %v1682
        %v1693 = vcombine.high %v1689, %v1689
        %v1694 = vcombine.high %v1606, %v1606
        %v1696 = vunpack.c.l.s4 1966171168
        %v1697 = vunpack.c.0.s8 %v1696
        %v1698 = vlaneseq
        %v1699 = vshrl.u32 %v1698, 7
        %v1700 = vsub.s32 %v1697, %v1699
        %v1701 = vrot.slane %v1606, %v1700
        %v1703 = vunpack.c.l.s4 1966171168
        %v1704 = vunpack.c.0.s8 %v1703
        %v1705 = vlaneseq
        %v1706 = vshrl.u32 %v1705, 7
        %v1707 = vsub.s32 %v1704, %v1706
        %v1708 = vrot.slane %v1694, %v1707
        %v1709 = vcombine.high %v1701, %v1701
        %v1710 = vcombine.high %v1708, %v1708
        %v1712 = vunpack.c.l.s4 1966171168
        %v1713 = vunpack.c.0.s8 %v1712
        %v1714 = vlaneseq
        %v1715 = vshrl.u32 %v1714, 7
        %v1716 = vsub.s32 %v1713, %v1715
        %v1717 = vrot.slane %v1701, %v1716
        %v1719 = vunpack.c.l.s4 1966171168
        %v1720 = vunpack.c.0.s8 %v1719
        %v1721 = vlaneseq
        %v1722 = vshrl.u32 %v1721, 7
        %v1723 = vsub.s32 %v1720, %v1722
        %v1724 = vrot.slane %v1708, %v1723
        %v1726 = vunpack.c.l.s4 1966171168
        %v1727 = vunpack.c.0.s8 %v1726
        %v1728 = vlaneseq
        %v1729 = vshrl.u32 %v1728, 7
        %v1730 = vsub.s32 %v1727, %v1729
        %v1731 = vrot.slane %v1709, %v1730
        %v1733 = vunpack.c.l.s4 1966171168
        %v1734 = vunpack.c.0.s8 %v1733
        %v1735 = vlaneseq
        %v1736 = vshrl.u32 %v1735, 7
        %v1737 = vsub.s32 %v1734, %v1736
        %v1738 = vrot.slane %v1710, %v1737
        %v1739 = vcombine.high %v1717, %v1717
        %v1740 = vcombine.high %v1724, %v1724
        %v1741 = vcombine.high %v1731, %v1731
        %v1742 = vcombine.high %v1738, %v1738
        %v1743 = vcombine.high %v1607, %v1607
        %v1745 = vunpack.c.l.s4 1966171168
        %v1746 = vunpack.c.0.s8 %v1745
        %v1747 = vlaneseq
        %v1748 = vshrl.u32 %v1747, 7
        %v1749 = vsub.s32 %v1746, %v1748
        %v1750 = vrot.slane %v1607, %v1749
        %v1752 = vunpack.c.l.s4 1966171168
        %v1753 = vunpack.c.0.s8 %v1752
        %v1754 = vlaneseq
        %v1755 = vshrl.u32 %v1754, 7
        %v1756 = vsub.s32 %v1753, %v1755
        %v1757 = vrot.slane %v1743, %v1756
        %v1758 = vcombine.high %v1750, %v1750
        %v1759 = vcombine.high %v1757, %v1757
        %v1761 = vunpack.c.l.s4 1966171168
        %v1762 = vunpack.c.0.s8 %v1761
        %v1763 = vlaneseq
        %v1764 = vshrl.u32 %v1763, 7
        %v1765 = vsub.s32 %v1762, %v1764
        %v1766 = vrot.slane %v1750, %v1765
        %v1768 = vunpack.c.l.s4 1966171168
        %v1769 = vunpack.c.0.s8 %v1768
        %v1770 = vlaneseq
        %v1771 = vshrl.u32 %v1770, 7
        %v1772 = vsub.s32 %v1769, %v1771
        %v1773 = vrot.slane %v1757, %v1772
        %v1775 = vunpack.c.l.s4 1966171168
        %v1776 = vunpack.c.0.s8 %v1775
        %v1777 = vlaneseq
        %v1778 = vshrl.u32 %v1777, 7
        %v1779 = vsub.s32 %v1776, %v1778
        %v1780 = vrot.slane %v1758, %v1779
        %v1782 = vunpack.c.l.s4 1966171168
        %v1783 = vunpack.c.0.s8 %v1782
        %v1784 = vlaneseq
        %v1785 = vshrl.u32 %v1784, 7
        %v1786 = vsub.s32 %v1783, %v1785
        %v1787 = vrot.slane %v1759, %v1786
        %v1788 = vcombine.high %v1766, %v1766
        %v1789 = vcombine.high %v1773, %v1773
        %v1790 = vcombine.high %v1780, %v1780
        %v1791 = vcombine.high %v1787, %v1787
        %v1792 = vcombine.high %v1608, %v1608
        %v1794 = vunpack.c.l.s4 1966171168
        %v1795 = vunpack.c.0.s8 %v1794
        %v1796 = vlaneseq
        %v1797 = vshrl.u32 %v1796, 7
        %v1798 = vsub.s32 %v1795, %v1797
        %v1799 = vrot.slane %v1608, %v1798
        %v1801 = vunpack.c.l.s4 1966171168
        %v1802 = vunpack.c.0.s8 %v1801
        %v1803 = vlaneseq
        %v1804 = vshrl.u32 %v1803, 7
        %v1805 = vsub.s32 %v1802, %v1804
        %v1806 = vrot.slane %v1792, %v1805
        %v1807 = vcombine.high %v1799, %v1799
        %v1808 = vcombine.high %v1806, %v1806
        %v1810 = vunpack.c.l.s4 1966171168
        %v1811 = vunpack.c.0.s8 %v1810
        %v1812 = vlaneseq
        %v1813 = vshrl.u32 %v1812, 7
        %v1814 = vsub.s32 %v1811, %v1813
        %v1815 = vrot.slane %v1799, %v1814
        %v1817 = vunpack.c.l.s4 1966171168
        %v1818 = vunpack.c.0.s8 %v1817
        %v1819 = vlaneseq
        %v1820 = vshrl.u32 %v1819, 7
        %v1821 = vsub.s32 %v1818, %v1820
        %v1822 = vrot.slane %v1806, %v1821
        %v1824 = vunpack.c.l.s4 1966171168
        %v1825 = vunpack.c.0.s8 %v1824
        %v1826 = vlaneseq
        %v1827 = vshrl.u32 %v1826, 7
        %v1828 = vsub.s32 %v1825, %v1827
        %v1829 = vrot.slane %v1807, %v1828
        %v1831 = vunpack.c.l.s4 1966171168
        %v1832 = vunpack.c.0.s8 %v1831
        %v1833 = vlaneseq
        %v1834 = vshrl.u32 %v1833, 7
        %v1835 = vsub.s32 %v1832, %v1834
        %v1836 = vrot.slane %v1808, %v1835
        %v1837 = vcombine.high %v1815, %v1815
        %v1838 = vcombine.high %v1822, %v1822
        %v1839 = vcombine.high %v1829, %v1829
        %v1840 = vcombine.high %v1836, %v1836
        %v1841 = vcombine.high %v1609, %v1609
        %v1843 = vunpack.c.l.s4 1966171168
        %v1844 = vunpack.c.0.s8 %v1843
        %v1845 = vlaneseq
        %v1846 = vshrl.u32 %v1845, 7
        %v1847 = vsub.s32 %v1844, %v1846
        %v1848 = vrot.slane %v1609, %v1847
        %v1850 = vunpack.c.l.s4 1966171168
        %v1851 = vunpack.c.0.s8 %v1850
        %v1852 = vlaneseq
        %v1853 = vshrl.u32 %v1852, 7
        %v1854 = vsub.s32 %v1851, %v1853
        %v1855 = vrot.slane %v1841, %v1854
        %v1856 = vcombine.high %v1848, %v1848
        %v1857 = vcombine.high %v1855, %v1855
        %v1859 = vunpack.c.l.s4 1966171168
        %v1860 = vunpack.c.0.s8 %v1859
        %v1861 = vlaneseq
        %v1862 = vshrl.u32 %v1861, 7
        %v1863 = vsub.s32 %v1860, %v1862
        %v1864 = vrot.slane %v1848, %v1863
        %v1866 = vunpack.c.l.s4 1966171168
        %v1867 = vunpack.c.0.s8 %v1866
        %v1868 = vlaneseq
        %v1869 = vshrl.u32 %v1868, 7
        %v1870 = vsub.s32 %v1867, %v1869
        %v1871 = vrot.slane %v1855, %v1870
        %v1873 = vunpack.c.l.s4 1966171168
        %v1874 = vunpack.c.0.s8 %v1873
        %v1875 = vlaneseq
        %v1876 = vshrl.u32 %v1875, 7
        %v1877 = vsub.s32 %v1874, %v1876
        %v1878 = vrot.slane %v1856, %v1877
        %v1880 = vunpack.c.l.s4 1966171168
        %v1881 = vunpack.c.0.s8 %v1880
        %v1882 = vlaneseq
        %v1883 = vshrl.u32 %v1882, 7
        %v1884 = vsub.s32 %v1881, %v1883
        %v1885 = vrot.slane %v1857, %v1884
        %v1886 = vcombine.high %v1864, %v1864
        %v1887 = vcombine.high %v1871, %v1871
        %v1888 = vcombine.high %v1878, %v1878
        %v1889 = vcombine.high %v1885, %v1885
        %v1890 = vcombine.high %v1610, %v1610
        %v1892 = vunpack.c.l.s4 1966171168
        %v1893 = vunpack.c.0.s8 %v1892
        %v1894 = vlaneseq
        %v1895 = vshrl.u32 %v1894, 7
        %v1896 = vsub.s32 %v1893, %v1895
        %v1897 = vrot.slane %v1610, %v1896
        %v1899 = vunpack.c.l.s4 1966171168
        %v1900 = vunpack.c.0.s8 %v1899
        %v1901 = vlaneseq
        %v1902 = vshrl.u32 %v1901, 7
        %v1903 = vsub.s32 %v1900, %v1902
        %v1904 = vrot.slane %v1890, %v1903
        %v1905 = vcombine.high %v1897, %v1897
        %v1906 = vcombine.high %v1904, %v1904
        %v1908 = vunpack.c.l.s4 1966171168
        %v1909 = vunpack.c.0.s8 %v1908
        %v1910 = vlaneseq
        %v1911 = vshrl.u32 %v1910, 7
        %v1912 = vsub.s32 %v1909, %v1911
        %v1913 = vrot.slane %v1897, %v1912
        %v1915 = vunpack.c.l.s4 1966171168
        %v1916 = vunpack.c.0.s8 %v1915
        %v1917 = vlaneseq
        %v1918 = vshrl.u32 %v1917, 7
        %v1919 = vsub.s32 %v1916, %v1918
        %v1920 = vrot.slane %v1904, %v1919
        %v1922 = vunpack.c.l.s4 1966171168
        %v1923 = vunpack.c.0.s8 %v1922
        %v1924 = vlaneseq
        %v1925 = vshrl.u32 %v1924, 7
        %v1926 = vsub.s32 %v1923, %v1925
        %v1927 = vrot.slane %v1905, %v1926
        %v1929 = vunpack.c.l.s4 1966171168
        %v1930 = vunpack.c.0.s8 %v1929
        %v1931 = vlaneseq
        %v1932 = vshrl.u32 %v1931, 7
        %v1933 = vsub.s32 %v1930, %v1932
        %v1934 = vrot.slane %v1906, %v1933
        %v1935 = vcombine.high %v1913, %v1913
        %v1936 = vcombine.high %v1920, %v1920
        %v1937 = vcombine.high %v1927, %v1927
        %v1938 = vcombine.high %v1934, %v1934
        %v1939 = vcombine.high %v1611, %v1611
        %v1941 = vunpack.c.l.s4 1966171168
        %v1942 = vunpack.c.0.s8 %v1941
        %v1943 = vlaneseq
        %v1944 = vshrl.u32 %v1943, 7
        %v1945 = vsub.s32 %v1942, %v1944
        %v1946 = vrot.slane %v1611, %v1945
        %v1948 = vunpack.c.l.s4 1966171168
        %v1949 = vunpack.c.0.s8 %v1948
        %v1950 = vlaneseq
        %v1951 = vshrl.u32 %v1950, 7
        %v1952 = vsub.s32 %v1949, %v1951
        %v1953 = vrot.slane %v1939, %v1952
        %v1954 = vcombine.high %v1946, %v1946
        %v1955 = vcombine.high %v1953, %v1953
        %v1957 = vunpack.c.l.s4 1966171168
        %v1958 = vunpack.c.0.s8 %v1957
        %v1959 = vlaneseq
        %v1960 = vshrl.u32 %v1959, 7
        %v1961 = vsub.s32 %v1958, %v1960
        %v1962 = vrot.slane %v1946, %v1961
        %v1964 = vunpack.c.l.s4 1966171168
        %v1965 = vunpack.c.0.s8 %v1964
        %v1966 = vlaneseq
        %v1967 = vshrl.u32 %v1966, 7
        %v1968 = vsub.s32 %v1965, %v1967
        %v1969 = vrot.slane %v1953, %v1968
        %v1971 = vunpack.c.l.s4 1966171168
        %v1972 = vunpack.c.0.s8 %v1971
        %v1973 = vlaneseq
        %v1974 = vshrl.u32 %v1973, 7
        %v1975 = vsub.s32 %v1972, %v1974
        %v1976 = vrot.slane %v1954, %v1975
        %v1978 = vunpack.c.l.s4 1966171168
        %v1979 = vunpack.c.0.s8 %v1978
        %v1980 = vlaneseq
        %v1981 = vshrl.u32 %v1980, 7
        %v1982 = vsub.s32 %v1979, %v1981
        %v1983 = vrot.slane %v1955, %v1982
        %v1984 = vcombine.high %v1962, %v1962
        %v1985 = vcombine.high %v1969, %v1969
        %v1986 = vcombine.high %v1976, %v1976
        %v1987 = vcombine.high %v1983, %v1983
        %v1988 = vcombine.high %v1612, %v1612
        %v1990 = vunpack.c.l.s4 1966171168
        %v1991 = vunpack.c.0.s8 %v1990
        %v1992 = vlaneseq
        %v1993 = vshrl.u32 %v1992, 7
        %v1994 = vsub.s32 %v1991, %v1993
        %v1995 = vrot.slane %v1612, %v1994
        %v1997 = vunpack.c.l.s4 1966171168
        %v1998 = vunpack.c.0.s8 %v1997
        %v1999 = vlaneseq
        %v2000 = vshrl.u32 %v1999, 7
        %v2001 = vsub.s32 %v1998, %v2000
        %v2002 = vrot.slane %v1988, %v2001
        %v2003 = vcombine.high %v1995, %v1995
        %v2004 = vcombine.high %v2002, %v2002
        %v2006 = vunpack.c.l.s4 1966171168
        %v2007 = vunpack.c.0.s8 %v2006
        %v2008 = vlaneseq
        %v2009 = vshrl.u32 %v2008, 7
        %v2010 = vsub.s32 %v2007, %v2009
        %v2011 = vrot.slane %v1995, %v2010
        %v2013 = vunpack.c.l.s4 1966171168
        %v2014 = vunpack.c.0.s8 %v2013
        %v2015 = vlaneseq
        %v2016 = vshrl.u32 %v2015, 7
        %v2017 = vsub.s32 %v2014, %v2016
        %v2018 = vrot.slane %v2002, %v2017
        %v2020 = vunpack.c.l.s4 1966171168
        %v2021 = vunpack.c.0.s8 %v2020
        %v2022 = vlaneseq
        %v2023 = vshrl.u32 %v2022, 7
        %v2024 = vsub.s32 %v2021, %v2023
        %v2025 = vrot.slane %v2003, %v2024
        %v2027 = vunpack.c.l.s4 1966171168
        %v2028 = vunpack.c.0.s8 %v2027
        %v2029 = vlaneseq
        %v2030 = vshrl.u32 %v2029, 7
        %v2031 = vsub.s32 %v2028, %v2030
        %v2032 = vrot.slane %v2004, %v2031
        %v2033 = vcombine.high %v2011, %v2011
        %v2034 = vcombine.high %v2018, %v2018
        %v2035 = vcombine.high %v2025, %v2025
        %v2036 = vcombine.high %v2032, %v2032
        %v2109 = vcombine.high %v1629, %v1629
        %v2111 = vunpack.c.l.s4 1966171168
        %v2112 = vunpack.c.0.s8 %v2111
        %v2113 = vlaneseq
        %v2114 = vshrl.u32 %v2113, 7
        %v2115 = vsub.s32 %v2112, %v2114
        %v2116 = vrot.slane %v1629, %v2115
        %v2118 = vunpack.c.l.s4 1966171168
        %v2119 = vunpack.c.0.s8 %v2118
        %v2120 = vlaneseq
        %v2121 = vshrl.u32 %v2120, 7
        %v2122 = vsub.s32 %v2119, %v2121
        %v2123 = vrot.slane %v2109, %v2122
        %v2124 = vcombine.high %v2116, %v2116
        %v2125 = vcombine.high %v2123, %v2123
        %v2127 = vunpack.c.l.s4 1966171168
        %v2128 = vunpack.c.0.s8 %v2127
        %v2129 = vlaneseq
        %v2130 = vshrl.u32 %v2129, 7
        %v2131 = vsub.s32 %v2128, %v2130
        %v2132 = vrot.slane %v2116, %v2131
        %v2134 = vunpack.c.l.s4 1966171168
        %v2135 = vunpack.c.0.s8 %v2134
        %v2136 = vlaneseq
        %v2137 = vshrl.u32 %v2136, 7
        %v2138 = vsub.s32 %v2135, %v2137
        %v2139 = vrot.slane %v2123, %v2138
        %v2141 = vunpack.c.l.s4 1966171168
        %v2142 = vunpack.c.0.s8 %v2141
        %v2143 = vlaneseq
        %v2144 = vshrl.u32 %v2143, 7
        %v2145 = vsub.s32 %v2142, %v2144
        %v2146 = vrot.slane %v2124, %v2145
        %v2148 = vunpack.c.l.s4 1966171168
        %v2149 = vunpack.c.0.s8 %v2148
        %v2150 = vlaneseq
        %v2151 = vshrl.u32 %v2150, 7
        %v2152 = vsub.s32 %v2149, %v2151
        %v2153 = vrot.slane %v2125, %v2152
        %v2154 = vcombine.high %v2132, %v2132
        %v2155 = vcombine.high %v2139, %v2139
        %v2156 = vcombine.high %v2146, %v2146
        %v2157 = vcombine.high %v2153, %v2153
        %v2158 = vcombine.high %v1630, %v1630
        %v2160 = vunpack.c.l.s4 1966171168
        %v2161 = vunpack.c.0.s8 %v2160
        %v2162 = vlaneseq
        %v2163 = vshrl.u32 %v2162, 7
        %v2164 = vsub.s32 %v2161, %v2163
        %v2165 = vrot.slane %v1630, %v2164
        %v2167 = vunpack.c.l.s4 1966171168
        %v2168 = vunpack.c.0.s8 %v2167
        %v2169 = vlaneseq
        %v2170 = vshrl.u32 %v2169, 7
        %v2171 = vsub.s32 %v2168, %v2170
        %v2172 = vrot.slane %v2158, %v2171
        %v2173 = vcombine.high %v2165, %v2165
        %v2174 = vcombine.high %v2172, %v2172
        %v2176 = vunpack.c.l.s4 1966171168
        %v2177 = vunpack.c.0.s8 %v2176
        %v2178 = vlaneseq
        %v2179 = vshrl.u32 %v2178, 7
        %v2180 = vsub.s32 %v2177, %v2179
        %v2181 = vrot.slane %v2165, %v2180
        %v2183 = vunpack.c.l.s4 1966171168
        %v2184 = vunpack.c.0.s8 %v2183
        %v2185 = vlaneseq
        %v2186 = vshrl.u32 %v2185, 7
        %v2187 = vsub.s32 %v2184, %v2186
        %v2188 = vrot.slane %v2172, %v2187
        %v2190 = vunpack.c.l.s4 1966171168
        %v2191 = vunpack.c.0.s8 %v2190
        %v2192 = vlaneseq
        %v2193 = vshrl.u32 %v2192, 7
        %v2194 = vsub.s32 %v2191, %v2193
        %v2195 = vrot.slane %v2173, %v2194
        %v2197 = vunpack.c.l.s4 1966171168
        %v2198 = vunpack.c.0.s8 %v2197
        %v2199 = vlaneseq
        %v2200 = vshrl.u32 %v2199, 7
        %v2201 = vsub.s32 %v2198, %v2200
        %v2202 = vrot.slane %v2174, %v2201
        %v2203 = vcombine.high %v2181, %v2181
        %v2204 = vcombine.high %v2188, %v2188
        %v2205 = vcombine.high %v2195, %v2195
        %v2206 = vcombine.high %v2202, %v2202
        %v2207 = vcombine.high %v1631, %v1631
        %v2209 = vunpack.c.l.s4 1966171168
        %v2210 = vunpack.c.0.s8 %v2209
        %v2211 = vlaneseq
        %v2212 = vshrl.u32 %v2211, 7
        %v2213 = vsub.s32 %v2210, %v2212
        %v2214 = vrot.slane %v1631, %v2213
        %v2216 = vunpack.c.l.s4 1966171168
        %v2217 = vunpack.c.0.s8 %v2216
        %v2218 = vlaneseq
        %v2219 = vshrl.u32 %v2218, 7
        %v2220 = vsub.s32 %v2217, %v2219
        %v2221 = vrot.slane %v2207, %v2220
        %v2222 = vcombine.high %v2214, %v2214
        %v2223 = vcombine.high %v2221, %v2221
        %v2225 = vunpack.c.l.s4 1966171168
        %v2226 = vunpack.c.0.s8 %v2225
        %v2227 = vlaneseq
        %v2228 = vshrl.u32 %v2227, 7
        %v2229 = vsub.s32 %v2226, %v2228
        %v2230 = vrot.slane %v2214, %v2229
        %v2232 = vunpack.c.l.s4 1966171168
        %v2233 = vunpack.c.0.s8 %v2232
        %v2234 = vlaneseq
        %v2235 = vshrl.u32 %v2234, 7
        %v2236 = vsub.s32 %v2233, %v2235
        %v2237 = vrot.slane %v2221, %v2236
        %v2239 = vunpack.c.l.s4 1966171168
        %v2240 = vunpack.c.0.s8 %v2239
        %v2241 = vlaneseq
        %v2242 = vshrl.u32 %v2241, 7
        %v2243 = vsub.s32 %v2240, %v2242
        %v2244 = vrot.slane %v2222, %v2243
        %v2246 = vunpack.c.l.s4 1966171168
        %v2247 = vunpack.c.0.s8 %v2246
        %v2248 = vlaneseq
        %v2249 = vshrl.u32 %v2248, 7
        %v2250 = vsub.s32 %v2247, %v2249
        %v2251 = vrot.slane %v2223, %v2250
        %v2252 = vcombine.high %v2230, %v2230
        %v2253 = vcombine.high %v2237, %v2237
        %v2254 = vcombine.high %v2244, %v2244
        %v2255 = vcombine.high %v2251, %v2251
        %v2256 = vcombine.high %v1632, %v1632
        %v2258 = vunpack.c.l.s4 1966171168
        %v2259 = vunpack.c.0.s8 %v2258
        %v2260 = vlaneseq
        %v2261 = vshrl.u32 %v2260, 7
        %v2262 = vsub.s32 %v2259, %v2261
        %v2263 = vrot.slane %v1632, %v2262
        %v2265 = vunpack.c.l.s4 1966171168
        %v2266 = vunpack.c.0.s8 %v2265
        %v2267 = vlaneseq
        %v2268 = vshrl.u32 %v2267, 7
        %v2269 = vsub.s32 %v2266, %v2268
        %v2270 = vrot.slane %v2256, %v2269
        %v2271 = vcombine.high %v2263, %v2263
        %v2272 = vcombine.high %v2270, %v2270
        %v2274 = vunpack.c.l.s4 1966171168
        %v2275 = vunpack.c.0.s8 %v2274
        %v2276 = vlaneseq
        %v2277 = vshrl.u32 %v2276, 7
        %v2278 = vsub.s32 %v2275, %v2277
        %v2279 = vrot.slane %v2263, %v2278
        %v2281 = vunpack.c.l.s4 1966171168
        %v2282 = vunpack.c.0.s8 %v2281
        %v2283 = vlaneseq
        %v2284 = vshrl.u32 %v2283, 7
        %v2285 = vsub.s32 %v2282, %v2284
        %v2286 = vrot.slane %v2270, %v2285
        %v2288 = vunpack.c.l.s4 1966171168
        %v2289 = vunpack.c.0.s8 %v2288
        %v2290 = vlaneseq
        %v2291 = vshrl.u32 %v2290, 7
        %v2292 = vsub.s32 %v2289, %v2291
        %v2293 = vrot.slane %v2271, %v2292
        %v2295 = vunpack.c.l.s4 1966171168
        %v2296 = vunpack.c.0.s8 %v2295
        %v2297 = vlaneseq
        %v2298 = vshrl.u32 %v2297, 7
        %v2299 = vsub.s32 %v2296, %v2298
        %v2300 = vrot.slane %v2272, %v2299
        %v2301 = vcombine.high %v2279, %v2279
        %v2302 = vcombine.high %v2286, %v2286
        %v2303 = vcombine.high %v2293, %v2293
        %v2304 = vcombine.high %v2300, %v2300
        %v2305 = vcombine.high %v1633, %v1633
        %v2307 = vunpack.c.l.s4 1966171168
        %v2308 = vunpack.c.0.s8 %v2307
        %v2309 = vlaneseq
        %v2310 = vshrl.u32 %v2309, 7
        %v2311 = vsub.s32 %v2308, %v2310
        %v2312 = vrot.slane %v1633, %v2311
        %v2314 = vunpack.c.l.s4 1966171168
        %v2315 = vunpack.c.0.s8 %v2314
        %v2316 = vlaneseq
        %v2317 = vshrl.u32 %v2316, 7
        %v2318 = vsub.s32 %v2315, %v2317
        %v2319 = vrot.slane %v2305, %v2318
        %v2320 = vcombine.high %v2312, %v2312
        %v2321 = vcombine.high %v2319, %v2319
        %v2323 = vunpack.c.l.s4 1966171168
        %v2324 = vunpack.c.0.s8 %v2323
        %v2325 = vlaneseq
        %v2326 = vshrl.u32 %v2325, 7
        %v2327 = vsub.s32 %v2324, %v2326
        %v2328 = vrot.slane %v2312, %v2327
        %v2330 = vunpack.c.l.s4 1966171168
        %v2331 = vunpack.c.0.s8 %v2330
        %v2332 = vlaneseq
        %v2333 = vshrl.u32 %v2332, 7
        %v2334 = vsub.s32 %v2331, %v2333
        %v2335 = vrot.slane %v2319, %v2334
        %v2337 = vunpack.c.l.s4 1966171168
        %v2338 = vunpack.c.0.s8 %v2337
        %v2339 = vlaneseq
        %v2340 = vshrl.u32 %v2339, 7
        %v2341 = vsub.s32 %v2338, %v2340
        %v2342 = vrot.slane %v2320, %v2341
        %v2344 = vunpack.c.l.s4 1966171168
        %v2345 = vunpack.c.0.s8 %v2344
        %v2346 = vlaneseq
        %v2347 = vshrl.u32 %v2346, 7
        %v2348 = vsub.s32 %v2345, %v2347
        %v2349 = vrot.slane %v2321, %v2348
        %v2350 = vcombine.high %v2328, %v2328
        %v2351 = vcombine.high %v2335, %v2335
        %v2352 = vcombine.high %v2342, %v2342
        %v2353 = vcombine.high %v2349, %v2349
        %v2354 = vcombine.high %v1634, %v1634
        %v2356 = vunpack.c.l.s4 1966171168
        %v2357 = vunpack.c.0.s8 %v2356
        %v2358 = vlaneseq
        %v2359 = vshrl.u32 %v2358, 7
        %v2360 = vsub.s32 %v2357, %v2359
        %v2361 = vrot.slane %v1634, %v2360
        %v2363 = vunpack.c.l.s4 1966171168
        %v2364 = vunpack.c.0.s8 %v2363
        %v2365 = vlaneseq
        %v2366 = vshrl.u32 %v2365, 7
        %v2367 = vsub.s32 %v2364, %v2366
        %v2368 = vrot.slane %v2354, %v2367
        %v2369 = vcombine.high %v2361, %v2361
        %v2370 = vcombine.high %v2368, %v2368
        %v2372 = vunpack.c.l.s4 1966171168
        %v2373 = vunpack.c.0.s8 %v2372
        %v2374 = vlaneseq
        %v2375 = vshrl.u32 %v2374, 7
        %v2376 = vsub.s32 %v2373, %v2375
        %v2377 = vrot.slane %v2361, %v2376
        %v2379 = vunpack.c.l.s4 1966171168
        %v2380 = vunpack.c.0.s8 %v2379
        %v2381 = vlaneseq
        %v2382 = vshrl.u32 %v2381, 7
        %v2383 = vsub.s32 %v2380, %v2382
        %v2384 = vrot.slane %v2368, %v2383
        %v2386 = vunpack.c.l.s4 1966171168
        %v2387 = vunpack.c.0.s8 %v2386
        %v2388 = vlaneseq
        %v2389 = vshrl.u32 %v2388, 7
        %v2390 = vsub.s32 %v2387, %v2389
        %v2391 = vrot.slane %v2369, %v2390
        %v2393 = vunpack.c.l.s4 1966171168
        %v2394 = vunpack.c.0.s8 %v2393
        %v2395 = vlaneseq
        %v2396 = vshrl.u32 %v2395, 7
        %v2397 = vsub.s32 %v2394, %v2396
        %v2398 = vrot.slane %v2370, %v2397
        %v2399 = vcombine.high %v2377, %v2377
        %v2400 = vcombine.high %v2384, %v2384
        %v2401 = vcombine.high %v2391, %v2391
        %v2402 = vcombine.high %v2398, %v2398
        %v2403 = vcombine.high %v1635, %v1635
        %v2405 = vunpack.c.l.s4 1966171168
        %v2406 = vunpack.c.0.s8 %v2405
        %v2407 = vlaneseq
        %v2408 = vshrl.u32 %v2407, 7
        %v2409 = vsub.s32 %v2406, %v2408
        %v2410 = vrot.slane %v1635, %v2409
        %v2412 = vunpack.c.l.s4 1966171168
        %v2413 = vunpack.c.0.s8 %v2412
        %v2414 = vlaneseq
        %v2415 = vshrl.u32 %v2414, 7
        %v2416 = vsub.s32 %v2413, %v2415
        %v2417 = vrot.slane %v2403, %v2416
        %v2418 = vcombine.high %v2410, %v2410
        %v2419 = vcombine.high %v2417, %v2417
        %v2421 = vunpack.c.l.s4 1966171168
        %v2422 = vunpack.c.0.s8 %v2421
        %v2423 = vlaneseq
        %v2424 = vshrl.u32 %v2423, 7
        %v2425 = vsub.s32 %v2422, %v2424
        %v2426 = vrot.slane %v2410, %v2425
        %v2428 = vunpack.c.l.s4 1966171168
        %v2429 = vunpack.c.0.s8 %v2428
        %v2430 = vlaneseq
        %v2431 = vshrl.u32 %v2430, 7
        %v2432 = vsub.s32 %v2429, %v2431
        %v2433 = vrot.slane %v2417, %v2432
        %v2435 = vunpack.c.l.s4 1966171168
        %v2436 = vunpack.c.0.s8 %v2435
        %v2437 = vlaneseq
        %v2438 = vshrl.u32 %v2437, 7
        %v2439 = vsub.s32 %v2436, %v2438
        %v2440 = vrot.slane %v2418, %v2439
        %v2442 = vunpack.c.l.s4 1966171168
        %v2443 = vunpack.c.0.s8 %v2442
        %v2444 = vlaneseq
        %v2445 = vshrl.u32 %v2444, 7
        %v2446 = vsub.s32 %v2443, %v2445
        %v2447 = vrot.slane %v2419, %v2446
        %v2448 = vcombine.high %v2426, %v2426
        %v2449 = vcombine.high %v2433, %v2433
        %v2450 = vcombine.high %v2440, %v2440
        %v2451 = vcombine.high %v2447, %v2447
        %v2452 = vcombine.high %v1636, %v1636
        %v2454 = vunpack.c.l.s4 1966171168
        %v2455 = vunpack.c.0.s8 %v2454
        %v2456 = vlaneseq
        %v2457 = vshrl.u32 %v2456, 7
        %v2458 = vsub.s32 %v2455, %v2457
        %v2459 = vrot.slane %v1636, %v2458
        %v2461 = vunpack.c.l.s4 1966171168
        %v2462 = vunpack.c.0.s8 %v2461
        %v2463 = vlaneseq
        %v2464 = vshrl.u32 %v2463, 7
        %v2465 = vsub.s32 %v2462, %v2464
        %v2466 = vrot.slane %v2452, %v2465
        %v2467 = vcombine.high %v2459, %v2459
        %v2468 = vcombine.high %v2466, %v2466
        %v2470 = vunpack.c.l.s4 1966171168
        %v2471 = vunpack.c.0.s8 %v2470
        %v2472 = vlaneseq
        %v2473 = vshrl.u32 %v2472, 7
        %v2474 = vsub.s32 %v2471, %v2473
        %v2475 = vrot.slane %v2459, %v2474
        %v2477 = vunpack.c.l.s4 1966171168
        %v2478 = vunpack.c.0.s8 %v2477
        %v2479 = vlaneseq
        %v2480 = vshrl.u32 %v2479, 7
        %v2481 = vsub.s32 %v2478, %v2480
        %v2482 = vrot.slane %v2466, %v2481
        %v2484 = vunpack.c.l.s4 1966171168
        %v2485 = vunpack.c.0.s8 %v2484
        %v2486 = vlaneseq
        %v2487 = vshrl.u32 %v2486, 7
        %v2488 = vsub.s32 %v2485, %v2487
        %v2489 = vrot.slane %v2467, %v2488
        %v2491 = vunpack.c.l.s4 1966171168
        %v2492 = vunpack.c.0.s8 %v2491
        %v2493 = vlaneseq
        %v2494 = vshrl.u32 %v2493, 7
        %v2495 = vsub.s32 %v2492, %v2494
        %v2496 = vrot.slane %v2468, %v2495
        %v2497 = vcombine.high %v2475, %v2475
        %v2498 = vcombine.high %v2482, %v2482
        %v2499 = vcombine.high %v2489, %v2489
        %v2500 = vcombine.high %v2496, %v2496
        %v2501 = vlaneseq
        %v2502 = vshrl.u32 %v2501, 7
        %v2503 = vsub.s32 0, %v2502
        %v2504 = vrot.slane %v2132, %v2503
        %v2505 = vlaneseq
        %v2506 = vshrl.u32 %v2505, 7
        %v2507 = vsub.s32 0, %v2506
        %v2508 = vrot.slane %v2146, %v2507
        %v2509 = vlaneseq
        %v2510 = vshrl.u32 %v2509, 7
        %v2511 = vsub.s32 0, %v2510
        %v2512 = vrot.slane %v2154, %v2511
        %v2513 = vlaneseq
        %v2514 = vshrl.u32 %v2513, 7
        %v2515 = vsub.s32 0, %v2514
        %v2516 = vrot.slane %v2156, %v2515
        %v2517 = vlaneseq
        %v2518 = vshrl.u32 %v2517, 7
        %v2519 = vsub.s32 0, %v2518
        %v2520 = vrot.slane %v2139, %v2519
        %v2521 = vlaneseq
        %v2522 = vshrl.u32 %v2521, 7
        %v2523 = vsub.s32 0, %v2522
        %v2524 = vrot.slane %v2153, %v2523
        %v2525 = vlaneseq
        %v2526 = vshrl.u32 %v2525, 7
        %v2527 = vsub.s32 0, %v2526
        %v2528 = vrot.slane %v2155, %v2527
        %v2529 = vlaneseq
        %v2530 = vshrl.u32 %v2529, 7
        %v2531 = vsub.s32 0, %v2530
        %v2532 = vrot.slane %v2157, %v2531
        %v2533 = vlaneseq
        %v2534 = vshrl.u32 %v2533, 7
        %v2535 = vsub.s32 0, %v2534
        %v2536 = vrot.slane %v2181, %v2535
        %v2537 = vlaneseq
        %v2538 = vshrl.u32 %v2537, 7
        %v2539 = vsub.s32 0, %v2538
        %v2540 = vrot.slane %v2195, %v2539
        %v2541 = vlaneseq
        %v2542 = vshrl.u32 %v2541, 7
        %v2543 = vsub.s32 0, %v2542
        %v2544 = vrot.slane %v2203, %v2543
        %v2545 = vlaneseq
        %v2546 = vshrl.u32 %v2545, 7
        %v2547 = vsub.s32 0, %v2546
        %v2548 = vrot.slane %v2205, %v2547
        %v2549 = vlaneseq
        %v2550 = vshrl.u32 %v2549, 7
        %v2551 = vsub.s32 0, %v2550
        %v2552 = vrot.slane %v2188, %v2551
        %v2553 = vlaneseq
        %v2554 = vshrl.u32 %v2553, 7
        %v2555 = vsub.s32 0, %v2554
        %v2556 = vrot.slane %v2202, %v2555
        %v2557 = vlaneseq
        %v2558 = vshrl.u32 %v2557, 7
        %v2559 = vsub.s32 0, %v2558
        %v2560 = vrot.slane %v2204, %v2559
        %v2561 = vlaneseq
        %v2562 = vshrl.u32 %v2561, 7
        %v2563 = vsub.s32 0, %v2562
        %v2564 = vrot.slane %v2206, %v2563
        %v2565 = vlaneseq
        %v2566 = vshrl.u32 %v2565, 7
        %v2567 = vsub.s32 0, %v2566
        %v2568 = vrot.slane %v2230, %v2567
        %v2569 = vlaneseq
        %v2570 = vshrl.u32 %v2569, 7
        %v2571 = vsub.s32 0, %v2570
        %v2572 = vrot.slane %v2244, %v2571
        %v2573 = vlaneseq
        %v2574 = vshrl.u32 %v2573, 7
        %v2575 = vsub.s32 0, %v2574
        %v2576 = vrot.slane %v2252, %v2575
        %v2577 = vlaneseq
        %v2578 = vshrl.u32 %v2577, 7
        %v2579 = vsub.s32 0, %v2578
        %v2580 = vrot.slane %v2254, %v2579
        %v2581 = vlaneseq
        %v2582 = vshrl.u32 %v2581, 7
        %v2583 = vsub.s32 0, %v2582
        %v2584 = vrot.slane %v2237, %v2583
        %v2585 = vlaneseq
        %v2586 = vshrl.u32 %v2585, 7
        %v2587 = vsub.s32 0, %v2586
        %v2588 = vrot.slane %v2251, %v2587
        %v2589 = vlaneseq
        %v2590 = vshrl.u32 %v2589, 7
        %v2591 = vsub.s32 0, %v2590
        %v2592 = vrot.slane %v2253, %v2591
        %v2593 = vlaneseq
        %v2594 = vshrl.u32 %v2593, 7
        %v2595 = vsub.s32 0, %v2594
        %v2596 = vrot.slane %v2255, %v2595
        %v2597 = vlaneseq
        %v2598 = vshrl.u32 %v2597, 7
        %v2599 = vsub.s32 0, %v2598
        %v2600 = vrot.slane %v2279, %v2599
        %v2601 = vlaneseq
        %v2602 = vshrl.u32 %v2601, 7
        %v2603 = vsub.s32 0, %v2602
        %v2604 = vrot.slane %v2293, %v2603
        %v2605 = vlaneseq
        %v2606 = vshrl.u32 %v2605, 7
        %v2607 = vsub.s32 0, %v2606
        %v2608 = vrot.slane %v2301, %v2607
        %v2609 = vlaneseq
        %v2610 = vshrl.u32 %v2609, 7
        %v2611 = vsub.s32 0, %v2610
        %v2612 = vrot.slane %v2303, %v2611
        %v2613 = vlaneseq
        %v2614 = vshrl.u32 %v2613, 7
        %v2615 = vsub.s32 0, %v2614
        %v2616 = vrot.slane %v2286, %v2615
        %v2617 = vlaneseq
        %v2618 = vshrl.u32 %v2617, 7
        %v2619 = vsub.s32 0, %v2618
        %v2620 = vrot.slane %v2300, %v2619
        %v2621 = vlaneseq
        %v2622 = vshrl.u32 %v2621, 7
        %v2623 = vsub.s32 0, %v2622
        %v2624 = vrot.slane %v2302, %v2623
        %v2625 = vlaneseq
        %v2626 = vshrl.u32 %v2625, 7
        %v2627 = vsub.s32 0, %v2626
        %v2628 = vrot.slane %v2304, %v2627
        %v2629 = vlaneseq
        %v2630 = vshrl.u32 %v2629, 7
        %v2631 = vsub.s32 0, %v2630
        %v2632 = vrot.slane %v2328, %v2631
        %v2633 = vlaneseq
        %v2634 = vshrl.u32 %v2633, 7
        %v2635 = vsub.s32 0, %v2634
        %v2636 = vrot.slane %v2342, %v2635
        %v2637 = vlaneseq
        %v2638 = vshrl.u32 %v2637, 7
        %v2639 = vsub.s32 0, %v2638
        %v2640 = vrot.slane %v2350, %v2639
        %v2641 = vlaneseq
        %v2642 = vshrl.u32 %v2641, 7
        %v2643 = vsub.s32 0, %v2642
        %v2644 = vrot.slane %v2352, %v2643
        %v2645 = vlaneseq
        %v2646 = vshrl.u32 %v2645, 7
        %v2647 = vsub.s32 0, %v2646
        %v2648 = vrot.slane %v2335, %v2647
        %v2649 = vlaneseq
        %v2650 = vshrl.u32 %v2649, 7
        %v2651 = vsub.s32 0, %v2650
        %v2652 = vrot.slane %v2349, %v2651
        %v2653 = vlaneseq
        %v2654 = vshrl.u32 %v2653, 7
        %v2655 = vsub.s32 0, %v2654
        %v2656 = vrot.slane %v2351, %v2655
        %v2657 = vlaneseq
        %v2658 = vshrl.u32 %v2657, 7
        %v2659 = vsub.s32 0, %v2658
        %v2660 = vrot.slane %v2353, %v2659
        %v2661 = vlaneseq
        %v2662 = vshrl.u32 %v2661, 7
        %v2663 = vsub.s32 0, %v2662
        %v2664 = vrot.slane %v2377, %v2663
        %v2665 = vlaneseq
        %v2666 = vshrl.u32 %v2665, 7
        %v2667 = vsub.s32 0, %v2666
        %v2668 = vrot.slane %v2391, %v2667
        %v2669 = vlaneseq
        %v2670 = vshrl.u32 %v2669, 7
        %v2671 = vsub.s32 0, %v2670
        %v2672 = vrot.slane %v2399, %v2671
        %v2673 = vlaneseq
        %v2674 = vshrl.u32 %v2673, 7
        %v2675 = vsub.s32 0, %v2674
        %v2676 = vrot.slane %v2401, %v2675
        %v2677 = vlaneseq
        %v2678 = vshrl.u32 %v2677, 7
        %v2679 = vsub.s32 0, %v2678
        %v2680 = vrot.slane %v2384, %v2679
        %v2681 = vlaneseq
        %v2682 = vshrl.u32 %v2681, 7
        %v2683 = vsub.s32 0, %v2682
        %v2684 = vrot.slane %v2398, %v2683
        %v2685 = vlaneseq
        %v2686 = vshrl.u32 %v2685, 7
        %v2687 = vsub.s32 0, %v2686
        %v2688 = vrot.slane %v2400, %v2687
        %v2689 = vlaneseq
        %v2690 = vshrl.u32 %v2689, 7
        %v2691 = vsub.s32 0, %v2690
        %v2692 = vrot.slane %v2402, %v2691
        %v2693 = vlaneseq
        %v2694 = vshrl.u32 %v2693, 7
        %v2695 = vsub.s32 0, %v2694
        %v2696 = vrot.slane %v2426, %v2695
        %v2697 = vlaneseq
        %v2698 = vshrl.u32 %v2697, 7
        %v2699 = vsub.s32 0, %v2698
        %v2700 = vrot.slane %v2440, %v2699
        %v2701 = vlaneseq
        %v2702 = vshrl.u32 %v2701, 7
        %v2703 = vsub.s32 0, %v2702
        %v2704 = vrot.slane %v2448, %v2703
        %v2705 = vlaneseq
        %v2706 = vshrl.u32 %v2705, 7
        %v2707 = vsub.s32 0, %v2706
        %v2708 = vrot.slane %v2450, %v2707
        %v2709 = vlaneseq
        %v2710 = vshrl.u32 %v2709, 7
        %v2711 = vsub.s32 0, %v2710
        %v2712 = vrot.slane %v2433, %v2711
        %v2713 = vlaneseq
        %v2714 = vshrl.u32 %v2713, 7
        %v2715 = vsub.s32 0, %v2714
        %v2716 = vrot.slane %v2447, %v2715
        %v2717 = vlaneseq
        %v2718 = vshrl.u32 %v2717, 7
        %v2719 = vsub.s32 0, %v2718
        %v2720 = vrot.slane %v2449, %v2719
        %v2721 = vlaneseq
        %v2722 = vshrl.u32 %v2721, 7
        %v2723 = vsub.s32 0, %v2722
        %v2724 = vrot.slane %v2451, %v2723
        %v2725 = vlaneseq
        %v2726 = vshrl.u32 %v2725, 7
        %v2727 = vsub.s32 0, %v2726
        %v2728 = vrot.slane %v2475, %v2727
        %v2729 = vlaneseq
        %v2730 = vshrl.u32 %v2729, 7
        %v2731 = vsub.s32 0, %v2730
        %v2732 = vrot.slane %v2489, %v2731
        %v2733 = vlaneseq
        %v2734 = vshrl.u32 %v2733, 7
        %v2735 = vsub.s32 0, %v2734
        %v2736 = vrot.slane %v2497, %v2735
        %v2737 = vlaneseq
        %v2738 = vshrl.u32 %v2737, 7
        %v2739 = vsub.s32 0, %v2738
        %v2740 = vrot.slane %v2499, %v2739
        %v2741 = vlaneseq
        %v2742 = vshrl.u32 %v2741, 7
        %v2743 = vsub.s32 0, %v2742
        %v2744 = vrot.slane %v2482, %v2743
        %v2745 = vlaneseq
        %v2746 = vshrl.u32 %v2745, 7
        %v2747 = vsub.s32 0, %v2746
        %v2748 = vrot.slane %v2496, %v2747
        %v2749 = vlaneseq
        %v2750 = vshrl.u32 %v2749, 7
        %v2751 = vsub.s32 0, %v2750
        %v2752 = vrot.slane %v2498, %v2751
        %v2753 = vlaneseq
        %v2754 = vshrl.u32 %v2753, 7
        %v2755 = vsub.s32 0, %v2754
        %v2756 = vrot.slane %v2500, %v2755
        %v2821 = vsel %vm1524, %v1668, %v2504
        %v2822 = vsel %vm1524, %v1682, %v2508
        %v2823 = vsel %vm1524, %v1690, %v2512
        %v2824 = vsel %vm1524, %v1692, %v2516
        %v2825 = vsel %vm1524, %v1675, %v2520
        %v2826 = vsel %vm1524, %v1689, %v2524
        %v2827 = vsel %vm1524, %v1691, %v2528
        %v2828 = vsel %vm1524, %v1693, %v2532
        %v2829 = vsel %vm1524, %v1717, %v2536
        %v2830 = vsel %vm1524, %v1731, %v2540
        %v2831 = vsel %vm1524, %v1739, %v2544
        %v2832 = vsel %vm1524, %v1741, %v2548
        %v2833 = vsel %vm1524, %v1724, %v2552
        %v2834 = vsel %vm1524, %v1738, %v2556
        %v2835 = vsel %vm1524, %v1740, %v2560
        %v2836 = vsel %vm1524, %v1742, %v2564
        %v2837 = vsel %vm1524, %v1766, %v2568
        %v2838 = vsel %vm1524, %v1780, %v2572
        %v2839 = vsel %vm1524, %v1788, %v2576
        %v2840 = vsel %vm1524, %v1790, %v2580
        %v2841 = vsel %vm1524, %v1773, %v2584
        %v2842 = vsel %vm1524, %v1787, %v2588
        %v2843 = vsel %vm1524, %v1789, %v2592
        %v2844 = vsel %vm1524, %v1791, %v2596
        %v2845 = vsel %vm1524, %v1815, %v2600
        %v2846 = vsel %vm1524, %v1829, %v2604
        %v2847 = vsel %vm1524, %v1837, %v2608
        %v2848 = vsel %vm1524, %v1839, %v2612
        %v2849 = vsel %vm1524, %v1822, %v2616
        %v2850 = vsel %vm1524, %v1836, %v2620
        %v2851 = vsel %vm1524, %v1838, %v2624
        %v2852 = vsel %vm1524, %v1840, %v2628
        %v2853 = vsel %vm1524, %v1864, %v2632
        %v2854 = vsel %vm1524, %v1878, %v2636
        %v2855 = vsel %vm1524, %v1886, %v2640
        %v2856 = vsel %vm1524, %v1888, %v2644
        %v2857 = vsel %vm1524, %v1871, %v2648
        %v2858 = vsel %vm1524, %v1885, %v2652
        %v2859 = vsel %vm1524, %v1887, %v2656
        %v2860 = vsel %vm1524, %v1889, %v2660
        %v2861 = vsel %vm1524, %v1913, %v2664
        %v2862 = vsel %vm1524, %v1927, %v2668
        %v2863 = vsel %vm1524, %v1935, %v2672
        %v2864 = vsel %vm1524, %v1937, %v2676
        %v2865 = vsel %vm1524, %v1920, %v2680
        %v2866 = vsel %vm1524, %v1934, %v2684
        %v2867 = vsel %vm1524, %v1936, %v2688
        %v2868 = vsel %vm1524, %v1938, %v2692
        %v2869 = vsel %vm1524, %v1962, %v2696
        %v2870 = vsel %vm1524, %v1976, %v2700
        %v2871 = vsel %vm1524, %v1984, %v2704
        %v2872 = vsel %vm1524, %v1986, %v2708
        %v2873 = vsel %vm1524, %v1969, %v2712
        %v2874 = vsel %vm1524, %v1983, %v2716
        %v2875 = vsel %vm1524, %v1985, %v2720
        %v2876 = vsel %vm1524, %v1987, %v2724
        %v2877 = vsel %vm1524, %v2011, %v2728
        %v2878 = vsel %vm1524, %v2025, %v2732
        %v2879 = vsel %vm1524, %v2033, %v2736
        %v2880 = vsel %vm1524, %v2035, %v2740
        %v2881 = vsel %vm1524, %v2018, %v2744
        %v2882 = vsel %vm1524, %v2032, %v2748
        %v2883 = vsel %vm1524, %v2034, %v2752
        %v2884 = vsel %vm1524, %v2036, %v2756
        %vm2885 = vcmask 130048
        %2886 = vst.msk [vmem:[#allocation2] sm:$0xff] %vm2885, 0.0
        %2887 = vst.msk [vmem:[#allocation2 + $0x8] sm:$0xff] %vm2885, 0.0
        %vm2888 = vcmask 123904
        %2889 = vst.msk [vmem:[#allocation2 + $0x10] sm:$0x3] %vm2888, 0.0
        %s2890 = scalar_lea.vmem [#allocation2], 408
        %2891 = vst.msk [vmem:[%s2890] sm:$0xff] %vm2885, 0.0
        %2892 = vst.msk [vmem:[%s2890 + $0x8] sm:$0xff] %vm2885, 0.0
        %2893 = vst.msk [vmem:[%s2890 + $0x10] sm:$0x3] %vm2888, 0.0
        %vm2894 = vcmask 122880
        %2895 = vst.msk [vmem:[#allocation2] sm:$0x1] %vm2894, 0.0
        %2896 = vst.msk [vmem:[#allocation2 + $0x18] sm:$0x1] %vm2894, 0.0
        %2897 = vst.msk [vmem:[#allocation2 + $0x30] sm:$0x1] %vm2894, 0.0
        %2898 = vst.msk [vmem:[#allocation2 + $0x48] sm:$0x1] %vm2894, 0.0
        %2899 = vst.msk [vmem:[#allocation2 + $0x60] sm:$0x1] %vm2894, 0.0
        %2900 = vst.msk [vmem:[#allocation2 + $0x78] sm:$0x1] %vm2894, 0.0
        %2901 = vst.msk [vmem:[#allocation2 + $0x90] sm:$0x1] %vm2894, 0.0
        %2902 = vst.msk [vmem:[#allocation2 + $0xa8] sm:$0x1] %vm2894, 0.0
        %2903 = vst.msk [vmem:[#allocation2 + $0xc0] sm:$0x1] %vm2894, 0.0
        %2904 = vst.msk [vmem:[#allocation2 + $0xd8] sm:$0x1] %vm2894, 0.0
        %2905 = vst.msk [vmem:[#allocation2 + $0xf0] sm:$0x1] %vm2894, 0.0
        %2906 = vst.msk [vmem:[#allocation2 + $0x108] sm:$0x1] %vm2894, 0.0
        %2907 = vst.msk [vmem:[#allocation2 + $0x120] sm:$0x1] %vm2894, 0.0
        %2908 = vst.msk [vmem:[#allocation2 + $0x138] sm:$0x1] %vm2894, 0.0
        %2909 = vst.msk [vmem:[#allocation2 + $0x150] sm:$0x1] %vm2894, 0.0
        %2910 = vst.msk [vmem:[#allocation2 + $0x168] sm:$0x1] %vm2894, 0.0
        %2911 = vst.msk [vmem:[#allocation2 + $0x180] sm:$0x1] %vm2894, 0.0
        %2912 = vst.msk [vmem:[#allocation2 + $0x198] sm:$0x1] %vm2894, 0.0
        %2913 = vst.msk [vmem:[#allocation2 + $0x11] sm:$0x1] %vm2894, 0.0
        %2914 = vst.msk [vmem:[#allocation2 + $0x29] sm:$0x1] %vm2894, 0.0
        %2915 = vst.msk [vmem:[#allocation2 + $0x41] sm:$0x1] %vm2894, 0.0
        %2916 = vst.msk [vmem:[#allocation2 + $0x59] sm:$0x1] %vm2894, 0.0
        %2917 = vst.msk [vmem:[#allocation2 + $0x71] sm:$0x1] %vm2894, 0.0
        %2918 = vst.msk [vmem:[#allocation2 + $0x89] sm:$0x1] %vm2894, 0.0
        %2919 = vst.msk [vmem:[#allocation2 + $0xa1] sm:$0x1] %vm2894, 0.0
        %2920 = vst.msk [vmem:[#allocation2 + $0xb9] sm:$0x1] %vm2894, 0.0
        %2921 = vst.msk [vmem:[#allocation2 + $0xd1] sm:$0x1] %vm2894, 0.0
        %2922 = vst.msk [vmem:[#allocation2 + $0xe9] sm:$0x1] %vm2894, 0.0
        %2923 = vst.msk [vmem:[#allocation2 + $0x101] sm:$0x1] %vm2894, 0.0
        %2924 = vst.msk [vmem:[#allocation2 + $0x119] sm:$0x1] %vm2894, 0.0
        %2925 = vst.msk [vmem:[#allocation2 + $0x131] sm:$0x1] %vm2894, 0.0
        %2926 = vst.msk [vmem:[#allocation2 + $0x149] sm:$0x1] %vm2894, 0.0
        %2927 = vst.msk [vmem:[#allocation2 + $0x161] sm:$0x1] %vm2894, 0.0
        %2928 = vst.msk [vmem:[#allocation2 + $0x179] sm:$0x1] %vm2894, 0.0
        %2929 = vst.msk [vmem:[#allocation2 + $0x191] sm:$0x1] %vm2894, 0.0
        %2930 = vst.msk [vmem:[#allocation2 + $0x1a9] sm:$0x1] %vm2894, 0.0
        %v3059 = vcombine.low %v1525, %v1526
        %v3060 = vcombine.low %v1527, %v1528
        %v3062 = vunpack.c.l.s4 1983009808
        %v3063 = vunpack.c.0.s8 %v3062
        %v3064 = vlaneseq
        %v3065 = vshrl.u32 %v3064, 7
        %v3066 = vsub.s32 %v3063, %v3065
        %v3067 = vrot.slane %v3059, %v3066
        %v3069 = vunpack.c.l.s4 1983009808
        %v3070 = vunpack.c.0.s8 %v3069
        %v3071 = vlaneseq
        %v3072 = vshrl.u32 %v3071, 7
        %v3073 = vsub.s32 %v3070, %v3072
        %v3074 = vrot.slane %v3060, %v3073
        %v3075 = vcombine.low %v3067, %v3074
        %v3076 = vcombine.low %v1529, %v1530
        %v3077 = vcombine.low %v1531, %v1532
        %v3079 = vunpack.c.l.s4 1983009808
        %v3080 = vunpack.c.0.s8 %v3079
        %v3081 = vlaneseq
        %v3082 = vshrl.u32 %v3081, 7
        %v3083 = vsub.s32 %v3080, %v3082
        %v3084 = vrot.slane %v3076, %v3083
        %v3086 = vunpack.c.l.s4 1983009808
        %v3087 = vunpack.c.0.s8 %v3086
        %v3088 = vlaneseq
        %v3089 = vshrl.u32 %v3088, 7
        %v3090 = vsub.s32 %v3087, %v3089
        %v3091 = vrot.slane %v3077, %v3090
        %v3092 = vcombine.low %v3084, %v3091
        %v3093 = vcombine.low %v2821, %v2822
        %v3094 = vcombine.low %v2823, %v2824
        %v3096 = vunpack.c.l.s4 1983009808
        %v3097 = vunpack.c.0.s8 %v3096
        %v3098 = vlaneseq
        %v3099 = vshrl.u32 %v3098, 7
        %v3100 = vsub.s32 %v3097, %v3099
        %v3101 = vrot.slane %v3093, %v3100
        %v3103 = vunpack.c.l.s4 1983009808
        %v3104 = vunpack.c.0.s8 %v3103
        %v3105 = vlaneseq
        %v3106 = vshrl.u32 %v3105, 7
        %v3107 = vsub.s32 %v3104, %v3106
        %v3108 = vrot.slane %v3094, %v3107
        %v3109 = vcombine.low %v3101, %v3108
        %v3110 = vcombine.low %v2825, %v2826
        %v3111 = vcombine.low %v2827, %v2828
        %v3113 = vunpack.c.l.s4 1983009808
        %v3114 = vunpack.c.0.s8 %v3113
        %v3115 = vlaneseq
        %v3116 = vshrl.u32 %v3115, 7
        %v3117 = vsub.s32 %v3114, %v3116
        %v3118 = vrot.slane %v3110, %v3117
        %v3120 = vunpack.c.l.s4 1983009808
        %v3121 = vunpack.c.0.s8 %v3120
        %v3122 = vlaneseq
        %v3123 = vshrl.u32 %v3122, 7
        %v3124 = vsub.s32 %v3121, %v3123
        %v3125 = vrot.slane %v3111, %v3124
        %v3126 = vcombine.low %v3118, %v3125
        %v3127 = vcombine.low %v1533, %v1534
        %v3128 = vcombine.low %v1535, %v1536
        %v3130 = vunpack.c.l.s4 1983009808
        %v3131 = vunpack.c.0.s8 %v3130
        %v3132 = vlaneseq
        %v3133 = vshrl.u32 %v3132, 7
        %v3134 = vsub.s32 %v3131, %v3133
        %v3135 = vrot.slane %v3127, %v3134
        %v3137 = vunpack.c.l.s4 1983009808
        %v3138 = vunpack.c.0.s8 %v3137
        %v3139 = vlaneseq
        %v3140 = vshrl.u32 %v3139, 7
        %v3141 = vsub.s32 %v3138, %v3140
        %v3142 = vrot.slane %v3128, %v3141
        %v3143 = vcombine.low %v3135, %v3142
        %v3144 = vcombine.low %v1537, %v1538
        %v3145 = vcombine.low %v1539, %v1540
        %v3147 = vunpack.c.l.s4 1983009808
        %v3148 = vunpack.c.0.s8 %v3147
        %v3149 = vlaneseq
        %v3150 = vshrl.u32 %v3149, 7
        %v3151 = vsub.s32 %v3148, %v3150
        %v3152 = vrot.slane %v3144, %v3151
        %v3154 = vunpack.c.l.s4 1983009808
        %v3155 = vunpack.c.0.s8 %v3154
        %v3156 = vlaneseq
        %v3157 = vshrl.u32 %v3156, 7
        %v3158 = vsub.s32 %v3155, %v3157
        %v3159 = vrot.slane %v3145, %v3158
        %v3160 = vcombine.low %v3152, %v3159
        %v3161 = vcombine.low %v2829, %v2830
        %v3162 = vcombine.low %v2831, %v2832
        %v3164 = vunpack.c.l.s4 1983009808
        %v3165 = vunpack.c.0.s8 %v3164
        %v3166 = vlaneseq
        %v3167 = vshrl.u32 %v3166, 7
        %v3168 = vsub.s32 %v3165, %v3167
        %v3169 = vrot.slane %v3161, %v3168
        %v3171 = vunpack.c.l.s4 1983009808
        %v3172 = vunpack.c.0.s8 %v3171
        %v3173 = vlaneseq
        %v3174 = vshrl.u32 %v3173, 7
        %v3175 = vsub.s32 %v3172, %v3174
        %v3176 = vrot.slane %v3162, %v3175
        %v3177 = vcombine.low %v3169, %v3176
        %v3178 = vcombine.low %v2833, %v2834
        %v3179 = vcombine.low %v2835, %v2836
        %v3181 = vunpack.c.l.s4 1983009808
        %v3182 = vunpack.c.0.s8 %v3181
        %v3183 = vlaneseq
        %v3184 = vshrl.u32 %v3183, 7
        %v3185 = vsub.s32 %v3182, %v3184
        %v3186 = vrot.slane %v3178, %v3185
        %v3188 = vunpack.c.l.s4 1983009808
        %v3189 = vunpack.c.0.s8 %v3188
        %v3190 = vlaneseq
        %v3191 = vshrl.u32 %v3190, 7
        %v3192 = vsub.s32 %v3189, %v3191
        %v3193 = vrot.slane %v3179, %v3192
        %v3194 = vcombine.low %v3186, %v3193
        %v3195 = vcombine.low %v1541, %v1542
        %v3196 = vcombine.low %v1543, %v1544
        %v3198 = vunpack.c.l.s4 1983009808
        %v3199 = vunpack.c.0.s8 %v3198
        %v3200 = vlaneseq
        %v3201 = vshrl.u32 %v3200, 7
        %v3202 = vsub.s32 %v3199, %v3201
        %v3203 = vrot.slane %v3195, %v3202
        %v3205 = vunpack.c.l.s4 1983009808
        %v3206 = vunpack.c.0.s8 %v3205
        %v3207 = vlaneseq
        %v3208 = vshrl.u32 %v3207, 7
        %v3209 = vsub.s32 %v3206, %v3208
        %v3210 = vrot.slane %v3196, %v3209
        %v3211 = vcombine.low %v3203, %v3210
        %v3212 = vcombine.low %v1545, %v1546
        %v3213 = vcombine.low %v1547, %v1548
        %v3215 = vunpack.c.l.s4 1983009808
        %v3216 = vunpack.c.0.s8 %v3215
        %v3217 = vlaneseq
        %v3218 = vshrl.u32 %v3217, 7
        %v3219 = vsub.s32 %v3216, %v3218
        %v3220 = vrot.slane %v3212, %v3219
        %v3222 = vunpack.c.l.s4 1983009808
        %v3223 = vunpack.c.0.s8 %v3222
        %v3224 = vlaneseq
        %v3225 = vshrl.u32 %v3224, 7
        %v3226 = vsub.s32 %v3223, %v3225
        %v3227 = vrot.slane %v3213, %v3226
        %v3228 = vcombine.low %v3220, %v3227
        %v3229 = vcombine.low %v2837, %v2838
        %v3230 = vcombine.low %v2839, %v2840
        %v3232 = vunpack.c.l.s4 1983009808
        %v3233 = vunpack.c.0.s8 %v3232
        %v3234 = vlaneseq
        %v3235 = vshrl.u32 %v3234, 7
        %v3236 = vsub.s32 %v3233, %v3235
        %v3237 = vrot.slane %v3229, %v3236
        %v3239 = vunpack.c.l.s4 1983009808
        %v3240 = vunpack.c.0.s8 %v3239
        %v3241 = vlaneseq
        %v3242 = vshrl.u32 %v3241, 7
        %v3243 = vsub.s32 %v3240, %v3242
        %v3244 = vrot.slane %v3230, %v3243
        %v3245 = vcombine.low %v3237, %v3244
        %v3246 = vcombine.low %v2841, %v2842
        %v3247 = vcombine.low %v2843, %v2844
        %v3249 = vunpack.c.l.s4 1983009808
        %v3250 = vunpack.c.0.s8 %v3249
        %v3251 = vlaneseq
        %v3252 = vshrl.u32 %v3251, 7
        %v3253 = vsub.s32 %v3250, %v3252
        %v3254 = vrot.slane %v3246, %v3253
        %v3256 = vunpack.c.l.s4 1983009808
        %v3257 = vunpack.c.0.s8 %v3256
        %v3258 = vlaneseq
        %v3259 = vshrl.u32 %v3258, 7
        %v3260 = vsub.s32 %v3257, %v3259
        %v3261 = vrot.slane %v3247, %v3260
        %v3262 = vcombine.low %v3254, %v3261
        %v3263 = vcombine.low %v1549, %v1550
        %v3264 = vcombine.low %v1551, %v1552
        %v3266 = vunpack.c.l.s4 1983009808
        %v3267 = vunpack.c.0.s8 %v3266
        %v3268 = vlaneseq
        %v3269 = vshrl.u32 %v3268, 7
        %v3270 = vsub.s32 %v3267, %v3269
        %v3271 = vrot.slane %v3263, %v3270
        %v3273 = vunpack.c.l.s4 1983009808
        %v3274 = vunpack.c.0.s8 %v3273
        %v3275 = vlaneseq
        %v3276 = vshrl.u32 %v3275, 7
        %v3277 = vsub.s32 %v3274, %v3276
        %v3278 = vrot.slane %v3264, %v3277
        %v3279 = vcombine.low %v3271, %v3278
        %v3280 = vcombine.low %v1553, %v1554
        %v3281 = vcombine.low %v1555, %v1556
        %v3283 = vunpack.c.l.s4 1983009808
        %v3284 = vunpack.c.0.s8 %v3283
        %v3285 = vlaneseq
        %v3286 = vshrl.u32 %v3285, 7
        %v3287 = vsub.s32 %v3284, %v3286
        %v3288 = vrot.slane %v3280, %v3287
        %v3290 = vunpack.c.l.s4 1983009808
        %v3291 = vunpack.c.0.s8 %v3290
        %v3292 = vlaneseq
        %v3293 = vshrl.u32 %v3292, 7
        %v3294 = vsub.s32 %v3291, %v3293
        %v3295 = vrot.slane %v3281, %v3294
        %v3296 = vcombine.low %v3288, %v3295
        %v3297 = vcombine.low %v2845, %v2846
        %v3298 = vcombine.low %v2847, %v2848
        %v3300 = vunpack.c.l.s4 1983009808
        %v3301 = vunpack.c.0.s8 %v3300
        %v3302 = vlaneseq
        %v3303 = vshrl.u32 %v3302, 7
        %v3304 = vsub.s32 %v3301, %v3303
        %v3305 = vrot.slane %v3297, %v3304
        %v3307 = vunpack.c.l.s4 1983009808
        %v3308 = vunpack.c.0.s8 %v3307
        %v3309 = vlaneseq
        %v3310 = vshrl.u32 %v3309, 7
        %v3311 = vsub.s32 %v3308, %v3310
        %v3312 = vrot.slane %v3298, %v3311
        %v3313 = vcombine.low %v3305, %v3312
        %v3314 = vcombine.low %v2849, %v2850
        %v3315 = vcombine.low %v2851, %v2852
        %v3317 = vunpack.c.l.s4 1983009808
        %v3318 = vunpack.c.0.s8 %v3317
        %v3319 = vlaneseq
        %v3320 = vshrl.u32 %v3319, 7
        %v3321 = vsub.s32 %v3318, %v3320
        %v3322 = vrot.slane %v3314, %v3321
        %v3324 = vunpack.c.l.s4 1983009808
        %v3325 = vunpack.c.0.s8 %v3324
        %v3326 = vlaneseq
        %v3327 = vshrl.u32 %v3326, 7
        %v3328 = vsub.s32 %v3325, %v3327
        %v3329 = vrot.slane %v3315, %v3328
        %v3330 = vcombine.low %v3322, %v3329
        %v3331 = vcombine.low %v1557, %v1558
        %v3332 = vcombine.low %v1559, %v1560
        %v3334 = vunpack.c.l.s4 1983009808
        %v3335 = vunpack.c.0.s8 %v3334
        %v3336 = vlaneseq
        %v3337 = vshrl.u32 %v3336, 7
        %v3338 = vsub.s32 %v3335, %v3337
        %v3339 = vrot.slane %v3331, %v3338
        %v3341 = vunpack.c.l.s4 1983009808
        %v3342 = vunpack.c.0.s8 %v3341
        %v3343 = vlaneseq
        %v3344 = vshrl.u32 %v3343, 7
        %v3345 = vsub.s32 %v3342, %v3344
        %v3346 = vrot.slane %v3332, %v3345
        %v3347 = vcombine.low %v3339, %v3346
        %v3348 = vcombine.low %v1561, %v1562
        %v3349 = vcombine.low %v1563, %v1564
        %v3351 = vunpack.c.l.s4 1983009808
        %v3352 = vunpack.c.0.s8 %v3351
        %v3353 = vlaneseq
        %v3354 = vshrl.u32 %v3353, 7
        %v3355 = vsub.s32 %v3352, %v3354
        %v3356 = vrot.slane %v3348, %v3355
        %v3358 = vunpack.c.l.s4 1983009808
        %v3359 = vunpack.c.0.s8 %v3358
        %v3360 = vlaneseq
        %v3361 = vshrl.u32 %v3360, 7
        %v3362 = vsub.s32 %v3359, %v3361
        %v3363 = vrot.slane %v3349, %v3362
        %v3364 = vcombine.low %v3356, %v3363
        %v3365 = vcombine.low %v2853, %v2854
        %v3366 = vcombine.low %v2855, %v2856
        %v3368 = vunpack.c.l.s4 1983009808
        %v3369 = vunpack.c.0.s8 %v3368
        %v3370 = vlaneseq
        %v3371 = vshrl.u32 %v3370, 7
        %v3372 = vsub.s32 %v3369, %v3371
        %v3373 = vrot.slane %v3365, %v3372
        %v3375 = vunpack.c.l.s4 1983009808
        %v3376 = vunpack.c.0.s8 %v3375
        %v3377 = vlaneseq
        %v3378 = vshrl.u32 %v3377, 7
        %v3379 = vsub.s32 %v3376, %v3378
        %v3380 = vrot.slane %v3366, %v3379
        %v3381 = vcombine.low %v3373, %v3380
        %v3382 = vcombine.low %v2857, %v2858
        %v3383 = vcombine.low %v2859, %v2860
        %v3385 = vunpack.c.l.s4 1983009808
        %v3386 = vunpack.c.0.s8 %v3385
        %v3387 = vlaneseq
        %v3388 = vshrl.u32 %v3387, 7
        %v3389 = vsub.s32 %v3386, %v3388
        %v3390 = vrot.slane %v3382, %v3389
        %v3392 = vunpack.c.l.s4 1983009808
        %v3393 = vunpack.c.0.s8 %v3392
        %v3394 = vlaneseq
        %v3395 = vshrl.u32 %v3394, 7
        %v3396 = vsub.s32 %v3393, %v3395
        %v3397 = vrot.slane %v3383, %v3396
        %v3398 = vcombine.low %v3390, %v3397
        %v3399 = vcombine.low %v1565, %v1566
        %v3400 = vcombine.low %v1567, %v1568
        %v3402 = vunpack.c.l.s4 1983009808
        %v3403 = vunpack.c.0.s8 %v3402
        %v3404 = vlaneseq
        %v3405 = vshrl.u32 %v3404, 7
        %v3406 = vsub.s32 %v3403, %v3405
        %v3407 = vrot.slane %v3399, %v3406
        %v3409 = vunpack.c.l.s4 1983009808
        %v3410 = vunpack.c.0.s8 %v3409
        %v3411 = vlaneseq
        %v3412 = vshrl.u32 %v3411, 7
        %v3413 = vsub.s32 %v3410, %v3412
        %v3414 = vrot.slane %v3400, %v3413
        %v3415 = vcombine.low %v3407, %v3414
        %v3416 = vcombine.low %v1569, %v1570
        %v3417 = vcombine.low %v1571, %v1572
        %v3419 = vunpack.c.l.s4 1983009808
        %v3420 = vunpack.c.0.s8 %v3419
        %v3421 = vlaneseq
        %v3422 = vshrl.u32 %v3421, 7
        %v3423 = vsub.s32 %v3420, %v3422
        %v3424 = vrot.slane %v3416, %v3423
        %v3426 = vunpack.c.l.s4 1983009808
        %v3427 = vunpack.c.0.s8 %v3426
        %v3428 = vlaneseq
        %v3429 = vshrl.u32 %v3428, 7
        %v3430 = vsub.s32 %v3427, %v3429
        %v3431 = vrot.slane %v3417, %v3430
        %v3432 = vcombine.low %v3424, %v3431
        %v3433 = vcombine.low %v2861, %v2862
        %v3434 = vcombine.low %v2863, %v2864
        %v3436 = vunpack.c.l.s4 1983009808
        %v3437 = vunpack.c.0.s8 %v3436
        %v3438 = vlaneseq
        %v3439 = vshrl.u32 %v3438, 7
        %v3440 = vsub.s32 %v3437, %v3439
        %v3441 = vrot.slane %v3433, %v3440
        %v3443 = vunpack.c.l.s4 1983009808
        %v3444 = vunpack.c.0.s8 %v3443
        %v3445 = vlaneseq
        %v3446 = vshrl.u32 %v3445, 7
        %v3447 = vsub.s32 %v3444, %v3446
        %v3448 = vrot.slane %v3434, %v3447
        %v3449 = vcombine.low %v3441, %v3448
        %v3450 = vcombine.low %v2865, %v2866
        %v3451 = vcombine.low %v2867, %v2868
        %v3453 = vunpack.c.l.s4 1983009808
        %v3454 = vunpack.c.0.s8 %v3453
        %v3455 = vlaneseq
        %v3456 = vshrl.u32 %v3455, 7
        %v3457 = vsub.s32 %v3454, %v3456
        %v3458 = vrot.slane %v3450, %v3457
        %v3460 = vunpack.c.l.s4 1983009808
        %v3461 = vunpack.c.0.s8 %v3460
        %v3462 = vlaneseq
        %v3463 = vshrl.u32 %v3462, 7
        %v3464 = vsub.s32 %v3461, %v3463
        %v3465 = vrot.slane %v3451, %v3464
        %v3466 = vcombine.low %v3458, %v3465
        %v3467 = vcombine.low %v1573, %v1574
        %v3468 = vcombine.low %v1575, %v1576
        %v3470 = vunpack.c.l.s4 1983009808
        %v3471 = vunpack.c.0.s8 %v3470
        %v3472 = vlaneseq
        %v3473 = vshrl.u32 %v3472, 7
        %v3474 = vsub.s32 %v3471, %v3473
        %v3475 = vrot.slane %v3467, %v3474
        %v3477 = vunpack.c.l.s4 1983009808
        %v3478 = vunpack.c.0.s8 %v3477
        %v3479 = vlaneseq
        %v3480 = vshrl.u32 %v3479, 7
        %v3481 = vsub.s32 %v3478, %v3480
        %v3482 = vrot.slane %v3468, %v3481
        %v3483 = vcombine.low %v3475, %v3482
        %v3484 = vcombine.low %v1577, %v1578
        %v3485 = vcombine.low %v1579, %v1580
        %v3487 = vunpack.c.l.s4 1983009808
        %v3488 = vunpack.c.0.s8 %v3487
        %v3489 = vlaneseq
        %v3490 = vshrl.u32 %v3489, 7
        %v3491 = vsub.s32 %v3488, %v3490
        %v3492 = vrot.slane %v3484, %v3491
        %v3494 = vunpack.c.l.s4 1983009808
        %v3495 = vunpack.c.0.s8 %v3494
        %v3496 = vlaneseq
        %v3497 = vshrl.u32 %v3496, 7
        %v3498 = vsub.s32 %v3495, %v3497
        %v3499 = vrot.slane %v3485, %v3498
        %v3500 = vcombine.low %v3492, %v3499
        %v3501 = vcombine.low %v2869, %v2870
        %v3502 = vcombine.low %v2871, %v2872
        %v3504 = vunpack.c.l.s4 1983009808
        %v3505 = vunpack.c.0.s8 %v3504
        %v3506 = vlaneseq
        %v3507 = vshrl.u32 %v3506, 7
        %v3508 = vsub.s32 %v3505, %v3507
        %v3509 = vrot.slane %v3501, %v3508
        %v3511 = vunpack.c.l.s4 1983009808
        %v3512 = vunpack.c.0.s8 %v3511
        %v3513 = vlaneseq
        %v3514 = vshrl.u32 %v3513, 7
        %v3515 = vsub.s32 %v3512, %v3514
        %v3516 = vrot.slane %v3502, %v3515
        %v3517 = vcombine.low %v3509, %v3516
        %v3518 = vcombine.low %v2873, %v2874
        %v3519 = vcombine.low %v2875, %v2876
        %v3521 = vunpack.c.l.s4 1983009808
        %v3522 = vunpack.c.0.s8 %v3521
        %v3523 = vlaneseq
        %v3524 = vshrl.u32 %v3523, 7
        %v3525 = vsub.s32 %v3522, %v3524
        %v3526 = vrot.slane %v3518, %v3525
        %v3528 = vunpack.c.l.s4 1983009808
        %v3529 = vunpack.c.0.s8 %v3528
        %v3530 = vlaneseq
        %v3531 = vshrl.u32 %v3530, 7
        %v3532 = vsub.s32 %v3529, %v3531
        %v3533 = vrot.slane %v3519, %v3532
        %v3534 = vcombine.low %v3526, %v3533
        %v3535 = vcombine.low %v1581, %v1582
        %v3536 = vcombine.low %v1583, %v1584
        %v3538 = vunpack.c.l.s4 1983009808
        %v3539 = vunpack.c.0.s8 %v3538
        %v3540 = vlaneseq
        %v3541 = vshrl.u32 %v3540, 7
        %v3542 = vsub.s32 %v3539, %v3541
        %v3543 = vrot.slane %v3535, %v3542
        %v3545 = vunpack.c.l.s4 1983009808
        %v3546 = vunpack.c.0.s8 %v3545
        %v3547 = vlaneseq
        %v3548 = vshrl.u32 %v3547, 7
        %v3549 = vsub.s32 %v3546, %v3548
        %v3550 = vrot.slane %v3536, %v3549
        %v3551 = vcombine.low %v3543, %v3550
        %v3552 = vcombine.low %v1585, %v1586
        %v3553 = vcombine.low %v1587, %v1588
        %v3555 = vunpack.c.l.s4 1983009808
        %v3556 = vunpack.c.0.s8 %v3555
        %v3557 = vlaneseq
        %v3558 = vshrl.u32 %v3557, 7
        %v3559 = vsub.s32 %v3556, %v3558
        %v3560 = vrot.slane %v3552, %v3559
        %v3562 = vunpack.c.l.s4 1983009808
        %v3563 = vunpack.c.0.s8 %v3562
        %v3564 = vlaneseq
        %v3565 = vshrl.u32 %v3564, 7
        %v3566 = vsub.s32 %v3563, %v3565
        %v3567 = vrot.slane %v3553, %v3566
        %v3568 = vcombine.low %v3560, %v3567
        %v3569 = vcombine.low %v2877, %v2878
        %v3570 = vcombine.low %v2879, %v2880
        %v3572 = vunpack.c.l.s4 1983009808
        %v3573 = vunpack.c.0.s8 %v3572
        %v3574 = vlaneseq
        %v3575 = vshrl.u32 %v3574, 7
        %v3576 = vsub.s32 %v3573, %v3575
        %v3577 = vrot.slane %v3569, %v3576
        %v3579 = vunpack.c.l.s4 1983009808
        %v3580 = vunpack.c.0.s8 %v3579
        %v3581 = vlaneseq
        %v3582 = vshrl.u32 %v3581, 7
        %v3583 = vsub.s32 %v3580, %v3582
        %v3584 = vrot.slane %v3570, %v3583
        %v3585 = vcombine.low %v3577, %v3584
        %v3586 = vcombine.low %v2881, %v2882
        %v3587 = vcombine.low %v2883, %v2884
        %v3589 = vunpack.c.l.s4 1983009808
        %v3590 = vunpack.c.0.s8 %v3589
        %v3591 = vlaneseq
        %v3592 = vshrl.u32 %v3591, 7
        %v3593 = vsub.s32 %v3590, %v3592
        %v3594 = vrot.slane %v3586, %v3593
        %v3596 = vunpack.c.l.s4 1983009808
        %v3597 = vunpack.c.0.s8 %v3596
        %v3598 = vlaneseq
        %v3599 = vshrl.u32 %v3598, 7
        %v3600 = vsub.s32 %v3597, %v3599
        %v3601 = vrot.slane %v3587, %v3600
        %v3602 = vcombine.low %v3594, %v3601
        %s3635 = scalar_lea.vmem [#allocation2], 24
        %3636 = vst.msk [vmem:[%s3635 + $0x1] sm:$0xff] %vm2885, %v3075
        %3637 = vst.msk [vmem:[%s3635 + $0x9] sm:$0xff] %vm2885, %v3092
        %3638 = vst.msk [vmem:[%s3635 + $0x19] sm:$0xff] %vm2885, %v3109
        %3639 = vst.msk [vmem:[%s3635 + $0x21] sm:$0xff] %vm2885, %v3126
        %3640 = vst.msk [vmem:[%s3635 + $0x31] sm:$0xff] %vm2885, %v3143
        %3641 = vst.msk [vmem:[%s3635 + $0x39] sm:$0xff] %vm2885, %v3160
        %3642 = vst.msk [vmem:[%s3635 + $0x49] sm:$0xff] %vm2885, %v3177
        %3643 = vst.msk [vmem:[%s3635 + $0x51] sm:$0xff] %vm2885, %v3194
        %3644 = vst.msk [vmem:[%s3635 + $0x61] sm:$0xff] %vm2885, %v3211
        %3645 = vst.msk [vmem:[%s3635 + $0x69] sm:$0xff] %vm2885, %v3228
        %3646 = vst.msk [vmem:[%s3635 + $0x79] sm:$0xff] %vm2885, %v3245
        %3647 = vst.msk [vmem:[%s3635 + $0x81] sm:$0xff] %vm2885, %v3262
        %3648 = vst.msk [vmem:[%s3635 + $0x91] sm:$0xff] %vm2885, %v3279
        %3649 = vst.msk [vmem:[%s3635 + $0x99] sm:$0xff] %vm2885, %v3296
        %3650 = vst.msk [vmem:[%s3635 + $0xa9] sm:$0xff] %vm2885, %v3313
        %3651 = vst.msk [vmem:[%s3635 + $0xb1] sm:$0xff] %vm2885, %v3330
        %3652 = vst.msk [vmem:[%s3635 + $0xc1] sm:$0xff] %vm2885, %v3347
        %3653 = vst.msk [vmem:[%s3635 + $0xc9] sm:$0xff] %vm2885, %v3364
        %3654 = vst.msk [vmem:[%s3635 + $0xd9] sm:$0xff] %vm2885, %v3381
        %3655 = vst.msk [vmem:[%s3635 + $0xe1] sm:$0xff] %vm2885, %v3398
        %3656 = vst.msk [vmem:[%s3635 + $0xf1] sm:$0xff] %vm2885, %v3415
        %3657 = vst.msk [vmem:[%s3635 + $0xf9] sm:$0xff] %vm2885, %v3432
        %3658 = vst.msk [vmem:[%s3635 + $0x109] sm:$0xff] %vm2885, %v3449
        %3659 = vst.msk [vmem:[%s3635 + $0x111] sm:$0xff] %vm2885, %v3466
        %3660 = vst.msk [vmem:[%s3635 + $0x121] sm:$0xff] %vm2885, %v3483
        %3661 = vst.msk [vmem:[%s3635 + $0x129] sm:$0xff] %vm2885, %v3500
        %3662 = vst.msk [vmem:[%s3635 + $0x139] sm:$0xff] %vm2885, %v3517
        %3663 = vst.msk [vmem:[%s3635 + $0x141] sm:$0xff] %vm2885, %v3534
        %3664 = vst.msk [vmem:[%s3635 + $0x151] sm:$0xff] %vm2885, %v3551
        %3665 = vst.msk [vmem:[%s3635 + $0x159] sm:$0xff] %vm2885, %v3568
        %3666 = vst.msk [vmem:[%s3635 + $0x169] sm:$0xff] %vm2885, %v3585
        %3667 = vst.msk [vmem:[%s3635 + $0x171] sm:$0xff] %vm2885, %v3602
        %v3668 = vld [vmem:[#allocation2] sm:$0xff]
        %v3669 = vld [vmem:[#allocation2 + $0x8] sm:$0xff]
        %v3670 = vld [vmem:[#allocation2 + $0x18] sm:$0xff]
        %v3671 = vld [vmem:[#allocation2 + $0x20] sm:$0xff]
        %v3672 = vld [vmem:[#allocation2 + $0x30] sm:$0xff]
        %v3673 = vld [vmem:[#allocation2 + $0x38] sm:$0xff]
        %v3674 = vld [vmem:[#allocation2 + $0x48] sm:$0xff]
        %v3675 = vld [vmem:[#allocation2 + $0x50] sm:$0xff]
        %v3676 = vld [vmem:[#allocation2 + $0x60] sm:$0xff]
        %v3677 = vld [vmem:[#allocation2 + $0x68] sm:$0xff]
        %v3678 = vld [vmem:[#allocation2 + $0x78] sm:$0xff]
        %v3679 = vld [vmem:[#allocation2 + $0x80] sm:$0xff]
        %v3680 = vld [vmem:[#allocation2 + $0x90] sm:$0xff]
        %v3681 = vld [vmem:[#allocation2 + $0x98] sm:$0xff]
        %v3682 = vld [vmem:[#allocation2 + $0xa8] sm:$0xff]
        %v3683 = vld [vmem:[#allocation2 + $0xb0] sm:$0xff]
        %v3684 = vld [vmem:[#allocation2 + $0xc0] sm:$0xff]
        %v3685 = vld [vmem:[#allocation2 + $0xc8] sm:$0xff]
        %v3686 = vld [vmem:[#allocation2 + $0xd8] sm:$0xff]
        %v3687 = vld [vmem:[#allocation2 + $0xe0] sm:$0xff]
        %v3688 = vld [vmem:[#allocation2 + $0xf0] sm:$0xff]
        %v3689 = vld [vmem:[#allocation2 + $0xf8] sm:$0xff]
        %v3690 = vld [vmem:[#allocation2 + $0x108] sm:$0xff]
        %v3691 = vld [vmem:[#allocation2 + $0x110] sm:$0xff]
        %v3692 = vld [vmem:[#allocation2 + $0x120] sm:$0xff]
        %v3693 = vld [vmem:[#allocation2 + $0x128] sm:$0xff]
        %v3694 = vld [vmem:[#allocation2 + $0x138] sm:$0xff]
        %v3695 = vld [vmem:[#allocation2 + $0x140] sm:$0xff]
        %v3696 = vld [vmem:[#allocation2 + $0x150] sm:$0xff]
        %v3697 = vld [vmem:[#allocation2 + $0x158] sm:$0xff]
        %v3698 = vld [vmem:[#allocation2 + $0x168] sm:$0xff]
        %v3699 = vld [vmem:[#allocation2 + $0x170] sm:$0xff]
        %v3700 = vld [vmem:[#allocation2 + $0x1] sm:$0xff]
        %v3701 = vld [vmem:[#allocation2 + $0x9] sm:$0xff]
        %v3702 = vld [vmem:[#allocation2 + $0x19] sm:$0xff]
        %v3703 = vld [vmem:[#allocation2 + $0x21] sm:$0xff]
        %v3704 = vld [vmem:[#allocation2 + $0x31] sm:$0xff]
        %v3705 = vld [vmem:[#allocation2 + $0x39] sm:$0xff]
        %v3706 = vld [vmem:[#allocation2 + $0x49] sm:$0xff]
        %v3707 = vld [vmem:[#allocation2 + $0x51] sm:$0xff]
        %v3708 = vld [vmem:[#allocation2 + $0x61] sm:$0xff]
        %v3709 = vld [vmem:[#allocation2 + $0x69] sm:$0xff]
        %v3710 = vld [vmem:[#allocation2 + $0x79] sm:$0xff]
        %v3711 = vld [vmem:[#allocation2 + $0x81] sm:$0xff]
        %v3712 = vld [vmem:[#allocation2 + $0x91] sm:$0xff]
        %v3713 = vld [vmem:[#allocation2 + $0x99] sm:$0xff]
        %v3714 = vld [vmem:[#allocation2 + $0xa9] sm:$0xff]
        %v3715 = vld [vmem:[#allocation2 + $0xb1] sm:$0xff]
        %v3716 = vld [vmem:[#allocation2 + $0xc1] sm:$0xff]
        %v3717 = vld [vmem:[#allocation2 + $0xc9] sm:$0xff]
        %v3718 = vld [vmem:[#allocation2 + $0xd9] sm:$0xff]
        %v3719 = vld [vmem:[#allocation2 + $0xe1] sm:$0xff]
        %v3720 = vld [vmem:[#allocation2 + $0xf1] sm:$0xff]
        %v3721 = vld [vmem:[#allocation2 + $0xf9] sm:$0xff]
        %v3722 = vld [vmem:[#allocation2 + $0x109] sm:$0xff]
        %v3723 = vld [vmem:[#allocation2 + $0x111] sm:$0xff]
        %v3724 = vld [vmem:[#allocation2 + $0x121] sm:$0xff]
        %v3725 = vld [vmem:[#allocation2 + $0x129] sm:$0xff]
        %v3726 = vld [vmem:[#allocation2 + $0x139] sm:$0xff]
        %v3727 = vld [vmem:[#allocation2 + $0x141] sm:$0xff]
        %v3728 = vld [vmem:[#allocation2 + $0x151] sm:$0xff]
        %v3729 = vld [vmem:[#allocation2 + $0x159] sm:$0xff]
        %v3730 = vld [vmem:[#allocation2 + $0x169] sm:$0xff]
        %v3731 = vld [vmem:[#allocation2 + $0x171] sm:$0xff]
        %v3732 = vld [vmem:[#allocation2 + $0x2] sm:$0xff]
        %v3733 = vld [vmem:[#allocation2 + $0xa] sm:$0xff]
        %v3734 = vld [vmem:[#allocation2 + $0x1a] sm:$0xff]
        %v3735 = vld [vmem:[#allocation2 + $0x22] sm:$0xff]
        %v3736 = vld [vmem:[#allocation2 + $0x32] sm:$0xff]
        %v3737 = vld [vmem:[#allocation2 + $0x3a] sm:$0xff]
        %v3738 = vld [vmem:[#allocation2 + $0x4a] sm:$0xff]
        %v3739 = vld [vmem:[#allocation2 + $0x52] sm:$0xff]
        %v3740 = vld [vmem:[#allocation2 + $0x62] sm:$0xff]
        %v3741 = vld [vmem:[#allocation2 + $0x6a] sm:$0xff]
        %v3742 = vld [vmem:[#allocation2 + $0x7a] sm:$0xff]
        %v3743 = vld [vmem:[#allocation2 + $0x82] sm:$0xff]
        %v3744 = vld [vmem:[#allocation2 + $0x92] sm:$0xff]
        %v3745 = vld [vmem:[#allocation2 + $0x9a] sm:$0xff]
        %v3746 = vld [vmem:[#allocation2 + $0xaa] sm:$0xff]
        %v3747 = vld [vmem:[#allocation2 + $0xb2] sm:$0xff]
        %v3748 = vld [vmem:[#allocation2 + $0xc2] sm:$0xff]
        %v3749 = vld [vmem:[#allocation2 + $0xca] sm:$0xff]
        %v3750 = vld [vmem:[#allocation2 + $0xda] sm:$0xff]
        %v3751 = vld [vmem:[#allocation2 + $0xe2] sm:$0xff]
        %v3752 = vld [vmem:[#allocation2 + $0xf2] sm:$0xff]
        %v3753 = vld [vmem:[#allocation2 + $0xfa] sm:$0xff]
        %v3754 = vld [vmem:[#allocation2 + $0x10a] sm:$0xff]
        %v3755 = vld [vmem:[#allocation2 + $0x112] sm:$0xff]
        %v3756 = vld [vmem:[#allocation2 + $0x122] sm:$0xff]
        %v3757 = vld [vmem:[#allocation2 + $0x12a] sm:$0xff]
        %v3758 = vld [vmem:[#allocation2 + $0x13a] sm:$0xff]
        %v3759 = vld [vmem:[#allocation2 + $0x142] sm:$0xff]
        %v3760 = vld [vmem:[#allocation2 + $0x152] sm:$0xff]
        %v3761 = vld [vmem:[#allocation2 + $0x15a] sm:$0xff]
        %v3762 = vld [vmem:[#allocation2 + $0x16a] sm:$0xff]
        %v3763 = vld [vmem:[#allocation2 + $0x172] sm:$0xff]
        %v3764 = vld [vmem:[%s3635] sm:$0xff]
        %v3765 = vld [vmem:[%s3635 + $0x8] sm:$0xff]
        %v3766 = vld [vmem:[%s3635 + $0x18] sm:$0xff]
        %v3767 = vld [vmem:[%s3635 + $0x20] sm:$0xff]
        %v3768 = vld [vmem:[%s3635 + $0x30] sm:$0xff]
        %v3769 = vld [vmem:[%s3635 + $0x38] sm:$0xff]
        %v3770 = vld [vmem:[%s3635 + $0x48] sm:$0xff]
        %v3771 = vld [vmem:[%s3635 + $0x50] sm:$0xff]
        %v3772 = vld [vmem:[%s3635 + $0x60] sm:$0xff]
        %v3773 = vld [vmem:[%s3635 + $0x68] sm:$0xff]
        %v3774 = vld [vmem:[%s3635 + $0x78] sm:$0xff]
        %v3775 = vld [vmem:[%s3635 + $0x80] sm:$0xff]
        %v3776 = vld [vmem:[%s3635 + $0x90] sm:$0xff]
        %v3777 = vld [vmem:[%s3635 + $0x98] sm:$0xff]
        %v3778 = vld [vmem:[%s3635 + $0xa8] sm:$0xff]
        %v3779 = vld [vmem:[%s3635 + $0xb0] sm:$0xff]
        %v3780 = vld [vmem:[%s3635 + $0xc0] sm:$0xff]
        %v3781 = vld [vmem:[%s3635 + $0xc8] sm:$0xff]
        %v3782 = vld [vmem:[%s3635 + $0xd8] sm:$0xff]
        %v3783 = vld [vmem:[%s3635 + $0xe0] sm:$0xff]
        %v3784 = vld [vmem:[%s3635 + $0xf0] sm:$0xff]
        %v3785 = vld [vmem:[%s3635 + $0xf8] sm:$0xff]
        %v3786 = vld [vmem:[%s3635 + $0x108] sm:$0xff]
        %v3787 = vld [vmem:[%s3635 + $0x110] sm:$0xff]
        %v3788 = vld [vmem:[%s3635 + $0x120] sm:$0xff]
        %v3789 = vld [vmem:[%s3635 + $0x128] sm:$0xff]
        %v3790 = vld [vmem:[%s3635 + $0x138] sm:$0xff]
        %v3791 = vld [vmem:[%s3635 + $0x140] sm:$0xff]
        %v3792 = vld [vmem:[%s3635 + $0x150] sm:$0xff]
        %v3793 = vld [vmem:[%s3635 + $0x158] sm:$0xff]
        %v3794 = vld [vmem:[%s3635 + $0x168] sm:$0xff]
        %v3795 = vld [vmem:[%s3635 + $0x170] sm:$0xff]
        %v3796 = vld [vmem:[%s3635 + $0x1] sm:$0xff]
        %v3797 = vld [vmem:[%s3635 + $0x9] sm:$0xff]
        %v3798 = vld [vmem:[%s3635 + $0x19] sm:$0xff]
        %v3799 = vld [vmem:[%s3635 + $0x21] sm:$0xff]
        %v3800 = vld [vmem:[%s3635 + $0x31] sm:$0xff]
        %v3801 = vld [vmem:[%s3635 + $0x39] sm:$0xff]
        %v3802 = vld [vmem:[%s3635 + $0x49] sm:$0xff]
        %v3803 = vld [vmem:[%s3635 + $0x51] sm:$0xff]
        %v3804 = vld [vmem:[%s3635 + $0x61] sm:$0xff]
        %v3805 = vld [vmem:[%s3635 + $0x69] sm:$0xff]
        %v3806 = vld [vmem:[%s3635 + $0x79] sm:$0xff]
        %v3807 = vld [vmem:[%s3635 + $0x81] sm:$0xff]
        %v3808 = vld [vmem:[%s3635 + $0x91] sm:$0xff]
        %v3809 = vld [vmem:[%s3635 + $0x99] sm:$0xff]
        %v3810 = vld [vmem:[%s3635 + $0xa9] sm:$0xff]
        %v3811 = vld [vmem:[%s3635 + $0xb1] sm:$0xff]
        %v3812 = vld [vmem:[%s3635 + $0xc1] sm:$0xff]
        %v3813 = vld [vmem:[%s3635 + $0xc9] sm:$0xff]
        %v3814 = vld [vmem:[%s3635 + $0xd9] sm:$0xff]
        %v3815 = vld [vmem:[%s3635 + $0xe1] sm:$0xff]
        %v3816 = vld [vmem:[%s3635 + $0xf1] sm:$0xff]
        %v3817 = vld [vmem:[%s3635 + $0xf9] sm:$0xff]
        %v3818 = vld [vmem:[%s3635 + $0x109] sm:$0xff]
        %v3819 = vld [vmem:[%s3635 + $0x111] sm:$0xff]
        %v3820 = vld [vmem:[%s3635 + $0x121] sm:$0xff]
        %v3821 = vld [vmem:[%s3635 + $0x129] sm:$0xff]
        %v3822 = vld [vmem:[%s3635 + $0x139] sm:$0xff]
        %v3823 = vld [vmem:[%s3635 + $0x141] sm:$0xff]
        %v3824 = vld [vmem:[%s3635 + $0x151] sm:$0xff]
        %v3825 = vld [vmem:[%s3635 + $0x159] sm:$0xff]
        %v3826 = vld [vmem:[%s3635 + $0x169] sm:$0xff]
        %v3827 = vld [vmem:[%s3635 + $0x171] sm:$0xff]
        %v3828 = vld [vmem:[%s3635 + $0x2] sm:$0xff]
        %v3829 = vld [vmem:[%s3635 + $0xa] sm:$0xff]
        %v3830 = vld [vmem:[%s3635 + $0x1a] sm:$0xff]
        %v3831 = vld [vmem:[%s3635 + $0x22] sm:$0xff]
        %v3832 = vld [vmem:[%s3635 + $0x32] sm:$0xff]
        %v3833 = vld [vmem:[%s3635 + $0x3a] sm:$0xff]
        %v3834 = vld [vmem:[%s3635 + $0x4a] sm:$0xff]
        %v3835 = vld [vmem:[%s3635 + $0x52] sm:$0xff]
        %v3836 = vld [vmem:[%s3635 + $0x62] sm:$0xff]
        %v3837 = vld [vmem:[%s3635 + $0x6a] sm:$0xff]
        %v3838 = vld [vmem:[%s3635 + $0x7a] sm:$0xff]
        %v3839 = vld [vmem:[%s3635 + $0x82] sm:$0xff]
        %v3840 = vld [vmem:[%s3635 + $0x92] sm:$0xff]
        %v3841 = vld [vmem:[%s3635 + $0x9a] sm:$0xff]
        %v3842 = vld [vmem:[%s3635 + $0xaa] sm:$0xff]
        %v3843 = vld [vmem:[%s3635 + $0xb2] sm:$0xff]
        %v3844 = vld [vmem:[%s3635 + $0xc2] sm:$0xff]
        %v3845 = vld [vmem:[%s3635 + $0xca] sm:$0xff]
        %v3846 = vld [vmem:[%s3635 + $0xda] sm:$0xff]
        %v3847 = vld [vmem:[%s3635 + $0xe2] sm:$0xff]
        %v3848 = vld [vmem:[%s3635 + $0xf2] sm:$0xff]
        %v3849 = vld [vmem:[%s3635 + $0xfa] sm:$0xff]
        %v3850 = vld [vmem:[%s3635 + $0x10a] sm:$0xff]
        %v3851 = vld [vmem:[%s3635 + $0x112] sm:$0xff]
        %v3852 = vld [vmem:[%s3635 + $0x122] sm:$0xff]
        %v3853 = vld [vmem:[%s3635 + $0x12a] sm:$0xff]
        %v3854 = vld [vmem:[%s3635 + $0x13a] sm:$0xff]
        %v3855 = vld [vmem:[%s3635 + $0x142] sm:$0xff]
        %v3856 = vld [vmem:[%s3635 + $0x152] sm:$0xff]
        %v3857 = vld [vmem:[%s3635 + $0x15a] sm:$0xff]
        %v3858 = vld [vmem:[%s3635 + $0x16a] sm:$0xff]
        %v3859 = vld [vmem:[%s3635 + $0x172] sm:$0xff]
        %s3860 = scalar_lea.vmem [#allocation2], 48
        %v3861 = vld [vmem:[%s3860] sm:$0xff]
        %v3862 = vld [vmem:[%s3860 + $0x8] sm:$0xff]
        %v3863 = vld [vmem:[%s3860 + $0x18] sm:$0xff]
        %v3864 = vld [vmem:[%s3860 + $0x20] sm:$0xff]
        %v3865 = vld [vmem:[%s3860 + $0x30] sm:$0xff]
        %v3866 = vld [vmem:[%s3860 + $0x38] sm:$0xff]
        %v3867 = vld [vmem:[%s3860 + $0x48] sm:$0xff]
        %v3868 = vld [vmem:[%s3860 + $0x50] sm:$0xff]
        %v3869 = vld [vmem:[%s3860 + $0x60] sm:$0xff]
        %v3870 = vld [vmem:[%s3860 + $0x68] sm:$0xff]
        %v3871 = vld [vmem:[%s3860 + $0x78] sm:$0xff]
        %v3872 = vld [vmem:[%s3860 + $0x80] sm:$0xff]
        %v3873 = vld [vmem:[%s3860 + $0x90] sm:$0xff]
        %v3874 = vld [vmem:[%s3860 + $0x98] sm:$0xff]
        %v3875 = vld [vmem:[%s3860 + $0xa8] sm:$0xff]
        %v3876 = vld [vmem:[%s3860 + $0xb0] sm:$0xff]
        %v3877 = vld [vmem:[%s3860 + $0xc0] sm:$0xff]
        %v3878 = vld [vmem:[%s3860 + $0xc8] sm:$0xff]
        %v3879 = vld [vmem:[%s3860 + $0xd8] sm:$0xff]
        %v3880 = vld [vmem:[%s3860 + $0xe0] sm:$0xff]
        %v3881 = vld [vmem:[%s3860 + $0xf0] sm:$0xff]
        %v3882 = vld [vmem:[%s3860 + $0xf8] sm:$0xff]
        %v3883 = vld [vmem:[%s3860 + $0x108] sm:$0xff]
        %v3884 = vld [vmem:[%s3860 + $0x110] sm:$0xff]
        %v3885 = vld [vmem:[%s3860 + $0x120] sm:$0xff]
        %v3886 = vld [vmem:[%s3860 + $0x128] sm:$0xff]
        %v3887 = vld [vmem:[%s3860 + $0x138] sm:$0xff]
        %v3888 = vld [vmem:[%s3860 + $0x140] sm:$0xff]
        %v3889 = vld [vmem:[%s3860 + $0x150] sm:$0xff]
        %v3890 = vld [vmem:[%s3860 + $0x158] sm:$0xff]
        %v3891 = vld [vmem:[%s3860 + $0x168] sm:$0xff]
        %v3892 = vld [vmem:[%s3860 + $0x170] sm:$0xff]
        %v3893 = vld [vmem:[%s3860 + $0x1] sm:$0xff]
        %v3894 = vld [vmem:[%s3860 + $0x9] sm:$0xff]
        %v3895 = vld [vmem:[%s3860 + $0x19] sm:$0xff]
        %v3896 = vld [vmem:[%s3860 + $0x21] sm:$0xff]
        %v3897 = vld [vmem:[%s3860 + $0x31] sm:$0xff]
        %v3898 = vld [vmem:[%s3860 + $0x39] sm:$0xff]
        %v3899 = vld [vmem:[%s3860 + $0x49] sm:$0xff]
        %v3900 = vld [vmem:[%s3860 + $0x51] sm:$0xff]
        %v3901 = vld [vmem:[%s3860 + $0x61] sm:$0xff]
        %v3902 = vld [vmem:[%s3860 + $0x69] sm:$0xff]
        %v3903 = vld [vmem:[%s3860 + $0x79] sm:$0xff]
        %v3904 = vld [vmem:[%s3860 + $0x81] sm:$0xff]
        %v3905 = vld [vmem:[%s3860 + $0x91] sm:$0xff]
        %v3906 = vld [vmem:[%s3860 + $0x99] sm:$0xff]
        %v3907 = vld [vmem:[%s3860 + $0xa9] sm:$0xff]
        %v3908 = vld [vmem:[%s3860 + $0xb1] sm:$0xff]
        %v3909 = vld [vmem:[%s3860 + $0xc1] sm:$0xff]
        %v3910 = vld [vmem:[%s3860 + $0xc9] sm:$0xff]
        %v3911 = vld [vmem:[%s3860 + $0xd9] sm:$0xff]
        %v3912 = vld [vmem:[%s3860 + $0xe1] sm:$0xff]
        %v3913 = vld [vmem:[%s3860 + $0xf1] sm:$0xff]
        %v3914 = vld [vmem:[%s3860 + $0xf9] sm:$0xff]
        %v3915 = vld [vmem:[%s3860 + $0x109] sm:$0xff]
        %v3916 = vld [vmem:[%s3860 + $0x111] sm:$0xff]
        %v3917 = vld [vmem:[%s3860 + $0x121] sm:$0xff]
        %v3918 = vld [vmem:[%s3860 + $0x129] sm:$0xff]
        %v3919 = vld [vmem:[%s3860 + $0x139] sm:$0xff]
        %v3920 = vld [vmem:[%s3860 + $0x141] sm:$0xff]
        %v3921 = vld [vmem:[%s3860 + $0x151] sm:$0xff]
        %v3922 = vld [vmem:[%s3860 + $0x159] sm:$0xff]
        %v3923 = vld [vmem:[%s3860 + $0x169] sm:$0xff]
        %v3924 = vld [vmem:[%s3860 + $0x171] sm:$0xff]
        %v3925 = vld [vmem:[%s3860 + $0x2] sm:$0xff]
        %v3926 = vld [vmem:[%s3860 + $0xa] sm:$0xff]
        %v3927 = vld [vmem:[%s3860 + $0x1a] sm:$0xff]
        %v3928 = vld [vmem:[%s3860 + $0x22] sm:$0xff]
        %v3929 = vld [vmem:[%s3860 + $0x32] sm:$0xff]
        %v3930 = vld [vmem:[%s3860 + $0x3a] sm:$0xff]
        %v3931 = vld [vmem:[%s3860 + $0x4a] sm:$0xff]
        %v3932 = vld [vmem:[%s3860 + $0x52] sm:$0xff]
        %v3933 = vld [vmem:[%s3860 + $0x62] sm:$0xff]
        %v3934 = vld [vmem:[%s3860 + $0x6a] sm:$0xff]
        %v3935 = vld [vmem:[%s3860 + $0x7a] sm:$0xff]
        %v3936 = vld [vmem:[%s3860 + $0x82] sm:$0xff]
        %v3937 = vld [vmem:[%s3860 + $0x92] sm:$0xff]
        %v3938 = vld [vmem:[%s3860 + $0x9a] sm:$0xff]
        %v3939 = vld [vmem:[%s3860 + $0xaa] sm:$0xff]
        %v3940 = vld [vmem:[%s3860 + $0xb2] sm:$0xff]
        %v3941 = vld [vmem:[%s3860 + $0xc2] sm:$0xff]
        %v3942 = vld [vmem:[%s3860 + $0xca] sm:$0xff]
        %v3943 = vld [vmem:[%s3860 + $0xda] sm:$0xff]
        %v3944 = vld [vmem:[%s3860 + $0xe2] sm:$0xff]
        %v3945 = vld [vmem:[%s3860 + $0xf2] sm:$0xff]
        %v3946 = vld [vmem:[%s3860 + $0xfa] sm:$0xff]
        %v3947 = vld [vmem:[%s3860 + $0x10a] sm:$0xff]
        %v3948 = vld [vmem:[%s3860 + $0x112] sm:$0xff]
        %v3949 = vld [vmem:[%s3860 + $0x122] sm:$0xff]
        %v3950 = vld [vmem:[%s3860 + $0x12a] sm:$0xff]
        %v3951 = vld [vmem:[%s3860 + $0x13a] sm:$0xff]
        %v3952 = vld [vmem:[%s3860 + $0x142] sm:$0xff]
        %v3953 = vld [vmem:[%s3860 + $0x152] sm:$0xff]
        %v3954 = vld [vmem:[%s3860 + $0x15a] sm:$0xff]
        %v3955 = vld [vmem:[%s3860 + $0x16a] sm:$0xff]
        %v3956 = vld [vmem:[%s3860 + $0x172] sm:$0xff]
        %3989 = vrot.lane.b32.xlu0 %v3700, 16
        %v3990 = vpop.permute.xlu0 %3989
        %3991 = vrot.lane.b32.xlu0 %v3701, 16
        %v3992 = vpop.permute.xlu0 %3991
        %3993 = vrot.lane.b32.xlu0 %v3702, 16
        %v3994 = vpop.permute.xlu0 %3993
        %3995 = vrot.lane.b32.xlu0 %v3703, 16
        %v3996 = vpop.permute.xlu0 %3995
        %3997 = vrot.lane.b32.xlu0 %v3704, 16
        %v3998 = vpop.permute.xlu0 %3997
        %3999 = vrot.lane.b32.xlu0 %v3705, 16
        %v4000 = vpop.permute.xlu0 %3999
        %4001 = vrot.lane.b32.xlu0 %v3706, 16
        %v4002 = vpop.permute.xlu0 %4001
        %4003 = vrot.lane.b32.xlu0 %v3707, 16
        %v4004 = vpop.permute.xlu0 %4003
        %4005 = vrot.lane.b32.xlu0 %v3708, 16
        %v4006 = vpop.permute.xlu0 %4005
        %4007 = vrot.lane.b32.xlu0 %v3709, 16
        %v4008 = vpop.permute.xlu0 %4007
        %4009 = vrot.lane.b32.xlu0 %v3710, 16
        %v4010 = vpop.permute.xlu0 %4009
        %4011 = vrot.lane.b32.xlu0 %v3711, 16
        %v4012 = vpop.permute.xlu0 %4011
        %4013 = vrot.lane.b32.xlu0 %v3712, 16
        %v4014 = vpop.permute.xlu0 %4013
        %4015 = vrot.lane.b32.xlu0 %v3713, 16
        %v4016 = vpop.permute.xlu0 %4015
        %4017 = vrot.lane.b32.xlu0 %v3714, 16
        %v4018 = vpop.permute.xlu0 %4017
        %4019 = vrot.lane.b32.xlu0 %v3715, 16
        %v4020 = vpop.permute.xlu0 %4019
        %4021 = vrot.lane.b32.xlu0 %v3716, 16
        %v4022 = vpop.permute.xlu0 %4021
        %4023 = vrot.lane.b32.xlu0 %v3717, 16
        %v4024 = vpop.permute.xlu0 %4023
        %4025 = vrot.lane.b32.xlu0 %v3718, 16
        %v4026 = vpop.permute.xlu0 %4025
        %4027 = vrot.lane.b32.xlu0 %v3719, 16
        %v4028 = vpop.permute.xlu0 %4027
        %4029 = vrot.lane.b32.xlu0 %v3720, 16
        %v4030 = vpop.permute.xlu0 %4029
        %4031 = vrot.lane.b32.xlu0 %v3721, 16
        %v4032 = vpop.permute.xlu0 %4031
        %4033 = vrot.lane.b32.xlu0 %v3722, 16
        %v4034 = vpop.permute.xlu0 %4033
        %4035 = vrot.lane.b32.xlu0 %v3723, 16
        %v4036 = vpop.permute.xlu0 %4035
        %4037 = vrot.lane.b32.xlu0 %v3724, 16
        %v4038 = vpop.permute.xlu0 %4037
        %4039 = vrot.lane.b32.xlu0 %v3725, 16
        %v4040 = vpop.permute.xlu0 %4039
        %4041 = vrot.lane.b32.xlu0 %v3726, 16
        %v4042 = vpop.permute.xlu0 %4041
        %4043 = vrot.lane.b32.xlu0 %v3727, 16
        %v4044 = vpop.permute.xlu0 %4043
        %4045 = vrot.lane.b32.xlu0 %v3728, 16
        %v4046 = vpop.permute.xlu0 %4045
        %4047 = vrot.lane.b32.xlu0 %v3729, 16
        %v4048 = vpop.permute.xlu0 %4047
        %4049 = vrot.lane.b32.xlu0 %v3730, 16
        %v4050 = vpop.permute.xlu0 %4049
        %4051 = vrot.lane.b32.xlu0 %v3731, 16
        %v4052 = vpop.permute.xlu0 %4051
        %4117 = vrot.lane.b32.xlu0 %v3732, 32
        %v4118 = vpop.permute.xlu0 %4117
        %4119 = vrot.lane.b32.xlu0 %v3733, 32
        %v4120 = vpop.permute.xlu0 %4119
        %4121 = vrot.lane.b32.xlu0 %v3734, 32
        %v4122 = vpop.permute.xlu0 %4121
        %4123 = vrot.lane.b32.xlu0 %v3735, 32
        %v4124 = vpop.permute.xlu0 %4123
        %4125 = vrot.lane.b32.xlu0 %v3736, 32
        %v4126 = vpop.permute.xlu0 %4125
        %4127 = vrot.lane.b32.xlu0 %v3737, 32
        %v4128 = vpop.permute.xlu0 %4127
        %4129 = vrot.lane.b32.xlu0 %v3738, 32
        %v4130 = vpop.permute.xlu0 %4129
        %4131 = vrot.lane.b32.xlu0 %v3739, 32
        %v4132 = vpop.permute.xlu0 %4131
        %4133 = vrot.lane.b32.xlu0 %v3740, 32
        %v4134 = vpop.permute.xlu0 %4133
        %4135 = vrot.lane.b32.xlu0 %v3741, 32
        %v4136 = vpop.permute.xlu0 %4135
        %4137 = vrot.lane.b32.xlu0 %v3742, 32
        %v4138 = vpop.permute.xlu0 %4137
        %4139 = vrot.lane.b32.xlu0 %v3743, 32
        %v4140 = vpop.permute.xlu0 %4139
        %4141 = vrot.lane.b32.xlu0 %v3744, 32
        %v4142 = vpop.permute.xlu0 %4141
        %4143 = vrot.lane.b32.xlu0 %v3745, 32
        %v4144 = vpop.permute.xlu0 %4143
        %4145 = vrot.lane.b32.xlu0 %v3746, 32
        %v4146 = vpop.permute.xlu0 %4145
        %4147 = vrot.lane.b32.xlu0 %v3747, 32
        %v4148 = vpop.permute.xlu0 %4147
        %4149 = vrot.lane.b32.xlu0 %v3748, 32
        %v4150 = vpop.permute.xlu0 %4149
        %4151 = vrot.lane.b32.xlu0 %v3749, 32
        %v4152 = vpop.permute.xlu0 %4151
        %4153 = vrot.lane.b32.xlu0 %v3750, 32
        %v4154 = vpop.permute.xlu0 %4153
        %4155 = vrot.lane.b32.xlu0 %v3751, 32
        %v4156 = vpop.permute.xlu0 %4155
        %4157 = vrot.lane.b32.xlu0 %v3752, 32
        %v4158 = vpop.permute.xlu0 %4157
        %4159 = vrot.lane.b32.xlu0 %v3753, 32
        %v4160 = vpop.permute.xlu0 %4159
        %4161 = vrot.lane.b32.xlu0 %v3754, 32
        %v4162 = vpop.permute.xlu0 %4161
        %4163 = vrot.lane.b32.xlu0 %v3755, 32
        %v4164 = vpop.permute.xlu0 %4163
        %4165 = vrot.lane.b32.xlu0 %v3756, 32
        %v4166 = vpop.permute.xlu0 %4165
        %4167 = vrot.lane.b32.xlu0 %v3757, 32
        %v4168 = vpop.permute.xlu0 %4167
        %4169 = vrot.lane.b32.xlu0 %v3758, 32
        %v4170 = vpop.permute.xlu0 %4169
        %4171 = vrot.lane.b32.xlu0 %v3759, 32
        %v4172 = vpop.permute.xlu0 %4171
        %4173 = vrot.lane.b32.xlu0 %v3760, 32
        %v4174 = vpop.permute.xlu0 %4173
        %4175 = vrot.lane.b32.xlu0 %v3761, 32
        %v4176 = vpop.permute.xlu0 %4175
        %4177 = vrot.lane.b32.xlu0 %v3762, 32
        %v4178 = vpop.permute.xlu0 %4177
        %4179 = vrot.lane.b32.xlu0 %v3763, 32
        %v4180 = vpop.permute.xlu0 %4179
        %4245 = vrot.lane.b32.xlu0 %v3764, 48
        %v4246 = vpop.permute.xlu0 %4245
        %4247 = vrot.lane.b32.xlu0 %v3765, 48
        %v4248 = vpop.permute.xlu0 %4247
        %4249 = vrot.lane.b32.xlu0 %v3766, 48
        %v4250 = vpop.permute.xlu0 %4249
        %4251 = vrot.lane.b32.xlu0 %v3767, 48
        %v4252 = vpop.permute.xlu0 %4251
        %4253 = vrot.lane.b32.xlu0 %v3768, 48
        %v4254 = vpop.permute.xlu0 %4253
        %4255 = vrot.lane.b32.xlu0 %v3769, 48
        %v4256 = vpop.permute.xlu0 %4255
        %4257 = vrot.lane.b32.xlu0 %v3770, 48
        %v4258 = vpop.permute.xlu0 %4257
        %4259 = vrot.lane.b32.xlu0 %v3771, 48
        %v4260 = vpop.permute.xlu0 %4259
        %4261 = vrot.lane.b32.xlu0 %v3772, 48
        %v4262 = vpop.permute.xlu0 %4261
        %4263 = vrot.lane.b32.xlu0 %v3773, 48
        %v4264 = vpop.permute.xlu0 %4263
        %4265 = vrot.lane.b32.xlu0 %v3774, 48
        %v4266 = vpop.permute.xlu0 %4265
        %4267 = vrot.lane.b32.xlu0 %v3775, 48
        %v4268 = vpop.permute.xlu0 %4267
        %4269 = vrot.lane.b32.xlu0 %v3776, 48
        %v4270 = vpop.permute.xlu0 %4269
        %4271 = vrot.lane.b32.xlu0 %v3777, 48
        %v4272 = vpop.permute.xlu0 %4271
        %4273 = vrot.lane.b32.xlu0 %v3778, 48
        %v4274 = vpop.permute.xlu0 %4273
        %4275 = vrot.lane.b32.xlu0 %v3779, 48
        %v4276 = vpop.permute.xlu0 %4275
        %4277 = vrot.lane.b32.xlu0 %v3780, 48
        %v4278 = vpop.permute.xlu0 %4277
        %4279 = vrot.lane.b32.xlu0 %v3781, 48
        %v4280 = vpop.permute.xlu0 %4279
        %4281 = vrot.lane.b32.xlu0 %v3782, 48
        %v4282 = vpop.permute.xlu0 %4281
        %4283 = vrot.lane.b32.xlu0 %v3783, 48
        %v4284 = vpop.permute.xlu0 %4283
        %4285 = vrot.lane.b32.xlu0 %v3784, 48
        %v4286 = vpop.permute.xlu0 %4285
        %4287 = vrot.lane.b32.xlu0 %v3785, 48
        %v4288 = vpop.permute.xlu0 %4287
        %4289 = vrot.lane.b32.xlu0 %v3786, 48
        %v4290 = vpop.permute.xlu0 %4289
        %4291 = vrot.lane.b32.xlu0 %v3787, 48
        %v4292 = vpop.permute.xlu0 %4291
        %4293 = vrot.lane.b32.xlu0 %v3788, 48
        %v4294 = vpop.permute.xlu0 %4293
        %4295 = vrot.lane.b32.xlu0 %v3789, 48
        %v4296 = vpop.permute.xlu0 %4295
        %4297 = vrot.lane.b32.xlu0 %v3790, 48
        %v4298 = vpop.permute.xlu0 %4297
        %4299 = vrot.lane.b32.xlu0 %v3791, 48
        %v4300 = vpop.permute.xlu0 %4299
        %4301 = vrot.lane.b32.xlu0 %v3792, 48
        %v4302 = vpop.permute.xlu0 %4301
        %4303 = vrot.lane.b32.xlu0 %v3793, 48
        %v4304 = vpop.permute.xlu0 %4303
        %4305 = vrot.lane.b32.xlu0 %v3794, 48
        %v4306 = vpop.permute.xlu0 %4305
        %4307 = vrot.lane.b32.xlu0 %v3795, 48
        %v4308 = vpop.permute.xlu0 %4307
        %4373 = vrot.lane.b32.xlu0 %v3796, 64
        %v4374 = vpop.permute.xlu0 %4373
        %4375 = vrot.lane.b32.xlu0 %v3797, 64
        %v4376 = vpop.permute.xlu0 %4375
        %4377 = vrot.lane.b32.xlu0 %v3798, 64
        %v4378 = vpop.permute.xlu0 %4377
        %4379 = vrot.lane.b32.xlu0 %v3799, 64
        %v4380 = vpop.permute.xlu0 %4379
        %4381 = vrot.lane.b32.xlu0 %v3800, 64
        %v4382 = vpop.permute.xlu0 %4381
        %4383 = vrot.lane.b32.xlu0 %v3801, 64
        %v4384 = vpop.permute.xlu0 %4383
        %4385 = vrot.lane.b32.xlu0 %v3802, 64
        %v4386 = vpop.permute.xlu0 %4385
        %4387 = vrot.lane.b32.xlu0 %v3803, 64
        %v4388 = vpop.permute.xlu0 %4387
        %4389 = vrot.lane.b32.xlu0 %v3804, 64
        %v4390 = vpop.permute.xlu0 %4389
        %4391 = vrot.lane.b32.xlu0 %v3805, 64
        %v4392 = vpop.permute.xlu0 %4391
        %4393 = vrot.lane.b32.xlu0 %v3806, 64
        %v4394 = vpop.permute.xlu0 %4393
        %4395 = vrot.lane.b32.xlu0 %v3807, 64
        %v4396 = vpop.permute.xlu0 %4395
        %4397 = vrot.lane.b32.xlu0 %v3808, 64
        %v4398 = vpop.permute.xlu0 %4397
        %4399 = vrot.lane.b32.xlu0 %v3809, 64
        %v4400 = vpop.permute.xlu0 %4399
        %4401 = vrot.lane.b32.xlu0 %v3810, 64
        %v4402 = vpop.permute.xlu0 %4401
        %4403 = vrot.lane.b32.xlu0 %v3811, 64
        %v4404 = vpop.permute.xlu0 %4403
        %4405 = vrot.lane.b32.xlu0 %v3812, 64
        %v4406 = vpop.permute.xlu0 %4405
        %4407 = vrot.lane.b32.xlu0 %v3813, 64
        %v4408 = vpop.permute.xlu0 %4407
        %4409 = vrot.lane.b32.xlu0 %v3814, 64
        %v4410 = vpop.permute.xlu0 %4409
        %4411 = vrot.lane.b32.xlu0 %v3815, 64
        %v4412 = vpop.permute.xlu0 %4411
        %4413 = vrot.lane.b32.xlu0 %v3816, 64
        %v4414 = vpop.permute.xlu0 %4413
        %4415 = vrot.lane.b32.xlu0 %v3817, 64
        %v4416 = vpop.permute.xlu0 %4415
        %4417 = vrot.lane.b32.xlu0 %v3818, 64
        %v4418 = vpop.permute.xlu0 %4417
        %4419 = vrot.lane.b32.xlu0 %v3819, 64
        %v4420 = vpop.permute.xlu0 %4419
        %4421 = vrot.lane.b32.xlu0 %v3820, 64
        %v4422 = vpop.permute.xlu0 %4421
        %4423 = vrot.lane.b32.xlu0 %v3821, 64
        %v4424 = vpop.permute.xlu0 %4423
        %4425 = vrot.lane.b32.xlu0 %v3822, 64
        %v4426 = vpop.permute.xlu0 %4425
        %4427 = vrot.lane.b32.xlu0 %v3823, 64
        %v4428 = vpop.permute.xlu0 %4427
        %4429 = vrot.lane.b32.xlu0 %v3824, 64
        %v4430 = vpop.permute.xlu0 %4429
        %4431 = vrot.lane.b32.xlu0 %v3825, 64
        %v4432 = vpop.permute.xlu0 %4431
        %4433 = vrot.lane.b32.xlu0 %v3826, 64
        %v4434 = vpop.permute.xlu0 %4433
        %4435 = vrot.lane.b32.xlu0 %v3827, 64
        %v4436 = vpop.permute.xlu0 %4435
        %4501 = vrot.lane.b32.xlu0 %v3828, 80
        %v4502 = vpop.permute.xlu0 %4501
        %4503 = vrot.lane.b32.xlu0 %v3829, 80
        %v4504 = vpop.permute.xlu0 %4503
        %4505 = vrot.lane.b32.xlu0 %v3830, 80
        %v4506 = vpop.permute.xlu0 %4505
        %4507 = vrot.lane.b32.xlu0 %v3831, 80
        %v4508 = vpop.permute.xlu0 %4507
        %4509 = vrot.lane.b32.xlu0 %v3832, 80
        %v4510 = vpop.permute.xlu0 %4509
        %4511 = vrot.lane.b32.xlu0 %v3833, 80
        %v4512 = vpop.permute.xlu0 %4511
        %4513 = vrot.lane.b32.xlu0 %v3834, 80
        %v4514 = vpop.permute.xlu0 %4513
        %4515 = vrot.lane.b32.xlu0 %v3835, 80
        %v4516 = vpop.permute.xlu0 %4515
        %4517 = vrot.lane.b32.xlu0 %v3836, 80
        %v4518 = vpop.permute.xlu0 %4517
        %4519 = vrot.lane.b32.xlu0 %v3837, 80
        %v4520 = vpop.permute.xlu0 %4519
        %4521 = vrot.lane.b32.xlu0 %v3838, 80
        %v4522 = vpop.permute.xlu0 %4521
        %4523 = vrot.lane.b32.xlu0 %v3839, 80
        %v4524 = vpop.permute.xlu0 %4523
        %4525 = vrot.lane.b32.xlu0 %v3840, 80
        %v4526 = vpop.permute.xlu0 %4525
        %4527 = vrot.lane.b32.xlu0 %v3841, 80
        %v4528 = vpop.permute.xlu0 %4527
        %4529 = vrot.lane.b32.xlu0 %v3842, 80
        %v4530 = vpop.permute.xlu0 %4529
        %4531 = vrot.lane.b32.xlu0 %v3843, 80
        %v4532 = vpop.permute.xlu0 %4531
        %4533 = vrot.lane.b32.xlu0 %v3844, 80
        %v4534 = vpop.permute.xlu0 %4533
        %4535 = vrot.lane.b32.xlu0 %v3845, 80
        %v4536 = vpop.permute.xlu0 %4535
        %4537 = vrot.lane.b32.xlu0 %v3846, 80
        %v4538 = vpop.permute.xlu0 %4537
        %4539 = vrot.lane.b32.xlu0 %v3847, 80
        %v4540 = vpop.permute.xlu0 %4539
        %4541 = vrot.lane.b32.xlu0 %v3848, 80
        %v4542 = vpop.permute.xlu0 %4541
        %4543 = vrot.lane.b32.xlu0 %v3849, 80
        %v4544 = vpop.permute.xlu0 %4543
        %4545 = vrot.lane.b32.xlu0 %v3850, 80
        %v4546 = vpop.permute.xlu0 %4545
        %4547 = vrot.lane.b32.xlu0 %v3851, 80
        %v4548 = vpop.permute.xlu0 %4547
        %4549 = vrot.lane.b32.xlu0 %v3852, 80
        %v4550 = vpop.permute.xlu0 %4549
        %4551 = vrot.lane.b32.xlu0 %v3853, 80
        %v4552 = vpop.permute.xlu0 %4551
        %4553 = vrot.lane.b32.xlu0 %v3854, 80
        %v4554 = vpop.permute.xlu0 %4553
        %4555 = vrot.lane.b32.xlu0 %v3855, 80
        %v4556 = vpop.permute.xlu0 %4555
        %4557 = vrot.lane.b32.xlu0 %v3856, 80
        %v4558 = vpop.permute.xlu0 %4557
        %4559 = vrot.lane.b32.xlu0 %v3857, 80
        %v4560 = vpop.permute.xlu0 %4559
        %4561 = vrot.lane.b32.xlu0 %v3858, 80
        %v4562 = vpop.permute.xlu0 %4561
        %4563 = vrot.lane.b32.xlu0 %v3859, 80
        %v4564 = vpop.permute.xlu0 %4563
        %4629 = vrot.lane.b32.xlu0 %v3861, 96
        %v4630 = vpop.permute.xlu0 %4629
        %4631 = vrot.lane.b32.xlu0 %v3862, 96
        %v4632 = vpop.permute.xlu0 %4631
        %4633 = vrot.lane.b32.xlu0 %v3863, 96
        %v4634 = vpop.permute.xlu0 %4633
        %4635 = vrot.lane.b32.xlu0 %v3864, 96
        %v4636 = vpop.permute.xlu0 %4635
        %4637 = vrot.lane.b32.xlu0 %v3865, 96
        %v4638 = vpop.permute.xlu0 %4637
        %4639 = vrot.lane.b32.xlu0 %v3866, 96
        %v4640 = vpop.permute.xlu0 %4639
        %4641 = vrot.lane.b32.xlu0 %v3867, 96
        %v4642 = vpop.permute.xlu0 %4641
        %4643 = vrot.lane.b32.xlu0 %v3868, 96
        %v4644 = vpop.permute.xlu0 %4643
        %4645 = vrot.lane.b32.xlu0 %v3869, 96
        %v4646 = vpop.permute.xlu0 %4645
        %4647 = vrot.lane.b32.xlu0 %v3870, 96
        %v4648 = vpop.permute.xlu0 %4647
        %4649 = vrot.lane.b32.xlu0 %v3871, 96
        %v4650 = vpop.permute.xlu0 %4649
        %4651 = vrot.lane.b32.xlu0 %v3872, 96
        %v4652 = vpop.permute.xlu0 %4651
        %4653 = vrot.lane.b32.xlu0 %v3873, 96
        %v4654 = vpop.permute.xlu0 %4653
        %4655 = vrot.lane.b32.xlu0 %v3874, 96
        %v4656 = vpop.permute.xlu0 %4655
        %4657 = vrot.lane.b32.xlu0 %v3875, 96
        %v4658 = vpop.permute.xlu0 %4657
        %4659 = vrot.lane.b32.xlu0 %v3876, 96
        %v4660 = vpop.permute.xlu0 %4659
        %4661 = vrot.lane.b32.xlu0 %v3877, 96
        %v4662 = vpop.permute.xlu0 %4661
        %4663 = vrot.lane.b32.xlu0 %v3878, 96
        %v4664 = vpop.permute.xlu0 %4663
        %4665 = vrot.lane.b32.xlu0 %v3879, 96
        %v4666 = vpop.permute.xlu0 %4665
        %4667 = vrot.lane.b32.xlu0 %v3880, 96
        %v4668 = vpop.permute.xlu0 %4667
        %4669 = vrot.lane.b32.xlu0 %v3881, 96
        %v4670 = vpop.permute.xlu0 %4669
        %4671 = vrot.lane.b32.xlu0 %v3882, 96
        %v4672 = vpop.permute.xlu0 %4671
        %4673 = vrot.lane.b32.xlu0 %v3883, 96
        %v4674 = vpop.permute.xlu0 %4673
        %4675 = vrot.lane.b32.xlu0 %v3884, 96
        %v4676 = vpop.permute.xlu0 %4675
        %4677 = vrot.lane.b32.xlu0 %v3885, 96
        %v4678 = vpop.permute.xlu0 %4677
        %4679 = vrot.lane.b32.xlu0 %v3886, 96
        %v4680 = vpop.permute.xlu0 %4679
        %4681 = vrot.lane.b32.xlu0 %v3887, 96
        %v4682 = vpop.permute.xlu0 %4681
        %4683 = vrot.lane.b32.xlu0 %v3888, 96
        %v4684 = vpop.permute.xlu0 %4683
        %4685 = vrot.lane.b32.xlu0 %v3889, 96
        %v4686 = vpop.permute.xlu0 %4685
        %4687 = vrot.lane.b32.xlu0 %v3890, 96
        %v4688 = vpop.permute.xlu0 %4687
        %4689 = vrot.lane.b32.xlu0 %v3891, 96
        %v4690 = vpop.permute.xlu0 %4689
        %4691 = vrot.lane.b32.xlu0 %v3892, 96
        %v4692 = vpop.permute.xlu0 %4691
        %4757 = vrot.lane.b32.xlu0 %v3893, 112
        %v4758 = vpop.permute.xlu0 %4757
        %4759 = vrot.lane.b32.xlu0 %v3894, 112
        %v4760 = vpop.permute.xlu0 %4759
        %4761 = vrot.lane.b32.xlu0 %v3895, 112
        %v4762 = vpop.permute.xlu0 %4761
        %4763 = vrot.lane.b32.xlu0 %v3896, 112
        %v4764 = vpop.permute.xlu0 %4763
        %4765 = vrot.lane.b32.xlu0 %v3897, 112
        %v4766 = vpop.permute.xlu0 %4765
        %4767 = vrot.lane.b32.xlu0 %v3898, 112
        %v4768 = vpop.permute.xlu0 %4767
        %4769 = vrot.lane.b32.xlu0 %v3899, 112
        %v4770 = vpop.permute.xlu0 %4769
        %4771 = vrot.lane.b32.xlu0 %v3900, 112
        %v4772 = vpop.permute.xlu0 %4771
        %4773 = vrot.lane.b32.xlu0 %v3901, 112
        %v4774 = vpop.permute.xlu0 %4773
        %4775 = vrot.lane.b32.xlu0 %v3902, 112
        %v4776 = vpop.permute.xlu0 %4775
        %4777 = vrot.lane.b32.xlu0 %v3903, 112
        %v4778 = vpop.permute.xlu0 %4777
        %4779 = vrot.lane.b32.xlu0 %v3904, 112
        %v4780 = vpop.permute.xlu0 %4779
        %4781 = vrot.lane.b32.xlu0 %v3905, 112
        %v4782 = vpop.permute.xlu0 %4781
        %4783 = vrot.lane.b32.xlu0 %v3906, 112
        %v4784 = vpop.permute.xlu0 %4783
        %4785 = vrot.lane.b32.xlu0 %v3907, 112
        %v4786 = vpop.permute.xlu0 %4785
        %4787 = vrot.lane.b32.xlu0 %v3908, 112
        %v4788 = vpop.permute.xlu0 %4787
        %4789 = vrot.lane.b32.xlu0 %v3909, 112
        %v4790 = vpop.permute.xlu0 %4789
        %4791 = vrot.lane.b32.xlu0 %v3910, 112
        %v4792 = vpop.permute.xlu0 %4791
        %4793 = vrot.lane.b32.xlu0 %v3911, 112
        %v4794 = vpop.permute.xlu0 %4793
        %4795 = vrot.lane.b32.xlu0 %v3912, 112
        %v4796 = vpop.permute.xlu0 %4795
        %4797 = vrot.lane.b32.xlu0 %v3913, 112
        %v4798 = vpop.permute.xlu0 %4797
        %4799 = vrot.lane.b32.xlu0 %v3914, 112
        %v4800 = vpop.permute.xlu0 %4799
        %4801 = vrot.lane.b32.xlu0 %v3915, 112
        %v4802 = vpop.permute.xlu0 %4801
        %4803 = vrot.lane.b32.xlu0 %v3916, 112
        %v4804 = vpop.permute.xlu0 %4803
        %4805 = vrot.lane.b32.xlu0 %v3917, 112
        %v4806 = vpop.permute.xlu0 %4805
        %4807 = vrot.lane.b32.xlu0 %v3918, 112
        %v4808 = vpop.permute.xlu0 %4807
        %4809 = vrot.lane.b32.xlu0 %v3919, 112
        %v4810 = vpop.permute.xlu0 %4809
        %4811 = vrot.lane.b32.xlu0 %v3920, 112
        %v4812 = vpop.permute.xlu0 %4811
        %4813 = vrot.lane.b32.xlu0 %v3921, 112
        %v4814 = vpop.permute.xlu0 %4813
        %4815 = vrot.lane.b32.xlu0 %v3922, 112
        %v4816 = vpop.permute.xlu0 %4815
        %4817 = vrot.lane.b32.xlu0 %v3923, 112
        %v4818 = vpop.permute.xlu0 %4817
        %4819 = vrot.lane.b32.xlu0 %v3924, 112
        %v4820 = vpop.permute.xlu0 %4819
        %v4853 = vsel %vm2885, %v3668, %v3990
        %v4854 = vsel %vm2885, %v3669, %v3992
        %v4855 = vsel %vm2885, %v3670, %v3994
        %v4856 = vsel %vm2885, %v3671, %v3996
        %v4857 = vsel %vm2885, %v3672, %v3998
        %v4858 = vsel %vm2885, %v3673, %v4000
        %v4859 = vsel %vm2885, %v3674, %v4002
        %v4860 = vsel %vm2885, %v3675, %v4004
        %v4861 = vsel %vm2885, %v3676, %v4006
        %v4862 = vsel %vm2885, %v3677, %v4008
        %v4863 = vsel %vm2885, %v3678, %v4010
        %v4864 = vsel %vm2885, %v3679, %v4012
        %v4865 = vsel %vm2885, %v3680, %v4014
        %v4866 = vsel %vm2885, %v3681, %v4016
        %v4867 = vsel %vm2885, %v3682, %v4018
        %v4868 = vsel %vm2885, %v3683, %v4020
        %v4869 = vsel %vm2885, %v3684, %v4022
        %v4870 = vsel %vm2885, %v3685, %v4024
        %v4871 = vsel %vm2885, %v3686, %v4026
        %v4872 = vsel %vm2885, %v3687, %v4028
        %v4873 = vsel %vm2885, %v3688, %v4030
        %v4874 = vsel %vm2885, %v3689, %v4032
        %v4875 = vsel %vm2885, %v3690, %v4034
        %v4876 = vsel %vm2885, %v3691, %v4036
        %v4877 = vsel %vm2885, %v3692, %v4038
        %v4878 = vsel %vm2885, %v3693, %v4040
        %v4879 = vsel %vm2885, %v3694, %v4042
        %v4880 = vsel %vm2885, %v3695, %v4044
        %v4881 = vsel %vm2885, %v3696, %v4046
        %v4882 = vsel %vm2885, %v3697, %v4048
        %v4883 = vsel %vm2885, %v3698, %v4050
        %v4884 = vsel %vm2885, %v3699, %v4052
        %vm4885 = vcmask 261120
        %v4886 = vsel %vm4885, %v4853, %v4118
        %v4887 = vsel %vm4885, %v4854, %v4120
        %v4888 = vsel %vm4885, %v4855, %v4122
        %v4889 = vsel %vm4885, %v4856, %v4124
        %v4890 = vsel %vm4885, %v4857, %v4126
        %v4891 = vsel %vm4885, %v4858, %v4128
        %v4892 = vsel %vm4885, %v4859, %v4130
        %v4893 = vsel %vm4885, %v4860, %v4132
        %v4894 = vsel %vm4885, %v4861, %v4134
        %v4895 = vsel %vm4885, %v4862, %v4136
        %v4896 = vsel %vm4885, %v4863, %v4138
        %v4897 = vsel %vm4885, %v4864, %v4140
        %v4898 = vsel %vm4885, %v4865, %v4142
        %v4899 = vsel %vm4885, %v4866, %v4144
        %v4900 = vsel %vm4885, %v4867, %v4146
        %v4901 = vsel %vm4885, %v4868, %v4148
        %v4902 = vsel %vm4885, %v4869, %v4150
        %v4903 = vsel %vm4885, %v4870, %v4152
        %v4904 = vsel %vm4885, %v4871, %v4154
        %v4905 = vsel %vm4885, %v4872, %v4156
        %v4906 = vsel %vm4885, %v4873, %v4158
        %v4907 = vsel %vm4885, %v4874, %v4160
        %v4908 = vsel %vm4885, %v4875, %v4162
        %v4909 = vsel %vm4885, %v4876, %v4164
        %v4910 = vsel %vm4885, %v4877, %v4166
        %v4911 = vsel %vm4885, %v4878, %v4168
        %v4912 = vsel %vm4885, %v4879, %v4170
        %v4913 = vsel %vm4885, %v4880, %v4172
        %v4914 = vsel %vm4885, %v4881, %v4174
        %v4915 = vsel %vm4885, %v4882, %v4176
        %v4916 = vsel %vm4885, %v4883, %v4178
        %v4917 = vsel %vm4885, %v4884, %v4180
        %vm4918 = vcmask 392192
        %v4919 = vsel %vm4918, %v4886, %v4246
        %v4920 = vsel %vm4918, %v4887, %v4248
        %v4921 = vsel %vm4918, %v4888, %v4250
        %v4922 = vsel %vm4918, %v4889, %v4252
        %v4923 = vsel %vm4918, %v4890, %v4254
        %v4924 = vsel %vm4918, %v4891, %v4256
        %v4925 = vsel %vm4918, %v4892, %v4258
        %v4926 = vsel %vm4918, %v4893, %v4260
        %v4927 = vsel %vm4918, %v4894, %v4262
        %v4928 = vsel %vm4918, %v4895, %v4264
        %v4929 = vsel %vm4918, %v4896, %v4266
        %v4930 = vsel %vm4918, %v4897, %v4268
        %v4931 = vsel %vm4918, %v4898, %v4270
        %v4932 = vsel %vm4918, %v4899, %v4272
        %v4933 = vsel %vm4918, %v4900, %v4274
        %v4934 = vsel %vm4918, %v4901, %v4276
        %v4935 = vsel %vm4918, %v4902, %v4278
        %v4936 = vsel %vm4918, %v4903, %v4280
        %v4937 = vsel %vm4918, %v4904, %v4282
        %v4938 = vsel %vm4918, %v4905, %v4284
        %v4939 = vsel %vm4918, %v4906, %v4286
        %v4940 = vsel %vm4918, %v4907, %v4288
        %v4941 = vsel %vm4918, %v4908, %v4290
        %v4942 = vsel %vm4918, %v4909, %v4292
        %v4943 = vsel %vm4918, %v4910, %v4294
        %v4944 = vsel %vm4918, %v4911, %v4296
        %v4945 = vsel %vm4918, %v4912, %v4298
        %v4946 = vsel %vm4918, %v4913, %v4300
        %v4947 = vsel %vm4918, %v4914, %v4302
        %v4948 = vsel %vm4918, %v4915, %v4304
        %v4949 = vsel %vm4918, %v4916, %v4306
        %v4950 = vsel %vm4918, %v4917, %v4308
        %vm4951 = vcmask 523264
        %v4952 = vsel %vm4951, %v4919, %v4374
        %v4953 = vsel %vm4951, %v4920, %v4376
        %v4954 = vsel %vm4951, %v4921, %v4378
        %v4955 = vsel %vm4951, %v4922, %v4380
        %v4956 = vsel %vm4951, %v4923, %v4382
        %v4957 = vsel %vm4951, %v4924, %v4384
        %v4958 = vsel %vm4951, %v4925, %v4386
        %v4959 = vsel %vm4951, %v4926, %v4388
        %v4960 = vsel %vm4951, %v4927, %v4390
        %v4961 = vsel %vm4951, %v4928, %v4392
        %v4962 = vsel %vm4951, %v4929, %v4394
        %v4963 = vsel %vm4951, %v4930, %v4396
        %v4964 = vsel %vm4951, %v4931, %v4398
        %v4965 = vsel %vm4951, %v4932, %v4400
        %v4966 = vsel %vm4951, %v4933, %v4402
        %v4967 = vsel %vm4951, %v4934, %v4404
        %v4968 = vsel %vm4951, %v4935, %v4406
        %v4969 = vsel %vm4951, %v4936, %v4408
        %v4970 = vsel %vm4951, %v4937, %v4410
        %v4971 = vsel %vm4951, %v4938, %v4412
        %v4972 = vsel %vm4951, %v4939, %v4414
        %v4973 = vsel %vm4951, %v4940, %v4416
        %v4974 = vsel %vm4951, %v4941, %v4418
        %v4975 = vsel %vm4951, %v4942, %v4420
        %v4976 = vsel %vm4951, %v4943, %v4422
        %v4977 = vsel %vm4951, %v4944, %v4424
        %v4978 = vsel %vm4951, %v4945, %v4426
        %v4979 = vsel %vm4951, %v4946, %v4428
        %v4980 = vsel %vm4951, %v4947, %v4430
        %v4981 = vsel %vm4951, %v4948, %v4432
        %v4982 = vsel %vm4951, %v4949, %v4434
        %v4983 = vsel %vm4951, %v4950, %v4436
        %vm4984 = vcmask 654336
        %v4985 = vsel %vm4984, %v4952, %v4502
        %v4986 = vsel %vm4984, %v4953, %v4504
        %v4987 = vsel %vm4984, %v4954, %v4506
        %v4988 = vsel %vm4984, %v4955, %v4508
        %v4989 = vsel %vm4984, %v4956, %v4510
        %v4990 = vsel %vm4984, %v4957, %v4512
        %v4991 = vsel %vm4984, %v4958, %v4514
        %v4992 = vsel %vm4984, %v4959, %v4516
        %v4993 = vsel %vm4984, %v4960, %v4518
        %v4994 = vsel %vm4984, %v4961, %v4520
        %v4995 = vsel %vm4984, %v4962, %v4522
        %v4996 = vsel %vm4984, %v4963, %v4524
        %v4997 = vsel %vm4984, %v4964, %v4526
        %v4998 = vsel %vm4984, %v4965, %v4528
        %v4999 = vsel %vm4984, %v4966, %v4530
        %v5000 = vsel %vm4984, %v4967, %v4532
        %v5001 = vsel %vm4984, %v4968, %v4534
        %v5002 = vsel %vm4984, %v4969, %v4536
        %v5003 = vsel %vm4984, %v4970, %v4538
        %v5004 = vsel %vm4984, %v4971, %v4540
        %v5005 = vsel %vm4984, %v4972, %v4542
        %v5006 = vsel %vm4984, %v4973, %v4544
        %v5007 = vsel %vm4984, %v4974, %v4546
        %v5008 = vsel %vm4984, %v4975, %v4548
        %v5009 = vsel %vm4984, %v4976, %v4550
        %v5010 = vsel %vm4984, %v4977, %v4552
        %v5011 = vsel %vm4984, %v4978, %v4554
        %v5012 = vsel %vm4984, %v4979, %v4556
        %v5013 = vsel %vm4984, %v4980, %v4558
        %v5014 = vsel %vm4984, %v4981, %v4560
        %v5015 = vsel %vm4984, %v4982, %v4562
        %v5016 = vsel %vm4984, %v4983, %v4564
        %vm5017 = vcmask 785408
        %v5018 = vsel %vm5017, %v4985, %v4630
        %v5019 = vsel %vm5017, %v4986, %v4632
        %v5020 = vsel %vm5017, %v4987, %v4634
        %v5021 = vsel %vm5017, %v4988, %v4636
        %v5022 = vsel %vm5017, %v4989, %v4638
        %v5023 = vsel %vm5017, %v4990, %v4640
        %v5024 = vsel %vm5017, %v4991, %v4642
        %v5025 = vsel %vm5017, %v4992, %v4644
        %v5026 = vsel %vm5017, %v4993, %v4646
        %v5027 = vsel %vm5017, %v4994, %v4648
        %v5028 = vsel %vm5017, %v4995, %v4650
        %v5029 = vsel %vm5017, %v4996, %v4652
        %v5030 = vsel %vm5017, %v4997, %v4654
        %v5031 = vsel %vm5017, %v4998, %v4656
        %v5032 = vsel %vm5017, %v4999, %v4658
        %v5033 = vsel %vm5017, %v5000, %v4660
        %v5034 = vsel %vm5017, %v5001, %v4662
        %v5035 = vsel %vm5017, %v5002, %v4664
        %v5036 = vsel %vm5017, %v5003, %v4666
        %v5037 = vsel %vm5017, %v5004, %v4668
        %v5038 = vsel %vm5017, %v5005, %v4670
        %v5039 = vsel %vm5017, %v5006, %v4672
        %v5040 = vsel %vm5017, %v5007, %v4674
        %v5041 = vsel %vm5017, %v5008, %v4676
        %v5042 = vsel %vm5017, %v5009, %v4678
        %v5043 = vsel %vm5017, %v5010, %v4680
        %v5044 = vsel %vm5017, %v5011, %v4682
        %v5045 = vsel %vm5017, %v5012, %v4684
        %v5046 = vsel %vm5017, %v5013, %v4686
        %v5047 = vsel %vm5017, %v5014, %v4688
        %v5048 = vsel %vm5017, %v5015, %v4690
        %v5049 = vsel %vm5017, %v5016, %v4692
        %vm5050 = vcmask 916480
        %v5051 = vsel %vm5050, %v5018, %v4758
        %v5052 = vsel %vm5050, %v5019, %v4760
        %v5053 = vsel %vm5050, %v5020, %v4762
        %v5054 = vsel %vm5050, %v5021, %v4764
        %v5055 = vsel %vm5050, %v5022, %v4766
        %v5056 = vsel %vm5050, %v5023, %v4768
        %v5057 = vsel %vm5050, %v5024, %v4770
        %v5058 = vsel %vm5050, %v5025, %v4772
        %v5059 = vsel %vm5050, %v5026, %v4774
        %v5060 = vsel %vm5050, %v5027, %v4776
        %v5061 = vsel %vm5050, %v5028, %v4778
        %v5062 = vsel %vm5050, %v5029, %v4780
        %v5063 = vsel %vm5050, %v5030, %v4782
        %v5064 = vsel %vm5050, %v5031, %v4784
        %v5065 = vsel %vm5050, %v5032, %v4786
        %v5066 = vsel %vm5050, %v5033, %v4788
        %v5067 = vsel %vm5050, %v5034, %v4790
        %v5068 = vsel %vm5050, %v5035, %v4792
        %v5069 = vsel %vm5050, %v5036, %v4794
        %v5070 = vsel %vm5050, %v5037, %v4796
        %v5071 = vsel %vm5050, %v5038, %v4798
        %v5072 = vsel %vm5050, %v5039, %v4800
        %v5073 = vsel %vm5050, %v5040, %v4802
        %v5074 = vsel %vm5050, %v5041, %v4804
        %v5075 = vsel %vm5050, %v5042, %v4806
        %v5076 = vsel %vm5050, %v5043, %v4808
        %v5077 = vsel %vm5050, %v5044, %v4810
        %v5078 = vsel %vm5050, %v5045, %v4812
        %v5079 = vsel %vm5050, %v5046, %v4814
        %v5080 = vsel %vm5050, %v5047, %v4816
        %v5081 = vsel %vm5050, %v5048, %v4818
        %v5082 = vsel %vm5050, %v5049, %v4820
        %v5083 = vld [vmem:[%s2] sm:$0xff]
        %v5084 = vld [vmem:[%s2 + $0x8] sm:$0xff]
        %v5085 = vld [vmem:[%s2 + $0x10] sm:$0xff]
        %v5086 = vld [vmem:[%s2 + $0x18] sm:$0xff]
        %v5087 = vld [vmem:[%s2 + $0x20] sm:$0xff]
        %v5088 = vld [vmem:[%s2 + $0x28] sm:$0xff]
        %v5089 = vld [vmem:[%s2 + $0x30] sm:$0xff]
        %v5090 = vld [vmem:[%s2 + $0x38] sm:$0xff]
        %v5091 = vld [vmem:[%s2 + $0x40] sm:$0xff]
        %v5092 = vld [vmem:[%s2 + $0x48] sm:$0xff]
        %v5093 = vld [vmem:[%s2 + $0x50] sm:$0xff]
        %v5094 = vld [vmem:[%s2 + $0x58] sm:$0xff]
        %v5095 = vld [vmem:[%s2 + $0x60] sm:$0xff]
        %v5096 = vld [vmem:[%s2 + $0x68] sm:$0xff]
        %v5097 = vld [vmem:[%s2 + $0x70] sm:$0xff]
        %v5098 = vld [vmem:[%s2 + $0x78] sm:$0xff]
        %v5099 = vld [vmem:[%s2 + $0x80] sm:$0xff]
        %v5100 = vld [vmem:[%s2 + $0x88] sm:$0xff]
        %v5101 = vld [vmem:[%s3] sm:$0x1]
        %v5103 = vlaneseq
        %v5104 = vshrl.u32 %v5103, 7
        %v5105 = vsub.s32 0, %v5104
        %v5106 = vrot.slane %v5101, %v5105
        %v5109 = vsel %vm2885, %v3925, 0
        %v5112 = vsel %vm2885, %v3926, 0
        %v5115 = vsel %vm2885, %v3927, 0
        %v5118 = vsel %vm2885, %v3928, 0
        %v5121 = vsel %vm2885, %v3929, 0
        %v5124 = vsel %vm2885, %v3930, 0
        %v5127 = vsel %vm2885, %v3931, 0
        %v5130 = vsel %vm2885, %v3932, 0
        %v5133 = vsel %vm2885, %v3933, 0
        %v5136 = vsel %vm2885, %v3934, 0
        %v5139 = vsel %vm2885, %v3935, 0
        %v5142 = vsel %vm2885, %v3936, 0
        %v5145 = vsel %vm2885, %v3937, 0
        %v5148 = vsel %vm2885, %v3938, 0
        %v5151 = vsel %vm2885, %v3939, 0
        %v5154 = vsel %vm2885, %v3940, 0
        %v5157 = vsel %vm2885, %v3941, 0
        %v5160 = vsel %vm2885, %v3942, 0
        %v5163 = vsel %vm2885, %v3943, 0
        %v5166 = vsel %vm2885, %v3944, 0
        %v5169 = vsel %vm2885, %v3945, 0
        %v5172 = vsel %vm2885, %v3946, 0
        %v5175 = vsel %vm2885, %v3947, 0
        %v5178 = vsel %vm2885, %v3948, 0
        %v5181 = vsel %vm2885, %v3949, 0
        %v5184 = vsel %vm2885, %v3950, 0
        %v5187 = vsel %vm2885, %v3951, 0
        %v5190 = vsel %vm2885, %v3952, 0
        %v5193 = vsel %vm2885, %v3953, 0
        %v5196 = vsel %vm2885, %v3954, 0
        %v5199 = vsel %vm2885, %v3955, 0
        %v5202 = vsel %vm2885, %v3956, 0
        %5204 = vmatprep.subr.mxu0 0.0
        %5205 = vmatpush1.msra.mxu0 %v5083
        %5206 = vmatprep.subr.mxu0 0.0
        %5207 = vmatpush1.msra.mxu0 %v5084
        %5208 = vmatprep.subr.mxu0 0.0
        %5209 = vmatpush1.msra.mxu0 %v5085
        %5210 = vmatprep.subr.mxu0 0.0
        %5211 = vmatpush1.msra.mxu0 %v5086
        %5212 = vmatprep.subr.mxu0 0.0
        %5213 = vmatpush1.msra.mxu0 %v5087
        %5214 = vmatprep.subr.mxu0 0.0
        %5215 = vmatpush1.msra.mxu0 %v5088
        %5216 = vmatprep.subr.mxu0 0.0
        %5217 = vmatpush1.msra.mxu0 %v5089
        %5218 = vmatprep.subr.mxu0 0.0
        %5219 = vmatpush1.msra.mxu0 %v5090
        %5220 = vmatprep.subr.mxu0 0.0
        %5221 = vmatpush1.msra.mxu0 %v5091
        %5222 = vmatprep.subr.mxu0 0.0
        %5223 = vmatpush1.msra.mxu0 %v5092
        %5224 = vmatprep.subr.mxu0 0.0
        %5225 = vmatpush1.msra.mxu0 %v5093
        %5226 = vmatprep.subr.mxu0 0.0
        %5227 = vmatpush1.msra.mxu0 %v5094
        %5228 = vmatprep.subr.mxu0 0.0
        %5229 = vmatpush1.msra.mxu0 %v5095
        %5230 = vmatprep.subr.mxu0 0.0
        %5231 = vmatpush1.msra.mxu0 %v5096
        %5232 = vmatprep.subr.mxu0 0.0
        %5233 = vmatpush1.msra.mxu0 %v5097
        %5234 = vmatprep.subr.mxu0 0.0
        %5235 = vmatpush1.msra.mxu0 %v5098
        %5236 = vmatprep.subr.mxu0 0.0
        %5237 = vmatpush1.msra.mxu0 %v5099
        %5238 = vmatprep.subr.mxu0 0.0
        %5239 = vmatpush1.msra.mxu0 %v5100
        %5240 = vmatprep.subr.mxu0 0.0
        %5241 = vmatpush1.msra.mxu0 0.0
        %5242 = vmatprep.subr.mxu0 0.0
        %5243 = vmatpush1.msra.mxu0 0.0
        %5244 = vmatprep.subr.mxu0 0.0
        %5245 = vmatpush1.msra.mxu0 0.0
        %5246 = vmatprep.subr.mxu0 0.0
        %5247 = vmatpush1.msra.mxu0 0.0
        %5248 = vmatprep.subr.mxu0 0.0
        %5249 = vmatpush1.msra.mxu0 0.0
        %5250 = vmatprep.subr.mxu0 0.0
        %5251 = vmatpush1.msra.mxu0 0.0
        %5252 = vmatprep.subr.mxu0 0.0
        %5253 = vmatpush1.msra.mxu0 0.0
        %5254 = vmatprep.subr.mxu0 0.0
        %5255 = vmatpush1.msra.mxu0 0.0
        %5256 = vmatprep.subr.mxu0 0.0
        %5257 = vmatpush1.msra.mxu0 0.0
        %5258 = vmatprep.subr.mxu0 0.0
        %5259 = vmatpush1.msra.mxu0 0.0
        %5260 = vmatprep.subr.mxu0 0.0
        %5261 = vmatpush1.msra.mxu0 0.0
        %5262 = vmatprep.subr.mxu0 0.0
        %5263 = vmatpush1.msra.mxu0 0.0
        %5264 = vmatprep.subr.mxu0 0.0
        %5265 = vmatpush1.msra.mxu0 0.0
        %5266 = vmatprep.subr.mxu0 0.0
        %5267 = vmatpush1.msra.mxu0 0.0
        %5268 = vmatprep.mubr.f32.mxu0 %v5109
        %5269 = vmatmul.mubr.f32.gmra.mrb[0].mxu0 %v5051
        %v5270 = vpop.f32.mrb[0].mxu0
        %v5271 = vadd.f32 %v5106, %v5270
        %v5272 = vpop.f32.mrb[0].mxu0
        %5273 = vmatprep.mubr.f32.mxu0 %v5112
        %5274 = vmatmul.mubr.f32.gmra.mrb[0].mxu0 %v5052
        %v5275 = vpop.f32.mrb[0].mxu0
        %v5276 = vadd.f32 %v5106, %v5275
        %v5277 = vpop.f32.mrb[0].mxu0
        %5278 = vmatprep.mubr.f32.mxu0 %v5115
        %5279 = vmatmul.mubr.f32.gmra.mrb[0].mxu0 %v5053
        %v5280 = vpop.f32.mrb[0].mxu0
        %v5281 = vadd.f32 %v5106, %v5280
        %v5282 = vpop.f32.mrb[0].mxu0
        %5283 = vmatprep.mubr.f32.mxu0 %v5118
        %5284 = vmatmul.mubr.f32.gmra.mrb[0].mxu0 %v5054
        %v5285 = vpop.f32.mrb[0].mxu0
        %v5286 = vadd.f32 %v5106, %v5285
        %v5287 = vpop.f32.mrb[0].mxu0
        %5288 = vmatprep.mubr.f32.mxu0 %v5121
        %5289 = vmatmul.mubr.f32.gmra.mrb[0].mxu0 %v5055
        %v5290 = vpop.f32.mrb[0].mxu0
        %v5291 = vadd.f32 %v5106, %v5290
        %v5292 = vpop.f32.mrb[0].mxu0
        %5293 = vmatprep.mubr.f32.mxu0 %v5124
        %5294 = vmatmul.mubr.f32.gmra.mrb[0].mxu0 %v5056
        %v5295 = vpop.f32.mrb[0].mxu0
        %v5296 = vadd.f32 %v5106, %v5295
        %v5297 = vpop.f32.mrb[0].mxu0
        %5298 = vmatprep.mubr.f32.mxu0 %v5127
        %5299 = vmatmul.mubr.f32.gmra.mrb[0].mxu0 %v5057
        %v5300 = vpop.f32.mrb[0].mxu0
        %v5301 = vadd.f32 %v5106, %v5300
        %v5302 = vpop.f32.mrb[0].mxu0
        %5303 = vmatprep.mubr.f32.mxu0 %v5130
        %5304 = vmatmul.mubr.f32.gmra.mrb[0].mxu0 %v5058
        %v5305 = vpop.f32.mrb[0].mxu0
        %v5306 = vadd.f32 %v5106, %v5305
        %v5307 = vpop.f32.mrb[0].mxu0
        %5308 = vmatprep.mubr.f32.mxu0 %v5133
        %5309 = vmatmul.mubr.f32.gmra.mrb[0].mxu0 %v5059
        %v5310 = vpop.f32.mrb[0].mxu0
        %v5311 = vadd.f32 %v5106, %v5310
        %v5312 = vpop.f32.mrb[0].mxu0
        %5313 = vmatprep.mubr.f32.mxu0 %v5136
        %5314 = vmatmul.mubr.f32.gmra.mrb[0].mxu0 %v5060
        %v5315 = vpop.f32.mrb[0].mxu0
        %v5316 = vadd.f32 %v5106, %v5315
        %v5317 = vpop.f32.mrb[0].mxu0
        %5318 = vmatprep.mubr.f32.mxu0 %v5139
        %5319 = vmatmul.mubr.f32.gmra.mrb[0].mxu0 %v5061
        %v5320 = vpop.f32.mrb[0].mxu0
        %v5321 = vadd.f32 %v5106, %v5320
        %v5322 = vpop.f32.mrb[0].mxu0
        %5323 = vmatprep.mubr.f32.mxu0 %v5142
        %5324 = vmatmul.mubr.f32.gmra.mrb[0].mxu0 %v5062
        %v5325 = vpop.f32.mrb[0].mxu0
        %v5326 = vadd.f32 %v5106, %v5325
        %v5327 = vpop.f32.mrb[0].mxu0
        %5328 = vmatprep.mubr.f32.mxu0 %v5145
        %5329 = vmatmul.mubr.f32.gmra.mrb[0].mxu0 %v5063
        %v5330 = vpop.f32.mrb[0].mxu0
        %v5331 = vadd.f32 %v5106, %v5330
        %v5332 = vpop.f32.mrb[0].mxu0
        %5333 = vmatprep.mubr.f32.mxu0 %v5148
        %5334 = vmatmul.mubr.f32.gmra.mrb[0].mxu0 %v5064
        %v5335 = vpop.f32.mrb[0].mxu0
        %v5336 = vadd.f32 %v5106, %v5335
        %v5337 = vpop.f32.mrb[0].mxu0
        %5338 = vmatprep.mubr.f32.mxu0 %v5151
        %5339 = vmatmul.mubr.f32.gmra.mrb[0].mxu0 %v5065
        %v5340 = vpop.f32.mrb[0].mxu0
        %v5341 = vadd.f32 %v5106, %v5340
        %v5342 = vpop.f32.mrb[0].mxu0
        %5343 = vmatprep.mubr.f32.mxu0 %v5154
        %5344 = vmatmul.mubr.f32.gmra.mrb[0].mxu0 %v5066
        %v5345 = vpop.f32.mrb[0].mxu0
        %v5346 = vadd.f32 %v5106, %v5345
        %v5347 = vpop.f32.mrb[0].mxu0
        %5348 = vmatprep.mubr.f32.mxu0 %v5157
        %5349 = vmatmul.mubr.f32.gmra.mrb[0].mxu0 %v5067
        %v5350 = vpop.f32.mrb[0].mxu0
        %v5351 = vadd.f32 %v5106, %v5350
        %v5352 = vpop.f32.mrb[0].mxu0
        %5353 = vmatprep.mubr.f32.mxu0 %v5160
        %5354 = vmatmul.mubr.f32.gmra.mrb[0].mxu0 %v5068
        %v5355 = vpop.f32.mrb[0].mxu0
        %v5356 = vadd.f32 %v5106, %v5355
        %v5357 = vpop.f32.mrb[0].mxu0
        %5358 = vmatprep.mubr.f32.mxu0 %v5163
        %5359 = vmatmul.mubr.f32.gmra.mrb[0].mxu0 %v5069
        %v5360 = vpop.f32.mrb[0].mxu0
        %v5361 = vadd.f32 %v5106, %v5360
        %v5362 = vpop.f32.mrb[0].mxu0
        %5363 = vmatprep.mubr.f32.mxu0 %v5166
        %5364 = vmatmul.mubr.f32.gmra.mrb[0].mxu0 %v5070
        %v5365 = vpop.f32.mrb[0].mxu0
        %v5366 = vadd.f32 %v5106, %v5365
        %v5367 = vpop.f32.mrb[0].mxu0
        %5368 = vmatprep.mubr.f32.mxu0 %v5169
        %5369 = vmatmul.mubr.f32.gmra.mrb[0].mxu0 %v5071
        %v5370 = vpop.f32.mrb[0].mxu0
        %v5371 = vadd.f32 %v5106, %v5370
        %v5372 = vpop.f32.mrb[0].mxu0
        %5373 = vmatprep.mubr.f32.mxu0 %v5172
        %5374 = vmatmul.mubr.f32.gmra.mrb[0].mxu0 %v5072
        %v5375 = vpop.f32.mrb[0].mxu0
        %v5376 = vadd.f32 %v5106, %v5375
        %v5377 = vpop.f32.mrb[0].mxu0
        %5378 = vmatprep.mubr.f32.mxu0 %v5175
        %5379 = vmatmul.mubr.f32.gmra.mrb[0].mxu0 %v5073
        %v5380 = vpop.f32.mrb[0].mxu0
        %v5381 = vadd.f32 %v5106, %v5380
        %v5382 = vpop.f32.mrb[0].mxu0
        %5383 = vmatprep.mubr.f32.mxu0 %v5178
        %5384 = vmatmul.mubr.f32.gmra.mrb[0].mxu0 %v5074
        %v5385 = vpop.f32.mrb[0].mxu0
        %v5386 = vadd.f32 %v5106, %v5385
        %v5387 = vpop.f32.mrb[0].mxu0
        %5388 = vmatprep.mubr.f32.mxu0 %v5181
        %5389 = vmatmul.mubr.f32.gmra.mrb[0].mxu0 %v5075
        %v5390 = vpop.f32.mrb[0].mxu0
        %v5391 = vadd.f32 %v5106, %v5390
        %v5392 = vpop.f32.mrb[0].mxu0
        %5393 = vmatprep.mubr.f32.mxu0 %v5184
        %5394 = vmatmul.mubr.f32.gmra.mrb[0].mxu0 %v5076
        %v5395 = vpop.f32.mrb[0].mxu0
        %v5396 = vadd.f32 %v5106, %v5395
        %v5397 = vpop.f32.mrb[0].mxu0
        %5398 = vmatprep.mubr.f32.mxu0 %v5187
        %5399 = vmatmul.mubr.f32.gmra.mrb[0].mxu0 %v5077
        %v5400 = vpop.f32.mrb[0].mxu0
        %v5401 = vadd.f32 %v5106, %v5400
        %v5402 = vpop.f32.mrb[0].mxu0
        %5403 = vmatprep.mubr.f32.mxu0 %v5190
        %5404 = vmatmul.mubr.f32.gmra.mrb[0].mxu0 %v5078
        %v5405 = vpop.f32.mrb[0].mxu0
        %v5406 = vadd.f32 %v5106, %v5405
        %v5407 = vpop.f32.mrb[0].mxu0
        %5408 = vmatprep.mubr.f32.mxu0 %v5193
        %5409 = vmatmul.mubr.f32.gmra.mrb[0].mxu0 %v5079
        %v5410 = vpop.f32.mrb[0].mxu0
        %v5411 = vadd.f32 %v5106, %v5410
        %v5412 = vpop.f32.mrb[0].mxu0
        %5413 = vmatprep.mubr.f32.mxu0 %v5196
        %5414 = vmatmul.mubr.f32.gmra.mrb[0].mxu0 %v5080
        %v5415 = vpop.f32.mrb[0].mxu0
        %v5416 = vadd.f32 %v5106, %v5415
        %v5417 = vpop.f32.mrb[0].mxu0
        %5418 = vmatprep.mubr.f32.mxu0 %v5199
        %5419 = vmatmul.mubr.f32.gmra.mrb[0].mxu0 %v5081
        %v5420 = vpop.f32.mrb[0].mxu0
        %v5421 = vadd.f32 %v5106, %v5420
        %v5422 = vpop.f32.mrb[0].mxu0
        %5423 = vmatprep.mubr.f32.mxu0 %v5202
        %5424 = vmatmul.mubr.f32.gmra.mrb[0].mxu0 %v5082
        %v5425 = vpop.f32.mrb[0].mxu0
        %v5426 = vadd.f32 %v5106, %v5425
        %v5427 = vpop.f32.mrb[0].mxu0
        %5428 = vdwg.mxu0
        %5429 = vst.msk [vmem:[%s261] sm:$0xff] %vm2885, %v5271
        %5430 = vst.msk [vmem:[%s261 + $0x8] sm:$0xff] %vm2885, %v5276
        %5431 = vst.msk [vmem:[%s261 + $0x10] sm:$0xff] %vm2885, %v5281
        %5432 = vst.msk [vmem:[%s261 + $0x18] sm:$0xff] %vm2885, %v5286
        %5433 = vst.msk [vmem:[%s261 + $0x20] sm:$0xff] %vm2885, %v5291
        %5434 = vst.msk [vmem:[%s261 + $0x28] sm:$0xff] %vm2885, %v5296
        %5435 = vst.msk [vmem:[%s261 + $0x30] sm:$0xff] %vm2885, %v5301
        %5436 = vst.msk [vmem:[%s261 + $0x38] sm:$0xff] %vm2885, %v5306
        %5437 = vst.msk [vmem:[%s261 + $0x40] sm:$0xff] %vm2885, %v5311
        %5438 = vst.msk [vmem:[%s261 + $0x48] sm:$0xff] %vm2885, %v5316
        %5439 = vst.msk [vmem:[%s261 + $0x50] sm:$0xff] %vm2885, %v5321
        %5440 = vst.msk [vmem:[%s261 + $0x58] sm:$0xff] %vm2885, %v5326
        %5441 = vst.msk [vmem:[%s261 + $0x60] sm:$0xff] %vm2885, %v5331
        %5442 = vst.msk [vmem:[%s261 + $0x68] sm:$0xff] %vm2885, %v5336
        %5443 = vst.msk [vmem:[%s261 + $0x70] sm:$0xff] %vm2885, %v5341
        %5444 = vst.msk [vmem:[%s261 + $0x78] sm:$0xff] %vm2885, %v5346
        %5445 = vst.msk [vmem:[%s261 + $0x80] sm:$0xff] %vm2885, %v5351
        %5446 = vst.msk [vmem:[%s261 + $0x88] sm:$0xff] %vm2885, %v5356
        %5447 = vst.msk [vmem:[%s261 + $0x90] sm:$0xff] %vm2885, %v5361
        %5448 = vst.msk [vmem:[%s261 + $0x98] sm:$0xff] %vm2885, %v5366
        %5449 = vst.msk [vmem:[%s261 + $0xa0] sm:$0xff] %vm2885, %v5371
        %5450 = vst.msk [vmem:[%s261 + $0xa8] sm:$0xff] %vm2885, %v5376
        %5451 = vst.msk [vmem:[%s261 + $0xb0] sm:$0xff] %vm2885, %v5381
        %5452 = vst.msk [vmem:[%s261 + $0xb8] sm:$0xff] %vm2885, %v5386
        %5453 = vst.msk [vmem:[%s261 + $0xc0] sm:$0xff] %vm2885, %v5391
        %5454 = vst.msk [vmem:[%s261 + $0xc8] sm:$0xff] %vm2885, %v5396
        %5455 = vst.msk [vmem:[%s261 + $0xd0] sm:$0xff] %vm2885, %v5401
        %5456 = vst.msk [vmem:[%s261 + $0xd8] sm:$0xff] %vm2885, %v5406
        %5457 = vst.msk [vmem:[%s261 + $0xe0] sm:$0xff] %vm2885, %v5411
        %5458 = vst.msk [vmem:[%s261 + $0xe8] sm:$0xff] %vm2885, %v5416
        %5459 = vst.msk [vmem:[%s261 + $0xf0] sm:$0xff] %vm2885, %v5421
        %5460 = vst.msk [vmem:[%s261 + $0xf8] sm:$0xff] %vm2885, %v5426
        %v5461 = vsel %vm2885, %v5271, 0.0
        %v5462 = vsel %vm2885, %v5276, 0.0
        %v5463 = vadd.f32 %v5461, %v5462
        %v5464 = vsel %vm2885, %v5281, 0.0
        %v5465 = vadd.f32 %v5463, %v5464
        %v5466 = vsel %vm2885, %v5286, 0.0
        %v5467 = vadd.f32 %v5465, %v5466
        %v5468 = vsel %vm2885, %v5291, 0.0
        %v5469 = vadd.f32 %v5467, %v5468
        %v5470 = vsel %vm2885, %v5296, 0.0
        %v5471 = vadd.f32 %v5469, %v5470
        %v5472 = vsel %vm2885, %v5301, 0.0
        %v5473 = vadd.f32 %v5471, %v5472
        %v5474 = vsel %vm2885, %v5306, 0.0
        %v5475 = vadd.f32 %v5473, %v5474
        %v5476 = vsel %vm2885, %v5311, 0.0
        %v5477 = vadd.f32 %v5475, %v5476
        %v5478 = vsel %vm2885, %v5316, 0.0
        %v5479 = vadd.f32 %v5477, %v5478
        %v5480 = vsel %vm2885, %v5321, 0.0
        %v5481 = vadd.f32 %v5479, %v5480
        %v5482 = vsel %vm2885, %v5326, 0.0
        %v5483 = vadd.f32 %v5481, %v5482
        %v5484 = vsel %vm2885, %v5331, 0.0
        %v5485 = vadd.f32 %v5483, %v5484
        %v5486 = vsel %vm2885, %v5336, 0.0
        %v5487 = vadd.f32 %v5485, %v5486
        %v5488 = vsel %vm2885, %v5341, 0.0
        %v5489 = vadd.f32 %v5487, %v5488
        %v5490 = vsel %vm2885, %v5346, 0.0
        %v5491 = vadd.f32 %v5489, %v5490
        %v5492 = vsel %vm2885, %v5351, 0.0
        %v5493 = vadd.f32 %v5491, %v5492
        %v5494 = vsel %vm2885, %v5356, 0.0
        %v5495 = vadd.f32 %v5493, %v5494
        %v5496 = vsel %vm2885, %v5361, 0.0
        %v5497 = vadd.f32 %v5495, %v5496
        %v5498 = vsel %vm2885, %v5366, 0.0
        %v5499 = vadd.f32 %v5497, %v5498
        %v5500 = vsel %vm2885, %v5371, 0.0
        %v5501 = vadd.f32 %v5499, %v5500
        %v5502 = vsel %vm2885, %v5376, 0.0
        %v5503 = vadd.f32 %v5501, %v5502
        %v5504 = vsel %vm2885, %v5381, 0.0
        %v5505 = vadd.f32 %v5503, %v5504
        %v5506 = vsel %vm2885, %v5386, 0.0
        %v5507 = vadd.f32 %v5505, %v5506
        %v5508 = vsel %vm2885, %v5391, 0.0
        %v5509 = vadd.f32 %v5507, %v5508
        %v5510 = vsel %vm2885, %v5396, 0.0
        %v5511 = vadd.f32 %v5509, %v5510
        %v5512 = vsel %vm2885, %v5401, 0.0
        %v5513 = vadd.f32 %v5511, %v5512
        %v5514 = vsel %vm2885, %v5406, 0.0
        %v5515 = vadd.f32 %v5513, %v5514
        %v5516 = vsel %vm2885, %v5411, 0.0
        %v5517 = vadd.f32 %v5515, %v5516
        %v5518 = vsel %vm2885, %v5416, 0.0
        %v5519 = vadd.f32 %v5517, %v5518
        %v5520 = vsel %vm2885, %v5421, 0.0
        %v5521 = vadd.f32 %v5519, %v5520
        %v5522 = vsel %vm2885, %v5426, 0.0
        %v5523 = vadd.f32 %v5521, %v5522
        %v5524 = vrot.slane %v5523, 4
        %v5525 = vadd.f32 %v5523, %v5524
        %v5526 = vrot.slane %v5525, 2
        %v5527 = vadd.f32 %v5525, %v5526
        %v5528 = vrot.slane %v5527, 1
        %v5529 = vadd.f32 %v5527, %v5528
        %v5530 = vmul.f32 %v5271, %v5271
        %v5531 = vmul.f32 %v5276, %v5276
        %v5532 = vmul.f32 %v5281, %v5281
        %v5533 = vmul.f32 %v5286, %v5286
        %v5534 = vmul.f32 %v5291, %v5291
        %v5535 = vmul.f32 %v5296, %v5296
        %v5536 = vmul.f32 %v5301, %v5301
        %v5537 = vmul.f32 %v5306, %v5306
        %v5538 = vmul.f32 %v5311, %v5311
        %v5539 = vmul.f32 %v5316, %v5316
        %v5540 = vmul.f32 %v5321, %v5321
        %v5541 = vmul.f32 %v5326, %v5326
        %v5542 = vmul.f32 %v5331, %v5331
        %v5543 = vmul.f32 %v5336, %v5336
        %v5544 = vmul.f32 %v5341, %v5341
        %v5545 = vmul.f32 %v5346, %v5346
        %v5546 = vmul.f32 %v5351, %v5351
        %v5547 = vmul.f32 %v5356, %v5356
        %v5548 = vmul.f32 %v5361, %v5361
        %v5549 = vmul.f32 %v5366, %v5366
        %v5550 = vmul.f32 %v5371, %v5371
        %v5551 = vmul.f32 %v5376, %v5376
        %v5552 = vmul.f32 %v5381, %v5381
        %v5553 = vmul.f32 %v5386, %v5386
        %v5554 = vmul.f32 %v5391, %v5391
        %v5555 = vmul.f32 %v5396, %v5396
        %v5556 = vmul.f32 %v5401, %v5401
        %v5557 = vmul.f32 %v5406, %v5406
        %v5558 = vmul.f32 %v5411, %v5411
        %v5559 = vmul.f32 %v5416, %v5416
        %v5560 = vmul.f32 %v5421, %v5421
        %v5561 = vmul.f32 %v5426, %v5426
        %v5562 = vsel %vm2885, %v5530, 0.0
        %v5563 = vsel %vm2885, %v5531, 0.0
        %v5564 = vadd.f32 %v5562, %v5563
        %v5565 = vsel %vm2885, %v5532, 0.0
        %v5566 = vadd.f32 %v5564, %v5565
        %v5567 = vsel %vm2885, %v5533, 0.0
        %v5568 = vadd.f32 %v5566, %v5567
        %v5569 = vsel %vm2885, %v5534, 0.0
        %v5570 = vadd.f32 %v5568, %v5569
        %v5571 = vsel %vm2885, %v5535, 0.0
        %v5572 = vadd.f32 %v5570, %v5571
        %v5573 = vsel %vm2885, %v5536, 0.0
        %v5574 = vadd.f32 %v5572, %v5573
        %v5575 = vsel %vm2885, %v5537, 0.0
        %v5576 = vadd.f32 %v5574, %v5575
        %v5577 = vsel %vm2885, %v5538, 0.0
        %v5578 = vadd.f32 %v5576, %v5577
        %v5579 = vsel %vm2885, %v5539, 0.0
        %v5580 = vadd.f32 %v5578, %v5579
        %v5581 = vsel %vm2885, %v5540, 0.0
        %v5582 = vadd.f32 %v5580, %v5581
        %v5583 = vsel %vm2885, %v5541, 0.0
        %v5584 = vadd.f32 %v5582, %v5583
        %v5585 = vsel %vm2885, %v5542, 0.0
        %v5586 = vadd.f32 %v5584, %v5585
        %v5587 = vsel %vm2885, %v5543, 0.0
        %v5588 = vadd.f32 %v5586, %v5587
        %v5589 = vsel %vm2885, %v5544, 0.0
        %v5590 = vadd.f32 %v5588, %v5589
        %v5591 = vsel %vm2885, %v5545, 0.0
        %v5592 = vadd.f32 %v5590, %v5591
        %v5593 = vsel %vm2885, %v5546, 0.0
        %v5594 = vadd.f32 %v5592, %v5593
        %v5595 = vsel %vm2885, %v5547, 0.0
        %v5596 = vadd.f32 %v5594, %v5595
        %v5597 = vsel %vm2885, %v5548, 0.0
        %v5598 = vadd.f32 %v5596, %v5597
        %v5599 = vsel %vm2885, %v5549, 0.0
        %v5600 = vadd.f32 %v5598, %v5599
        %v5601 = vsel %vm2885, %v5550, 0.0
        %v5602 = vadd.f32 %v5600, %v5601
        %v5603 = vsel %vm2885, %v5551, 0.0
        %v5604 = vadd.f32 %v5602, %v5603
        %v5605 = vsel %vm2885, %v5552, 0.0
        %v5606 = vadd.f32 %v5604, %v5605
        %v5607 = vsel %vm2885, %v5553, 0.0
        %v5608 = vadd.f32 %v5606, %v5607
        %v5609 = vsel %vm2885, %v5554, 0.0
        %v5610 = vadd.f32 %v5608, %v5609
        %v5611 = vsel %vm2885, %v5555, 0.0
        %v5612 = vadd.f32 %v5610, %v5611
        %v5613 = vsel %vm2885, %v5556, 0.0
        %v5614 = vadd.f32 %v5612, %v5613
        %v5615 = vsel %vm2885, %v5557, 0.0
        %v5616 = vadd.f32 %v5614, %v5615
        %v5617 = vsel %vm2885, %v5558, 0.0
        %v5618 = vadd.f32 %v5616, %v5617
        %v5619 = vsel %vm2885, %v5559, 0.0
        %v5620 = vadd.f32 %v5618, %v5619
        %v5621 = vsel %vm2885, %v5560, 0.0
        %v5622 = vadd.f32 %v5620, %v5621
        %v5623 = vsel %vm2885, %v5561, 0.0
        %v5624 = vadd.f32 %v5622, %v5623
        %v5625 = vrot.slane %v5624, 4
        %v5626 = vadd.f32 %v5624, %v5625
        %v5627 = vrot.slane %v5626, 2
        %v5628 = vadd.f32 %v5626, %v5627
        %v5629 = vrot.slane %v5628, 1
        %v5630 = vadd.f32 %v5628, %v5629
        %v5631 = vsel %vm1524, %v5529, %v5630
        %5632 = vst.msk [vmem:[%s268] sm:$0x3] %vm2888, %v5631
        %s5633 = sand.u32 %s128, 1
        %s5634 = scalar_lea.sflag [#allocation5], %s5633
        %s5635 = sand.u32 %s128, 1
        %s5636 = smul.addr %s5635, 256
        %s5637 = scalar_lea.vmem [#allocation6], %s5636
        %s5638 = sand.u32 %s154, 1
        %s5639 = scalar_lea.sflag [#allocation8], %s5638
        %s5640 = sand.u32 %s154, 1
        %s5641 = smul.addr %s5640, 2
        %s5642 = scalar_lea.vmem [#allocation7], %s5641
        // Predicated region
        $region41: #{tpu_custom_call.1} parent=35 // pred_check
          %p5643 = pneg %p138
        $region42: #{tpu_custom_call.1} parent=35 // pred_check_branch
          %5645 = sbr.rel (%p5643) target = $region44
        $region43: #{tpu_custom_call.1} parent=35 // pred_region
          %s5647 = ssub.s32 4096, 4096
          %5648 = vsyncadd %s5634, %s5647
          %s5649 = smul.addr %s26, 32
          %s5650 = smul.addr %s5649, 128
          %s5651 = scalar_lea.hbm %s4, %s5650
          %s5652 = sshll.u32 %s5637, 4
          %s5653 = int_to_ptr.vmem [resolvable:$true] %s5652
          %5658 = dma.vmem_to_hbm [thread:$0]  %s5653, 4096, %s5651, %s5634, 128, 128, 8
        $region44: #{tpu_custom_call.1} parent=35 // pred_fallthru
          _
        // Predicated region
        $region45: #{tpu_custom_call.1} parent=35 // pred_check
          %p5659 = pneg %p164
        $region46: #{tpu_custom_call.1} parent=35 // pred_check_branch
          %5661 = sbr.rel (%p5659) target = $region48
        $region47: #{tpu_custom_call.1} parent=35 // pred_region
          %s5663 = ssub.s32 32, 32
          %5664 = vsyncadd %s5639, %s5663
          %s5665 = smul.addr %s26, 32
          %s5666 = scalar_lea.hbm %s5, %s5665
          %s5668 = sshll.u32 %s5642, 4
          %s5669 = int_to_ptr.vmem [resolvable:$true] %s5668
          %5671 = dma.vmem_to_hbm [thread:$0]  %s5669, 32, %s5666, %s5639
        $region48: #{tpu_custom_call.1} parent=35 // pred_fallthru
          _
      $region36: #{tpu_custom_call.1} parent=5 // pred_fallthru
        _
      %p5672 = scmp.le.s32.totalorder 2, %s21
      // Predicated region
      $region49: #{tpu_custom_call.1} parent=5 // pred_check
        %p5673 = pneg %p5672
      $region50: #{tpu_custom_call.1} parent=5 // pred_check_branch
        %5675 = sbr.rel (%p5673) target = $region52
      $region51: #{tpu_custom_call.1} parent=5 // pred_region
        %s5676 = ssub.s32 %s21, 2
        // Predicated region
        $region53: #{tpu_custom_call.1} parent=51 // pred_check
          %p5677 = pneg %p144
        $region54: #{tpu_custom_call.1} parent=51 // pred_check_branch
          %5679 = sbr.rel (%p5677) target = $region56
        $region55: #{tpu_custom_call.1} parent=51 // pred_region
          %s5680 = sand.u32 %s129, 1
          %s5681 = scalar_lea.sflag [#allocation5], %s5680
          %s5682 = sand.u32 %s129, 1
          %s5683 = smul.addr %s5682, 256
          %s5684 = scalar_lea.vmem [#allocation6], %s5683
          %5685 = dma.done %s5681, 4096
        $region56: #{tpu_custom_call.1} parent=51 // pred_fallthru
          _
        // Predicated region
        $region57: #{tpu_custom_call.1} parent=51 // pred_check
          %p5686 = pneg %p170
        $region58: #{tpu_custom_call.1} parent=51 // pred_check_branch
          %5688 = sbr.rel (%p5686) target = $region60
        $region59: #{tpu_custom_call.1} parent=51 // pred_region
          %s5689 = sand.u32 %s155, 1
          %s5690 = scalar_lea.sflag [#allocation8], %s5689
          %s5691 = sand.u32 %s155, 1
          %s5692 = smul.addr %s5691, 2
          %s5693 = scalar_lea.vmem [#allocation7], %s5692
          %5694 = dma.done %s5690, 32
        $region60: #{tpu_custom_call.1} parent=51 // pred_fallthru
          _
      $region52: #{tpu_custom_call.1} parent=5 // pred_fallthru
        _
    $region6: #{tpu_custom_call.1} parent=1 // loop_footer
      %s25 = sadd.s32 1, %s21
    $region7: #{tpu_custom_call.1} parent=1 // loop_footer_branch
      %20 = sbr.rel target = $region3
    $region8: #{tpu_custom_call.1} parent=1 // loop_exit
      _
    %5695 = vsyncpa [#allocation4], 1
    %s5696 = scalar_lea.sflag [#allocation4], 1
    %5697 = vsyncpa %s5696, 1
    %5698 = vsyncpa [#allocation5], 1
    %s5699 = scalar_lea.sflag [#allocation5], 1
    %5700 = vsyncpa %s5699, 1
    %5701 = vsyncpa [#allocation8], 1
    %s5702 = scalar_lea.sflag [#allocation8], 1
    %5703 = vsyncpa %s5702, 1

</llo_original>
